<compile_context>
chip_gen: v5e
topology: v5e:2x2
jax: 0.10.0
libtpu: 0.0.40
codegen_flags: <defaults>
</compile_context>

<pallas_src>
import functools

import jax
import jax.numpy as jnp
from jax.experimental import pallas as pl
from jax.experimental.pallas import tpu as pltpu


# ------------------------------ Pallas kernels ------------------------------ #

def _linear_kernel(x_ref, w_ref, b_ref, o_ref):
    # y = x @ W + b   (weights stored pre-transposed as (in, out)).
    o_ref[...] = (jnp.dot(x_ref[...], w_ref[...],
                          preferred_element_type=jnp.float32) + b_ref[...])


def _bilstm_kernel(x_ref, wf_ref, uf_ref, bf_ref, wb_ref, ub_ref, bb_ref,
                   of_ref, ob_ref, hn_ref, cn_ref, *, S_out, N, H, halve):
    """Fused bidirectional LSTM over a scan-major (S_in, N, F) sequence.

    Both directions run inside one fori_loop; the backward direction reads
    frame S_out-1-s (no reversed HBM copy).  With halve=True the pBLSTM
    time-halving (concat of two adjacent frames) is folded in by splitting the
    input weight into its two frame halves.  PyTorch gate order i, f, g, o.
    Outputs: forward hidden sequence, backward hidden sequence, h_n, c_n.
    """
    uf = uf_ref[...]; bf = bf_ref[...]
    ub = ub_ref[...]; bb = bb_ref[...]

    def cell(xg, h, c, u, b):
        g = xg + jnp.dot(h, u, preferred_element_type=jnp.float32) + b
        i = jax.nn.sigmoid(g[:, 0 * H:1 * H])
        f = jax.nn.sigmoid(g[:, 1 * H:2 * H])
        gg = jnp.tanh(g[:, 2 * H:3 * H])
        o = jax.nn.sigmoid(g[:, 3 * H:4 * H])
        c_new = f * c + i * gg
        return o * jnp.tanh(c_new), c_new

    wf = wf_ref[...]; wb = wb_ref[...]
    if halve:
        Fh = wf.shape[0] // 2
        wf_lo, wf_hi = wf[0:Fh, :], wf[Fh:, :]
        wb_lo, wb_hi = wb[0:Fh, :], wb[Fh:, :]

        def xg_f(s):
            return (jnp.dot(x_ref[2 * s], wf_lo, preferred_element_type=jnp.float32)
                    + jnp.dot(x_ref[2 * s + 1], wf_hi,
                              preferred_element_type=jnp.float32))

        def xg_b(s):
            return (jnp.dot(x_ref[2 * s], wb_lo, preferred_element_type=jnp.float32)
                    + jnp.dot(x_ref[2 * s + 1], wb_hi,
                              preferred_element_type=jnp.float32))
    else:
        def xg_f(s):
            return jnp.dot(x_ref[s], wf, preferred_element_type=jnp.float32)

        def xg_b(s):
            return jnp.dot(x_ref[s], wb, preferred_element_type=jnp.float32)

    def step(s, carry):
        hf, cf, hb, cb = carry
        sb = S_out - 1 - s
        hf, cf = cell(xg_f(s), hf, cf, uf, bf)
        hb, cb = cell(xg_b(sb), hb, cb, ub, bb)
        of_ref[s] = hf
        ob_ref[sb] = hb
        return (hf, cf, hb, cb)

    z = jnp.zeros((N, H), jnp.float32)
    hf, cf, hb, cb = jax.lax.fori_loop(0, S_out, step, (z, z, z, z))
    hn_ref[0] = hf
    hn_ref[1] = hb
    cn_ref[0] = cf
    cn_ref[1] = cb


def _decoder_kernel(key_ref, value_ref, lens_ref, ce_ref, h10_ref, c10_ref,
                    qw_ref, qb_ref, wih1e_ref, wih1c_ref, whh1_ref, b1_ref,
                    wih2_ref, whh2_ref, b2_ref, fcwh_ref, fcwc_ref, fcb_ref,
                    embt_ref, charb_ref, tgt_ref, tlen_ref,
                    pred_ref, loss_ref, q_scr, g1e_scr,
                    *, B, S, K, D, Voc, T_text, scale):
    """Entire decoder time loop + masked CE loss fused in one kernel."""
    key = key_ref[...]            # (B, S, K)
    value = value_ref[...]        # (B, S, V)
    lens = lens_ref[...]          # (B, 1) int32
    col = jax.lax.broadcasted_iota(jnp.int32, (B, S), 1)
    att_mask = col >= lens        # (B, S) -> positions past encoder length

    # ---- batched precompute over all decoder steps (teacher forcing) ---- #
    ce = ce_ref[...]                                             # (T*B, E)
    q2d = (jnp.dot(ce, qw_ref[...], preferred_element_type=jnp.float32)
           + qb_ref[...])                                        # (T*B, K)
    g1e2d = (jnp.dot(ce, wih1e_ref[...], preferred_element_type=jnp.float32)
             + b1_ref[...])                                      # (T*B, 4D)
    for t in range(T_text):                                      # tiny static unroll
        q_scr[t] = q2d[t * B:(t + 1) * B, :]
        g1e_scr[t] = g1e2d[t * B:(t + 1) * B, :]

    wih1c = wih1c_ref[...]; whh1 = whh1_ref[...]
    wih2 = wih2_ref[...]; whh2 = whh2_ref[...]; b2 = b2_ref[...]
    fcwh = fcwh_ref[...]; fcwc = fcwc_ref[...]; fcb = fcb_ref[...]
    embt = embt_ref[...]; charb = charb_ref[...]

    def attend(query):
        # scaled dot-product attention over the encoder time axis
        e = jnp.einsum('bqk,bsk->bqs', query[:, None, :], key,
                       preferred_element_type=jnp.float32)[:, 0, :] * scale
        e = jnp.where(att_mask, -1000000000.0, e)
        e = e - jnp.max(e, axis=1, keepdims=True)
        p = jnp.exp(e)
        a = p / jnp.sum(p, axis=1, keepdims=True)
        ctx = jnp.einsum('bqs,bsv->bqv', a[:, None, :], value,
                         preferred_element_type=jnp.float32)[:, 0, :]
        return ctx

    def gates(pre, c, HH):
        i = jax.nn.sigmoid(pre[:, 0 * HH:1 * HH])
        f = jax.nn.sigmoid(pre[:, 1 * HH:2 * HH])
        g = jnp.tanh(pre[:, 2 * HH:3 * HH])
        o = jax.nn.sigmoid(pre[:, 3 * HH:4 * HH])
        c_new = f * c + i * g
        return o * jnp.tanh(c_new), c_new

    def step(i, carry):
        h1, c1, h2, c2 = carry
        ctx1 = attend(q_scr[i])                                   # attention1
        pre1 = (g1e_scr[i]
                + jnp.dot(ctx1, wih1c, preferred_element_type=jnp.float32)
                + jnp.dot(h1, whh1, preferred_element_type=jnp.float32))
        h1, c1 = gates(pre1, c1, D)                               # lstm1
        pre2 = (jnp.dot(h1, wih2, preferred_element_type=jnp.float32)
                + jnp.dot(h2, whh2, preferred_element_type=jnp.float32) + b2)
        h2, c2 = gates(pre2, c2, K)                               # lstm2
        ctx2 = attend(h2)                                         # attention2
        fc = jnp.clip(jnp.dot(h2, fcwh, preferred_element_type=jnp.float32)
                      + jnp.dot(ctx2, fcwc, preferred_element_type=jnp.float32)
                      + fcb, -1.0, 1.0)                           # fc + Hardtanh
        pred_ref[i] = (jnp.dot(fc, embt, preferred_element_type=jnp.float32)
                       + charb)                                   # tied weights
        return (h1, c1, h2, c2)

    z2 = jnp.zeros((B, K), jnp.float32)
    jax.lax.fori_loop(0, T_text, step, (h10_ref[...], c10_ref[...], z2, z2))

    # ---- masked CrossEntropy(reduction='none') + sum/len_sum reduction ---- #
    logits = pred_ref[...]                                        # (T, B, Voc)
    m = jnp.max(logits, axis=-1, keepdims=True)
    lse = jnp.log(jnp.sum(jnp.exp(logits - m), axis=-1)) + m[:, :, 0]   # (T, B)
    tgt = tgt_ref[...]                                            # (T, B) int32
    vidx = jax.lax.broadcasted_iota(jnp.int32, (T_text, B, Voc), 2)
    tgt_logit = jnp.sum(jnp.where(vidx == tgt[:, :, None], logits, 0.0), axis=-1)
    ce_tok = lse - tgt_logit                                      # per-token CE
    t_iota = jax.lax.broadcasted_iota(jnp.int32, (T_text, B), 0)
    tl = tlen_ref[...]                                            # (1, B) int32
    ce_tok = jnp.where(t_iota >= tl, 0.0, ce_tok)
    denom = jnp.sum(tl).astype(jnp.float32)
    loss_ref[...] = (jnp.sum(ce_tok) / denom).reshape(1, 1)


# ------------------------------ kernel wrappers ----------------------------- #

def bilstm(x_sm, p, halve):
    """Bidirectional LSTM over a scan-major (S_in, N, F) sequence.

    Returns (S_out, N, 2H) output (concat of directions) and (h_n, c_n)
    each shaped (2, N, H), matching nn.LSTM(bidirectional=True).
    """
    S_in, N, _ = x_sm.shape
    H = p['whh_f'].shape[0]
    if halve:
        S_out = S_in // 2
        x_sm = x_sm[:2 * S_out]
    else:
        S_out = S_in
    kernel = functools.partial(_bilstm_kernel, S_out=S_out, N=N, H=H, halve=halve)
    out_f, out_b, hn, cn = pl.pallas_call(
        kernel,
        out_shape=(jax.ShapeDtypeStruct((S_out, N, H), jnp.float32),
                   jax.ShapeDtypeStruct((S_out, N, H), jnp.float32),
                   jax.ShapeDtypeStruct((2, N, H), jnp.float32),
                   jax.ShapeDtypeStruct((2, N, H), jnp.float32)),
    )(x_sm.astype(jnp.float32), p['wih_f'], p['whh_f'], p['b_f'],
      p['wih_b'], p['whh_b'], p['b_b'])
    out = jnp.concatenate([out_f, out_b], axis=-1)                # (S_out, N, 2H)
    return out, (hn, cn)


def encoder_forward(params, x, x_lens, args):
    # Layer 0: the reference nn.LSTM has no batch_first -> scans over axis 0
    # (the batch axis) of x, exactly as the PyTorch module does.
    out0, _ = bilstm(x, params['enc'][0], halve=False)            # (B, T, 2H)
    seq = jnp.transpose(out0, (1, 0, 2))                          # time-major
    out_lens = x_lens
    hidden = None
    for i in range(1, args.encoder_num_layers):
        # pBLSTM: time halving folded into the kernel.
        seq, hidden = bilstm(seq, params['enc'][i], halve=True)   # (T_i, B, 2H)
        out_lens = out_lens // 2
    return seq, out_lens, hidden                                  # time-major output


def decoder_and_loss(params, enc_tm, enc_lens, text, hidden, target_lens, args):
    p = params['dec']
    S, B, H2 = enc_tm.shape
    T_text = text.shape[1]
    E, K, V, D, Voc = (args.embedding_size, args.key_size, args.value_size,
                       args.decoder_hidden_size, args.vocab_size)

    # key + value projections: one combined matmul over the whole encoder output.
    enc_bf = jnp.transpose(enc_tm, (1, 0, 2)).reshape(B * S, H2)
    kv = pl.pallas_call(
        _linear_kernel,
        out_shape=jax.ShapeDtypeStruct((B * S, K + V), jnp.float32),
    )(enc_bf, p['kv_w'], p['kv_b'])
    kv3 = kv.reshape(B, S, K + V)
    key = kv3[:, :, :K]                                           # (B, S, K)
    value = kv3[:, :, K:]                                         # (B, S, V)

    # Deterministic teacher forcing (ratio == 1.0): step 0 uses token 0,
    # step i>=1 uses text[:, i-1].  Precompute all char embeddings (glue gather).
    tokens = jnp.concatenate(
        [jnp.zeros((1, B), jnp.int32),
         jnp.transpose(text[:, :T_text - 1]).astype(jnp.int32)], axis=0)   # (T, B)
    ce2d = p['emb'][tokens].reshape(T_text * B, E)                 # (T*B, E)

    h1_0, c1_0 = hidden
    kernel = functools.partial(_decoder_kernel, B=B, S=S, K=K, D=D, Voc=Voc,
                               T_text=T_text, scale=1.0 / (K ** 0.5))
    preds_tm, loss = pl.pallas_call(
        kernel,
        out_shape=(jax.ShapeDtypeStruct((T_text, B, Voc), jnp.float32),
                   jax.ShapeDtypeStruct((1, 1), jnp.float32)),
        scratch_shapes=[pltpu.VMEM((T_text, B, K), jnp.float32),
                        pltpu.VMEM((T_text, B, 4 * D), jnp.float32)],
    )(key, value, enc_lens.reshape(B, 1).astype(jnp.int32), ce2d, h1_0, c1_0,
      p['q_w'], p['q_b'], p['wih1_e'], p['wih1_c'], p['whh1'], p['b1'],
      p['wih2'], p['whh2'], p['b2'], p['fc_wh'], p['fc_wc'], p['fc_b'],
      p['emb_t'], p['char_b'],
      jnp.transpose(text, (1, 0)).astype(jnp.int32),
      target_lens.reshape(1, B).astype(jnp.int32))

    predict_labels = jnp.transpose(preds_tm, (1, 0, 2))            # (B, T, vocab)
    return predict_labels, loss[0, 0]


# -------------------------------- model wiring ------------------------------ #

class Args:
    vocab_size = 34
    embedding_size = 16
    encoder_input_size = 8
    encoder_hidden_size = 16
    encoder_num_layers = 3
    encoder_dropout = 0.0          # LockedDropout(0.0) == identity (exact)
    decoder_dropout = 0.0
    key_size = 16
    value_size = 16
    decoder_hidden_size = 32       # must equal 2 * encoder_hidden_size
    teacher_forcing_ratio = 1.0    # deterministic teacher forcing (exact)


def init_params(key, args):
    keys = iter(jax.random.split(key, 64))

    def w(shape, scale=0.1):
        return jax.random.normal(next(keys), shape, dtype=jnp.float32) * scale

    H = args.encoder_hidden_size
    enc = []
    # layer 0: nn.LSTM(encoder_input_size, H, bias=False, bidirectional=True)
    # all weights stored pre-transposed (in, 4H) so kernels never transpose.
    enc.append(dict(
        wih_f=w((args.encoder_input_size, 4 * H)), whh_f=w((H, 4 * H)),
        b_f=jnp.zeros((1, 4 * H), jnp.float32),
        wih_b=w((args.encoder_input_size, 4 * H)), whh_b=w((H, 4 * H)),
        b_b=jnp.zeros((1, 4 * H), jnp.float32)))
    for _ in range(1, args.encoder_num_layers):
        in_dim = 2 * (2 * H)       # pBLSTM: LSTM(input_size*2, H), input = 2H
        enc.append(dict(
            wih_f=w((in_dim, 4 * H)), whh_f=w((H, 4 * H)), b_f=w((1, 4 * H)),
            wih_b=w((in_dim, 4 * H)), whh_b=w((H, 4 * H)), b_b=w((1, 4 * H))))

    E, K, V, D = (args.embedding_size, args.key_size, args.value_size,
                  args.decoder_hidden_size)
    emb = w((args.vocab_size, E), 1.0)
    dec = dict(
        emb=emb,
        emb_t=jnp.transpose(emb),                     # tied character_prob weight
        kv_w=w((2 * H, K + V)), kv_b=w((1, K + V)),   # key & value nets combined
        q_w=w((E, K)), q_b=w((1, K)),
        wih1_e=w((E, 4 * D)), wih1_c=w((V, 4 * D)),   # lstm1 W_ih split (embed|ctx)
        whh1=w((D, 4 * D)), b1=w((1, 4 * D)),
        wih2=w((D, 4 * K)), whh2=w((K, 4 * K)), b2=w((1, 4 * K)),
        fc_wh=w((K, E)), fc_wc=w((V, E)), fc_b=w((1, E)),   # fc W split (h2|ctx)
        char_b=w((1, args.vocab_size)),
    )
    return dict(enc=enc, dec=dec)


def create_model_forward(params, x, x_lens, target, target_lens, args):
    enc_tm, enc_lens, (h_n, c_n) = encoder_forward(params, x, x_lens, args)
    # Matches the PyTorch reference exactly: hidden[k].reshape(hidden[k].shape[1], -1)
    hidden = (h_n.reshape(h_n.shape[1], -1), c_n.reshape(c_n.shape[1], -1))
    predict_labels, loss = decoder_and_loss(params, enc_tm, enc_lens, target,
                                            hidden, target_lens, args)
    perplexity = jnp.exp(loss)
    # TODO(synk): edit-distance metric needs greedy_decode/labels2str/Lev.distance
    # (undefined externals in the reference module); not translatable here.
    edit_distance = 0.0
    return predict_labels, perplexity, edit_distance


# ------------------------------------ main ---------------------------------- #

if __name__ == "__main__":
    args = Args()
    root = jax.random.PRNGKey(0)
    k_param, k_x, k_tgt = jax.random.split(root, 3)
    params = init_params(k_param, args)

    B, T, F = 2, 16, args.encoder_input_size
    x = jax.random.normal(k_x, (B, T, F), jnp.float32)
    x_lens = jnp.array([T, T], jnp.int32)              # full lengths (pack = no-op)
    T_text = 6
    target = jax.random.randint(k_tgt, (B, T_text), 0, args.vocab_size)
    target_lens = jnp.array([6, 4], jnp.int32)

    fwd = jax.jit(lambda p, a, al, t, tl: create_model_forward(p, a, al, t, tl, args))
    predict_labels, perplexity, edit_distance = fwd(params, x, x_lens,
                                                    target, target_lens)
    jax.block_until_ready(predict_labels)
    jax.block_until_ready(perplexity)

    assert predict_labels.shape == (B, T_text, args.vocab_size)
    assert bool(jnp.isfinite(perplexity))
    print("KERNEL_OK")
</pallas_src>

<mosaic_0001>
module attributes {stable_mosaic.version = 11 : i64} {
  func.func @_bilstm_kernel(%arg0: memref<2x16x8xf32, #tpu.memory_space<vmem>>, %arg1: memref<8x64xf32, #tpu.memory_space<vmem>>, %arg2: memref<16x64xf32, #tpu.memory_space<vmem>>, %arg3: memref<1x64xf32, #tpu.memory_space<vmem>>, %arg4: memref<8x64xf32, #tpu.memory_space<vmem>>, %arg5: memref<16x64xf32, #tpu.memory_space<vmem>>, %arg6: memref<1x64xf32, #tpu.memory_space<vmem>>, %arg7: memref<2x16x16xf32, #tpu.memory_space<vmem>>, %arg8: memref<2x16x16xf32, #tpu.memory_space<vmem>>, %arg9: memref<2x16x16xf32, #tpu.memory_space<vmem>>, %arg10: memref<2x16x16xf32, #tpu.memory_space<vmem>>) attributes {dimension_semantics = [], scalar_prefetch = 0 : i64, scratch_operands = 0 : i64, tpu.core_type = #tpu.core_type<tc>} {
    %c0 = arith.constant 0 : index
    %c0_0 = arith.constant 0 : index
    %0 = vector.load %arg2[%c0, %c0_0] : memref<16x64xf32, #tpu.memory_space<vmem>>, vector<16x64xf32>
    %c0_1 = arith.constant 0 : index
    %c0_2 = arith.constant 0 : index
    %1 = vector.load %arg3[%c0_1, %c0_2] : memref<1x64xf32, #tpu.memory_space<vmem>>, vector<1x64xf32>
    %c0_3 = arith.constant 0 : index
    %c0_4 = arith.constant 0 : index
    %2 = vector.load %arg5[%c0_3, %c0_4] : memref<16x64xf32, #tpu.memory_space<vmem>>, vector<16x64xf32>
    %c0_5 = arith.constant 0 : index
    %c0_6 = arith.constant 0 : index
    %3 = vector.load %arg6[%c0_5, %c0_6] : memref<1x64xf32, #tpu.memory_space<vmem>>, vector<1x64xf32>
    %c0_7 = arith.constant 0 : index
    %c0_8 = arith.constant 0 : index
    %4 = vector.load %arg1[%c0_7, %c0_8] : memref<8x64xf32, #tpu.memory_space<vmem>>, vector<8x64xf32>
    %c0_9 = arith.constant 0 : index
    %c0_10 = arith.constant 0 : index
    %5 = vector.load %arg4[%c0_9, %c0_10] : memref<8x64xf32, #tpu.memory_space<vmem>>, vector<8x64xf32>
    %cst = arith.constant 0.000000e+00 : f32
    %6 = vector.broadcast %cst : f32 to vector<16x16xf32>
    %c0_i32 = arith.constant 0 : i32
    %c2_i32 = arith.constant 2 : i32
    %7 = arith.addi %c0_i32, %c2_i32 : i32
    %c1_i32 = arith.constant 1 : i32
    %8:4 = scf.for %arg11 = %c0_i32 to %7 step %c1_i32 iter_args(%arg12 = %6, %arg13 = %6, %arg14 = %6, %arg15 = %6) -> (vector<16x16xf32>, vector<16x16xf32>, vector<16x16xf32>, vector<16x16xf32>)  : i32 {
      %c1_i32_23 = arith.constant 1 : i32
      %21 = arith.subi %c1_i32_23, %arg11 : i32
      %22 = arith.index_cast %arg11 : i32 to index
      %c0_24 = arith.constant 0 : index
      %c0_25 = arith.constant 0 : index
      %23 = vector.load %arg0[%22, %c0_24, %c0_25] : memref<2x16x8xf32, #tpu.memory_space<vmem>>, vector<1x16x8xf32>
      %24 = vector.shape_cast %23 : vector<1x16x8xf32> to vector<16x8xf32>
      %cst_26 = arith.constant dense<0.000000e+00> : vector<16x64xf32>
      %25 = tpu.matmul %24, %4, %cst_26 {dimension_numbers = #tpu.dot_dimension_numbers<[1], [0], [0], [1], [0, 0, 1, 1], [], []>} : vector<16x8xf32>, vector<8x64xf32>, vector<16x64xf32> -> vector<16x64xf32>
      %cst_27 = arith.constant dense<0.000000e+00> : vector<16x64xf32>
      %26 = tpu.matmul %arg12, %0, %cst_27 {dimension_numbers = #tpu.dot_dimension_numbers<[1], [0], [0], [1], [0, 0, 1, 1], [], []>} : vector<16x16xf32>, vector<16x64xf32>, vector<16x64xf32> -> vector<16x64xf32>
      %27 = arith.addf %25, %26 : vector<16x64xf32>
      %28 = vector.broadcast %1 : vector<1x64xf32> to vector<16x64xf32>
      %29 = arith.addf %27, %28 : vector<16x64xf32>
      %30 = vector.extract_strided_slice %29 {offsets = [0, 0], sizes = [16, 16], strides = [1, 1]} : vector<16x64xf32> to vector<16x16xf32>
      %31 = arith.negf %30 : vector<16x16xf32>
      %32 = math.exp %31 : vector<16x16xf32>
      %cst_28 = arith.constant 1.000000e+00 : f32
      %33 = vector.broadcast %cst_28 : f32 to vector<16x16xf32>
      %34 = arith.addf %33, %32 : vector<16x16xf32>
      %35 = arith.divf %33, %34 : vector<16x16xf32>
      %36 = vector.extract_strided_slice %29 {offsets = [0, 16], sizes = [16, 16], strides = [1, 1]} : vector<16x64xf32> to vector<16x16xf32>
      %37 = arith.negf %36 : vector<16x16xf32>
      %38 = math.exp %37 : vector<16x16xf32>
      %cst_29 = arith.constant 1.000000e+00 : f32
      %39 = vector.broadcast %cst_29 : f32 to vector<16x16xf32>
      %40 = arith.addf %39, %38 : vector<16x16xf32>
      %41 = arith.divf %39, %40 : vector<16x16xf32>
      %42 = vector.extract_strided_slice %29 {offsets = [0, 32], sizes = [16, 16], strides = [1, 1]} : vector<16x64xf32> to vector<16x16xf32>
      %43 = math.tanh %42 : vector<16x16xf32>
      %44 = vector.extract_strided_slice %29 {offsets = [0, 48], sizes = [16, 16], strides = [1, 1]} : vector<16x64xf32> to vector<16x16xf32>
      %45 = arith.negf %44 : vector<16x16xf32>
      %46 = math.exp %45 : vector<16x16xf32>
      %cst_30 = arith.constant 1.000000e+00 : f32
      %47 = vector.broadcast %cst_30 : f32 to vector<16x16xf32>
      %48 = arith.addf %47, %46 : vector<16x16xf32>
      %49 = arith.divf %47, %48 : vector<16x16xf32>
      %50 = arith.mulf %41, %arg13 : vector<16x16xf32>
      %51 = arith.mulf %35, %43 : vector<16x16xf32>
      %52 = arith.addf %50, %51 : vector<16x16xf32>
      %53 = math.tanh %52 : vector<16x16xf32>
      %54 = arith.mulf %49, %53 : vector<16x16xf32>
      %55 = arith.index_cast %21 : i32 to index
      %c0_31 = arith.constant 0 : index
      %c0_32 = arith.constant 0 : index
      %56 = vector.load %arg0[%55, %c0_31, %c0_32] : memref<2x16x8xf32, #tpu.memory_space<vmem>>, vector<1x16x8xf32>
      %57 = vector.shape_cast %56 : vector<1x16x8xf32> to vector<16x8xf32>
      %cst_33 = arith.constant dense<0.000000e+00> : vector<16x64xf32>
      %58 = tpu.matmul %57, %5, %cst_33 {dimension_numbers = #tpu.dot_dimension_numbers<[1], [0], [0], [1], [0, 0, 1, 1], [], []>} : vector<16x8xf32>, vector<8x64xf32>, vector<16x64xf32> -> vector<16x64xf32>
      %cst_34 = arith.constant dense<0.000000e+00> : vector<16x64xf32>
      %59 = tpu.matmul %arg14, %2, %cst_34 {dimension_numbers = #tpu.dot_dimension_numbers<[1], [0], [0], [1], [0, 0, 1, 1], [], []>} : vector<16x16xf32>, vector<16x64xf32>, vector<16x64xf32> -> vector<16x64xf32>
      %60 = arith.addf %58, %59 : vector<16x64xf32>
      %61 = vector.broadcast %3 : vector<1x64xf32> to vector<16x64xf32>
      %62 = arith.addf %60, %61 : vector<16x64xf32>
      %63 = vector.extract_strided_slice %62 {offsets = [0, 0], sizes = [16, 16], strides = [1, 1]} : vector<16x64xf32> to vector<16x16xf32>
      %64 = arith.negf %63 : vector<16x16xf32>
      %65 = math.exp %64 : vector<16x16xf32>
      %cst_35 = arith.constant 1.000000e+00 : f32
      %66 = vector.broadcast %cst_35 : f32 to vector<16x16xf32>
      %67 = arith.addf %66, %65 : vector<16x16xf32>
      %68 = arith.divf %66, %67 : vector<16x16xf32>
      %69 = vector.extract_strided_slice %62 {offsets = [0, 16], sizes = [16, 16], strides = [1, 1]} : vector<16x64xf32> to vector<16x16xf32>
      %70 = arith.negf %69 : vector<16x16xf32>
      %71 = math.exp %70 : vector<16x16xf32>
      %cst_36 = arith.constant 1.000000e+00 : f32
      %72 = vector.broadcast %cst_36 : f32 to vector<16x16xf32>
      %73 = arith.addf %72, %71 : vector<16x16xf32>
      %74 = arith.divf %72, %73 : vector<16x16xf32>
      %75 = vector.extract_strided_slice %62 {offsets = [0, 32], sizes = [16, 16], strides = [1, 1]} : vector<16x64xf32> to vector<16x16xf32>
      %76 = math.tanh %75 : vector<16x16xf32>
      %77 = vector.extract_strided_slice %62 {offsets = [0, 48], sizes = [16, 16], strides = [1, 1]} : vector<16x64xf32> to vector<16x16xf32>
      %78 = arith.negf %77 : vector<16x16xf32>
      %79 = math.exp %78 : vector<16x16xf32>
      %cst_37 = arith.constant 1.000000e+00 : f32
      %80 = vector.broadcast %cst_37 : f32 to vector<16x16xf32>
      %81 = arith.addf %80, %79 : vector<16x16xf32>
      %82 = arith.divf %80, %81 : vector<16x16xf32>
      %83 = arith.mulf %74, %arg15 : vector<16x16xf32>
      %84 = arith.mulf %68, %76 : vector<16x16xf32>
      %85 = arith.addf %83, %84 : vector<16x16xf32>
      %86 = math.tanh %85 : vector<16x16xf32>
      %87 = arith.mulf %82, %86 : vector<16x16xf32>
      %88 = arith.index_cast %arg11 : i32 to index
      %c0_38 = arith.constant 0 : index
      %c0_39 = arith.constant 0 : index
      %89 = vector.load %arg7[%88, %c0_38, %c0_39] : memref<2x16x16xf32, #tpu.memory_space<vmem>>, vector<1x16x16xf32>
      %90 = vector.shape_cast %89 : vector<1x16x16xf32> to vector<16x16xf32>
      %91 = vector.shape_cast %54 : vector<16x16xf32> to vector<1x16x16xf32>
      tpu.vector_store %arg7[%88, %c0_38, %c0_39], %91 {strides = array<i32>} : memref<2x16x16xf32, #tpu.memory_space<vmem>>, vector<1x16x16xf32>,
      %92 = arith.index_cast %21 : i32 to index
      %c0_40 = arith.constant 0 : index
      %c0_41 = arith.constant 0 : index
      %93 = vector.load %arg8[%92, %c0_40, %c0_41] : memref<2x16x16xf32, #tpu.memory_space<vmem>>, vector<1x16x16xf32>
      %94 = vector.shape_cast %93 : vector<1x16x16xf32> to vector<16x16xf32>
      %95 = vector.shape_cast %87 : vector<16x16xf32> to vector<1x16x16xf32>
      tpu.vector_store %arg8[%92, %c0_40, %c0_41], %95 {strides = array<i32>} : memref<2x16x16xf32, #tpu.memory_space<vmem>>, vector<1x16x16xf32>,
      scf.yield %54, %52, %87, %85 : vector<16x16xf32>, vector<16x16xf32>, vector<16x16xf32>, vector<16x16xf32>
    }
    %c2_i32_11 = arith.constant 2 : i32
    %c0_12 = arith.constant 0 : index
    %c0_13 = arith.constant 0 : index
    %c0_14 = arith.constant 0 : index
    %9 = vector.load %arg9[%c0_12, %c0_13, %c0_14] : memref<2x16x16xf32, #tpu.memory_space<vmem>>, vector<1x16x16xf32>
    %10 = vector.shape_cast %9 : vector<1x16x16xf32> to vector<16x16xf32>
    %11 = vector.shape_cast %8#0 : vector<16x16xf32> to vector<1x16x16xf32>
    tpu.vector_store %arg9[%c0_12, %c0_13, %c0_14], %11 {strides = array<i32>} : memref<2x16x16xf32, #tpu.memory_space<vmem>>, vector<1x16x16xf32>,
    %c1 = arith.constant 1 : index
    %c0_15 = arith.constant 0 : index
    %c0_16 = arith.constant 0 : index
    %12 = vector.load %arg9[%c1, %c0_15, %c0_16] : memref<2x16x16xf32, #tpu.memory_space<vmem>>, vector<1x16x16xf32>
    %13 = vector.shape_cast %12 : vector<1x16x16xf32> to vector<16x16xf32>
    %14 = vector.shape_cast %8#2 : vector<16x16xf32> to vector<1x16x16xf32>
    tpu.vector_store %arg9[%c1, %c0_15, %c0_16], %14 {strides = array<i32>} : memref<2x16x16xf32, #tpu.memory_space<vmem>>, vector<1x16x16xf32>,
    %c0_17 = arith.constant 0 : index
    %c0_18 = arith.constant 0 : index
    %c0_19 = arith.constant 0 : index
    %15 = vector.load %arg10[%c0_17, %c0_18, %c0_19] : memref<2x16x16xf32, #tpu.memory_space<vmem>>, vector<1x16x16xf32>
    %16 = vector.shape_cast %15 : vector<1x16x16xf32> to vector<16x16xf32>
    %17 = vector.shape_cast %8#1 : vector<16x16xf32> to vector<1x16x16xf32>
    tpu.vector_store %arg10[%c0_17, %c0_18, %c0_19], %17 {strides = array<i32>} : memref<2x16x16xf32, #tpu.memory_space<vmem>>, vector<1x16x16xf32>,
    %c1_20 = arith.constant 1 : index
    %c0_21 = arith.constant 0 : index
    %c0_22 = arith.constant 0 : index
    %18 = vector.load %arg10[%c1_20, %c0_21, %c0_22] : memref<2x16x16xf32, #tpu.memory_space<vmem>>, vector<1x16x16xf32>
    %19 = vector.shape_cast %18 : vector<1x16x16xf32> to vector<16x16xf32>
    %20 = vector.shape_cast %8#3 : vector<16x16xf32> to vector<1x16x16xf32>
    tpu.vector_store %arg10[%c1_20, %c0_21, %c0_22], %20 {strides = array<i32>} : memref<2x16x16xf32, #tpu.memory_space<vmem>>, vector<1x16x16xf32>,
    return
  }
}

module attributes {stable_mosaic.version = 11 : i64} {
  func.func @_bilstm_kernel(%arg0: memref<16x2x32xf32, #tpu.memory_space<vmem>>, %arg1: memref<64x64xf32, #tpu.memory_space<vmem>>, %arg2: memref<16x64xf32, #tpu.memory_space<vmem>>, %arg3: memref<1x64xf32, #tpu.memory_space<vmem>>, %arg4: memref<64x64xf32, #tpu.memory_space<vmem>>, %arg5: memref<16x64xf32, #tpu.memory_space<vmem>>, %arg6: memref<1x64xf32, #tpu.memory_space<vmem>>, %arg7: memref<8x2x16xf32, #tpu.memory_space<vmem>>, %arg8: memref<8x2x16xf32, #tpu.memory_space<vmem>>, %arg9: memref<2x2x16xf32, #tpu.memory_space<vmem>>, %arg10: memref<2x2x16xf32, #tpu.memory_space<vmem>>) attributes {dimension_semantics = [], scalar_prefetch = 0 : i64, scratch_operands = 0 : i64, tpu.core_type = #tpu.core_type<tc>} {
    %c0 = arith.constant 0 : index
    %c0_0 = arith.constant 0 : index
    %0 = vector.load %arg2[%c0, %c0_0] : memref<16x64xf32, #tpu.memory_space<vmem>>, vector<16x64xf32>
    %c0_1 = arith.constant 0 : index
    %c0_2 = arith.constant 0 : index
    %1 = vector.load %arg3[%c0_1, %c0_2] : memref<1x64xf32, #tpu.memory_space<vmem>>, vector<1x64xf32>
    %c0_3 = arith.constant 0 : index
    %c0_4 = arith.constant 0 : index
    %2 = vector.load %arg5[%c0_3, %c0_4] : memref<16x64xf32, #tpu.memory_space<vmem>>, vector<16x64xf32>
    %c0_5 = arith.constant 0 : index
    %c0_6 = arith.constant 0 : index
    %3 = vector.load %arg6[%c0_5, %c0_6] : memref<1x64xf32, #tpu.memory_space<vmem>>, vector<1x64xf32>
    %c0_7 = arith.constant 0 : index
    %c0_8 = arith.constant 0 : index
    %4 = vector.load %arg1[%c0_7, %c0_8] : memref<64x64xf32, #tpu.memory_space<vmem>>, vector<64x64xf32>
    %c0_9 = arith.constant 0 : index
    %c0_10 = arith.constant 0 : index
    %5 = vector.load %arg4[%c0_9, %c0_10] : memref<64x64xf32, #tpu.memory_space<vmem>>, vector<64x64xf32>
    %6 = vector.extract_strided_slice %4 {offsets = [0, 0], sizes = [32, 64], strides = [1, 1]} : vector<64x64xf32> to vector<32x64xf32>
    %7 = vector.extract_strided_slice %4 {offsets = [32, 0], sizes = [32, 64], strides = [1, 1]} : vector<64x64xf32> to vector<32x64xf32>
    %8 = vector.extract_strided_slice %5 {offsets = [0, 0], sizes = [32, 64], strides = [1, 1]} : vector<64x64xf32> to vector<32x64xf32>
    %9 = vector.extract_strided_slice %5 {offsets = [32, 0], sizes = [32, 64], strides = [1, 1]} : vector<64x64xf32> to vector<32x64xf32>
    %cst = arith.constant 0.000000e+00 : f32
    %10 = vector.broadcast %cst : f32 to vector<2x16xf32>
    %c0_i32 = arith.constant 0 : i32
    %c8_i32 = arith.constant 8 : i32
    %11 = arith.addi %c0_i32, %c8_i32 : i32
    %c1_i32 = arith.constant 1 : i32
    %12:4 = scf.for %arg11 = %c0_i32 to %11 step %c1_i32 iter_args(%arg12 = %10, %arg13 = %10, %arg14 = %10, %arg15 = %10) -> (vector<2x16xf32>, vector<2x16xf32>, vector<2x16xf32>, vector<2x16xf32>)  : i32 {
      %c7_i32 = arith.constant 7 : i32
      %25 = arith.subi %c7_i32, %arg11 : i32
      %c2_i32 = arith.constant 2 : i32
      %26 = arith.muli %c2_i32, %arg11 : i32
      %27 = arith.index_cast %26 : i32 to index
      %c0_23 = arith.constant 0 : index
      %c0_24 = arith.constant 0 : index
      %28 = vector.load %arg0[%27, %c0_23, %c0_24] : memref<16x2x32xf32, #tpu.memory_space<vmem>>, vector<1x2x32xf32>
      %29 = vector.shape_cast %28 : vector<1x2x32xf32> to vector<2x32xf32>
      %cst_25 = arith.constant dense<0.000000e+00> : vector<2x64xf32>
      %30 = tpu.matmul %29, %6, %cst_25 {dimension_numbers = #tpu.dot_dimension_numbers<[1], [0], [0], [1], [0, 0, 1, 1], [], []>} : vector<2x32xf32>, vector<32x64xf32>, vector<2x64xf32> -> vector<2x64xf32>
      %c2_i32_26 = arith.constant 2 : i32
      %31 = arith.muli %c2_i32_26, %arg11 : i32
      %c1_i32_27 = arith.constant 1 : i32
      %32 = arith.addi %31, %c1_i32_27 : i32
      %33 = arith.index_cast %32 : i32 to index
      %c0_28 = arith.constant 0 : index
      %c0_29 = arith.constant 0 : index
      %34 = vector.load %arg0[%33, %c0_28, %c0_29] : memref<16x2x32xf32, #tpu.memory_space<vmem>>, vector<1x2x32xf32>
      %35 = vector.shape_cast %34 : vector<1x2x32xf32> to vector<2x32xf32>
      %cst_30 = arith.constant dense<0.000000e+00> : vector<2x64xf32>
      %36 = tpu.matmul %35, %7, %cst_30 {dimension_numbers = #tpu.dot_dimension_numbers<[1], [0], [0], [1], [0, 0, 1, 1], [], []>} : vector<2x32xf32>, vector<32x64xf32>, vector<2x64xf32> -> vector<2x64xf32>
      %37 = arith.addf %30, %36 : vector<2x64xf32>
      %cst_31 = arith.constant dense<0.000000e+00> : vector<2x64xf32>
      %38 = tpu.matmul %arg12, %0, %cst_31 {dimension_numbers = #tpu.dot_dimension_numbers<[1], [0], [0], [1], [0, 0, 1, 1], [], []>} : vector<2x16xf32>, vector<16x64xf32>, vector<2x64xf32> -> vector<2x64xf32>
      %39 = arith.addf %37, %38 : vector<2x64xf32>
      %40 = vector.broadcast %1 : vector<1x64xf32> to vector<2x64xf32>
      %41 = arith.addf %39, %40 : vector<2x64xf32>
      %42 = vector.extract_strided_slice %41 {offsets = [0, 0], sizes = [2, 16], strides = [1, 1]} : vector<2x64xf32> to vector<2x16xf32>
      %43 = arith.negf %42 : vector<2x16xf32>
      %44 = math.exp %43 : vector<2x16xf32>
      %cst_32 = arith.constant 1.000000e+00 : f32
      %45 = vector.broadcast %cst_32 : f32 to vector<2x16xf32>
      %46 = arith.addf %45, %44 : vector<2x16xf32>
      %47 = arith.divf %45, %46 : vector<2x16xf32>
      %48 = vector.extract_strided_slice %41 {offsets = [0, 16], sizes = [2, 16], strides = [1, 1]} : vector<2x64xf32> to vector<2x16xf32>
      %49 = arith.negf %48 : vector<2x16xf32>
      %50 = math.exp %49 : vector<2x16xf32>
      %cst_33 = arith.constant 1.000000e+00 : f32
      %51 = vector.broadcast %cst_33 : f32 to vector<2x16xf32>
      %52 = arith.addf %51, %50 : vector<2x16xf32>
      %53 = arith.divf %51, %52 : vector<2x16xf32>
      %54 = vector.extract_strided_slice %41 {offsets = [0, 32], sizes = [2, 16], strides = [1, 1]} : vector<2x64xf32> to vector<2x16xf32>
      %55 = math.tanh %54 : vector<2x16xf32>
      %56 = vector.extract_strided_slice %41 {offsets = [0, 48], sizes = [2, 16], strides = [1, 1]} : vector<2x64xf32> to vector<2x16xf32>
      %57 = arith.negf %56 : vector<2x16xf32>
      %58 = math.exp %57 : vector<2x16xf32>
      %cst_34 = arith.constant 1.000000e+00 : f32
      %59 = vector.broadcast %cst_34 : f32 to vector<2x16xf32>
      %60 = arith.addf %59, %58 : vector<2x16xf32>
      %61 = arith.divf %59, %60 : vector<2x16xf32>
      %62 = arith.mulf %53, %arg13 : vector<2x16xf32>
      %63 = arith.mulf %47, %55 : vector<2x16xf32>
      %64 = arith.addf %62, %63 : vector<2x16xf32>
      %65 = math.tanh %64 : vector<2x16xf32>
      %66 = arith.mulf %61, %65 : vector<2x16xf32>
      %c2_i32_35 = arith.constant 2 : i32
      %67 = arith.muli %c2_i32_35, %25 : i32
      %68 = arith.index_cast %67 : i32 to index
      %c0_36 = arith.constant 0 : index
      %c0_37 = arith.constant 0 : index
      %69 = vector.load %arg0[%68, %c0_36, %c0_37] : memref<16x2x32xf32, #tpu.memory_space<vmem>>, vector<1x2x32xf32>
      %70 = vector.shape_cast %69 : vector<1x2x32xf32> to vector<2x32xf32>
      %cst_38 = arith.constant dense<0.000000e+00> : vector<2x64xf32>
      %71 = tpu.matmul %70, %8, %cst_38 {dimension_numbers = #tpu.dot_dimension_numbers<[1], [0], [0], [1], [0, 0, 1, 1], [], []>} : vector<2x32xf32>, vector<32x64xf32>, vector<2x64xf32> -> vector<2x64xf32>
      %c2_i32_39 = arith.constant 2 : i32
      %72 = arith.muli %c2_i32_39, %25 : i32
      %c1_i32_40 = arith.constant 1 : i32
      %73 = arith.addi %72, %c1_i32_40 : i32
      %74 = arith.index_cast %73 : i32 to index
      %c0_41 = arith.constant 0 : index
      %c0_42 = arith.constant 0 : index
      %75 = vector.load %arg0[%74, %c0_41, %c0_42] : memref<16x2x32xf32, #tpu.memory_space<vmem>>, vector<1x2x32xf32>
      %76 = vector.shape_cast %75 : vector<1x2x32xf32> to vector<2x32xf32>
      %cst_43 = arith.constant dense<0.000000e+00> : vector<2x64xf32>
      %77 = tpu.matmul %76, %9, %cst_43 {dimension_numbers = #tpu.dot_dimension_numbers<[1], [0], [0], [1], [0, 0, 1, 1], [], []>} : vector<2x32xf32>, vector<32x64xf32>, vector<2x64xf32> -> vector<2x64xf32>
      %78 = arith.addf %71, %77 : vector<2x64xf32>
      %cst_44 = arith.constant dense<0.000000e+00> : vector<2x64xf32>
      %79 = tpu.matmul %arg14, %2, %cst_44 {dimension_numbers = #tpu.dot_dimension_numbers<[1], [0], [0], [1], [0, 0, 1, 1], [], []>} : vector<2x16xf32>, vector<16x64xf32>, vector<2x64xf32> -> vector<2x64xf32>
      %80 = arith.addf %78, %79 : vector<2x64xf32>
      %81 = vector.broadcast %3 : vector<1x64xf32> to vector<2x64xf32>
      %82 = arith.addf %80, %81 : vector<2x64xf32>
      %83 = vector.extract_strided_slice %82 {offsets = [0, 0], sizes = [2, 16], strides = [1, 1]} : vector<2x64xf32> to vector<2x16xf32>
      %84 = arith.negf %83 : vector<2x16xf32>
      %85 = math.exp %84 : vector<2x16xf32>
      %cst_45 = arith.constant 1.000000e+00 : f32
      %86 = vector.broadcast %cst_45 : f32 to vector<2x16xf32>
      %87 = arith.addf %86, %85 : vector<2x16xf32>
      %88 = arith.divf %86, %87 : vector<2x16xf32>
      %89 = vector.extract_strided_slice %82 {offsets = [0, 16], sizes = [2, 16], strides = [1, 1]} : vector<2x64xf32> to vector<2x16xf32>
      %90 = arith.negf %89 : vector<2x16xf32>
      %91 = math.exp %90 : vector<2x16xf32>
      %cst_46 = arith.constant 1.000000e+00 : f32
      %92 = vector.broadcast %cst_46 : f32 to vector<2x16xf32>
      %93 = arith.addf %92, %91 : vector<2x16xf32>
      %94 = arith.divf %92, %93 : vector<2x16xf32>
      %95 = vector.extract_strided_slice %82 {offsets = [0, 32], sizes = [2, 16], strides = [1, 1]} : vector<2x64xf32> to vector<2x16xf32>
      %96 = math.tanh %95 : vector<2x16xf32>
      %97 = vector.extract_strided_slice %82 {offsets = [0, 48], sizes = [2, 16], strides = [1, 1]} : vector<2x64xf32> to vector<2x16xf32>
      %98 = arith.negf %97 : vector<2x16xf32>
      %99 = math.exp %98 : vector<2x16xf32>
      %cst_47 = arith.constant 1.000000e+00 : f32
      %100 = vector.broadcast %cst_47 : f32 to vector<2x16xf32>
      %101 = arith.addf %100, %99 : vector<2x16xf32>
      %102 = arith.divf %100, %101 : vector<2x16xf32>
      %103 = arith.mulf %94, %arg15 : vector<2x16xf32>
      %104 = arith.mulf %88, %96 : vector<2x16xf32>
      %105 = arith.addf %103, %104 : vector<2x16xf32>
      %106 = math.tanh %105 : vector<2x16xf32>
      %107 = arith.mulf %102, %106 : vector<2x16xf32>
      %108 = arith.index_cast %arg11 : i32 to index
      %c0_48 = arith.constant 0 : index
      %c0_49 = arith.constant 0 : index
      %109 = vector.load %arg7[%108, %c0_48, %c0_49] : memref<8x2x16xf32, #tpu.memory_space<vmem>>, vector<1x2x16xf32>
      %110 = vector.shape_cast %109 : vector<1x2x16xf32> to vector<2x16xf32>
      %111 = vector.shape_cast %66 : vector<2x16xf32> to vector<1x2x16xf32>
      tpu.vector_store %arg7[%108, %c0_48, %c0_49], %111 {strides = array<i32>} : memref<8x2x16xf32, #tpu.memory_space<vmem>>, vector<1x2x16xf32>,
      %112 = arith.index_cast %25 : i32 to index
      %c0_50 = arith.constant 0 : index
      %c0_51 = arith.constant 0 : index
      %113 = vector.load %arg8[%112, %c0_50, %c0_51] : memref<8x2x16xf32, #tpu.memory_space<vmem>>, vector<1x2x16xf32>
      %114 = vector.shape_cast %113 : vector<1x2x16xf32> to vector<2x16xf32>
      %115 = vector.shape_cast %107 : vector<2x16xf32> to vector<1x2x16xf32>
      tpu.vector_store %arg8[%112, %c0_50, %c0_51], %115 {strides = array<i32>} : memref<8x2x16xf32, #tpu.memory_space<vmem>>, vector<1x2x16xf32>,
      scf.yield %66, %64, %107, %105 : vector<2x16xf32>, vector<2x16xf32>, vector<2x16xf32>, vector<2x16xf32>
    }
    %c8_i32_11 = arith.constant 8 : i32
    %c0_12 = arith.constant 0 : index
    %c0_13 = arith.constant 0 : index
    %c0_14 = arith.constant 0 : index
    %13 = vector.load %arg9[%c0_12, %c0_13, %c0_14] : memref<2x2x16xf32, #tpu.memory_space<vmem>>, vector<1x2x16xf32>
    %14 = vector.shape_cast %13 : vector<1x2x16xf32> to vector<2x16xf32>
    %15 = vector.shape_cast %12#0 : vector<2x16xf32> to vector<1x2x16xf32>
    tpu.vector_store %arg9[%c0_12, %c0_13, %c0_14], %15 {strides = array<i32>} : memref<2x2x16xf32, #tpu.memory_space<vmem>>, vector<1x2x16xf32>,
    %c1 = arith.constant 1 : index
    %c0_15 = arith.constant 0 : index
    %c0_16 = arith.constant 0 : index
    %16 = vector.load %arg9[%c1, %c0_15, %c0_16] : memref<2x2x16xf32, #tpu.memory_space<vmem>>, vector<1x2x16xf32>
    %17 = vector.shape_cast %16 : vector<1x2x16xf32> to vector<2x16xf32>
    %18 = vector.shape_cast %12#2 : vector<2x16xf32> to vector<1x2x16xf32>
    tpu.vector_store %arg9[%c1, %c0_15, %c0_16], %18 {strides = array<i32>} : memref<2x2x16xf32, #tpu.memory_space<vmem>>, vector<1x2x16xf32>,
    %c0_17 = arith.constant 0 : index
    %c0_18 = arith.constant 0 : index
    %c0_19 = arith.constant 0 : index
    %19 = vector.load %arg10[%c0_17, %c0_18, %c0_19] : memref<2x2x16xf32, #tpu.memory_space<vmem>>, vector<1x2x16xf32>
    %20 = vector.shape_cast %19 : vector<1x2x16xf32> to vector<2x16xf32>
    %21 = vector.shape_cast %12#1 : vector<2x16xf32> to vector<1x2x16xf32>
    tpu.vector_store %arg10[%c0_17, %c0_18, %c0_19], %21 {strides = array<i32>} : memref<2x2x16xf32, #tpu.memory_space<vmem>>, vector<1x2x16xf32>,
    %c1_20 = arith.constant 1 : index
    %c0_21 = arith.constant 0 : index
    %c0_22 = arith.constant 0 : index
    %22 = vector.load %arg10[%c1_20, %c0_21, %c0_22] : memref<2x2x16xf32, #tpu.memory_space<vmem>>, vector<1x2x16xf32>
    %23 = vector.shape_cast %22 : vector<1x2x16xf32> to vector<2x16xf32>
    %24 = vector.shape_cast %12#3 : vector<2x16xf32> to vector<1x2x16xf32>
    tpu.vector_store %arg10[%c1_20, %c0_21, %c0_22], %24 {strides = array<i32>} : memref<2x2x16xf32, #tpu.memory_space<vmem>>, vector<1x2x16xf32>,
    return
  }
}

module attributes {stable_mosaic.version = 11 : i64} {
  func.func @_bilstm_kernel(%arg0: memref<8x2x32xf32, #tpu.memory_space<vmem>>, %arg1: memref<64x64xf32, #tpu.memory_space<vmem>>, %arg2: memref<16x64xf32, #tpu.memory_space<vmem>>, %arg3: memref<1x64xf32, #tpu.memory_space<vmem>>, %arg4: memref<64x64xf32, #tpu.memory_space<vmem>>, %arg5: memref<16x64xf32, #tpu.memory_space<vmem>>, %arg6: memref<1x64xf32, #tpu.memory_space<vmem>>, %arg7: memref<4x2x16xf32, #tpu.memory_space<vmem>>, %arg8: memref<4x2x16xf32, #tpu.memory_space<vmem>>, %arg9: memref<2x2x16xf32, #tpu.memory_space<vmem>>, %arg10: memref<2x2x16xf32, #tpu.memory_space<vmem>>) attributes {dimension_semantics = [], scalar_prefetch = 0 : i64, scratch_operands = 0 : i64, tpu.core_type = #tpu.core_type<tc>} {
    %c0 = arith.constant 0 : index
    %c0_0 = arith.constant 0 : index
    %0 = vector.load %arg2[%c0, %c0_0] : memref<16x64xf32, #tpu.memory_space<vmem>>, vector<16x64xf32>
    %c0_1 = arith.constant 0 : index
    %c0_2 = arith.constant 0 : index
    %1 = vector.load %arg3[%c0_1, %c0_2] : memref<1x64xf32, #tpu.memory_space<vmem>>, vector<1x64xf32>
    %c0_3 = arith.constant 0 : index
    %c0_4 = arith.constant 0 : index
    %2 = vector.load %arg5[%c0_3, %c0_4] : memref<16x64xf32, #tpu.memory_space<vmem>>, vector<16x64xf32>
    %c0_5 = arith.constant 0 : index
    %c0_6 = arith.constant 0 : index
    %3 = vector.load %arg6[%c0_5, %c0_6] : memref<1x64xf32, #tpu.memory_space<vmem>>, vector<1x64xf32>
    %c0_7 = arith.constant 0 : index
    %c0_8 = arith.constant 0 : index
    %4 = vector.load %arg1[%c0_7, %c0_8] : memref<64x64xf32, #tpu.memory_space<vmem>>, vector<64x64xf32>
    %c0_9 = arith.constant 0 : index
    %c0_10 = arith.constant 0 : index
    %5 = vector.load %arg4[%c0_9, %c0_10] : memref<64x64xf32, #tpu.memory_space<vmem>>, vector<64x64xf32>
    %6 = vector.extract_strided_slice %4 {offsets = [0, 0], sizes = [32, 64], strides = [1, 1]} : vector<64x64xf32> to vector<32x64xf32>
    %7 = vector.extract_strided_slice %4 {offsets = [32, 0], sizes = [32, 64], strides = [1, 1]} : vector<64x64xf32> to vector<32x64xf32>
    %8 = vector.extract_strided_slice %5 {offsets = [0, 0], sizes = [32, 64], strides = [1, 1]} : vector<64x64xf32> to vector<32x64xf32>
    %9 = vector.extract_strided_slice %5 {offsets = [32, 0], sizes = [32, 64], strides = [1, 1]} : vector<64x64xf32> to vector<32x64xf32>
    %cst = arith.constant 0.000000e+00 : f32
    %10 = vector.broadcast %cst : f32 to vector<2x16xf32>
    %c0_i32 = arith.constant 0 : i32
    %c4_i32 = arith.constant 4 : i32
    %11 = arith.addi %c0_i32, %c4_i32 : i32
    %c1_i32 = arith.constant 1 : i32
    %12:4 = scf.for %arg11 = %c0_i32 to %11 step %c1_i32 iter_args(%arg12 = %10, %arg13 = %10, %arg14 = %10, %arg15 = %10) -> (vector<2x16xf32>, vector<2x16xf32>, vector<2x16xf32>, vector<2x16xf32>)  : i32 {
      %c3_i32 = arith.constant 3 : i32
      %25 = arith.subi %c3_i32, %arg11 : i32
      %c2_i32 = arith.constant 2 : i32
      %26 = arith.muli %c2_i32, %arg11 : i32
      %27 = arith.index_cast %26 : i32 to index
      %c0_23 = arith.constant 0 : index
      %c0_24 = arith.constant 0 : index
      %28 = vector.load %arg0[%27, %c0_23, %c0_24] : memref<8x2x32xf32, #tpu.memory_space<vmem>>, vector<1x2x32xf32>
      %29 = vector.shape_cast %28 : vector<1x2x32xf32> to vector<2x32xf32>
      %cst_25 = arith.constant dense<0.000000e+00> : vector<2x64xf32>
      %30 = tpu.matmul %29, %6, %cst_25 {dimension_numbers = #tpu.dot_dimension_numbers<[1], [0], [0], [1], [0, 0, 1, 1], [], []>} : vector<2x32xf32>, vector<32x64xf32>, vector<2x64xf32> -> vector<2x64xf32>
      %c2_i32_26 = arith.constant 2 : i32
      %31 = arith.muli %c2_i32_26, %arg11 : i32
      %c1_i32_27 = arith.constant 1 : i32
      %32 = arith.addi %31, %c1_i32_27 : i32
      %33 = arith.index_cast %32 : i32 to index
      %c0_28 = arith.constant 0 : index
      %c0_29 = arith.constant 0 : index
      %34 = vector.load %arg0[%33, %c0_28, %c0_29] : memref<8x2x32xf32, #tpu.memory_space<vmem>>, vector<1x2x32xf32>
      %35 = vector.shape_cast %34 : vector<1x2x32xf32> to vector<2x32xf32>
      %cst_30 = arith.constant dense<0.000000e+00> : vector<2x64xf32>
      %36 = tpu.matmul %35, %7, %cst_30 {dimension_numbers = #tpu.dot_dimension_numbers<[1], [0], [0], [1], [0, 0, 1, 1], [], []>} : vector<2x32xf32>, vector<32x64xf32>, vector<2x64xf32> -> vector<2x64xf32>
      %37 = arith.addf %30, %36 : vector<2x64xf32>
      %cst_31 = arith.constant dense<0.000000e+00> : vector<2x64xf32>
      %38 = tpu.matmul %arg12, %0, %cst_31 {dimension_numbers = #tpu.dot_dimension_numbers<[1], [0], [0], [1], [0, 0, 1, 1], [], []>} : vector<2x16xf32>, vector<16x64xf32>, vector<2x64xf32> -> vector<2x64xf32>
      %39 = arith.addf %37, %38 : vector<2x64xf32>
      %40 = vector.broadcast %1 : vector<1x64xf32> to vector<2x64xf32>
      %41 = arith.addf %39, %40 : vector<2x64xf32>
      %42 = vector.extract_strided_slice %41 {offsets = [0, 0], sizes = [2, 16], strides = [1, 1]} : vector<2x64xf32> to vector<2x16xf32>
      %43 = arith.negf %42 : vector<2x16xf32>
      %44 = math.exp %43 : vector<2x16xf32>
      %cst_32 = arith.constant 1.000000e+00 : f32
      %45 = vector.broadcast %cst_32 : f32 to vector<2x16xf32>
      %46 = arith.addf %45, %44 : vector<2x16xf32>
      %47 = arith.divf %45, %46 : vector<2x16xf32>
      %48 = vector.extract_strided_slice %41 {offsets = [0, 16], sizes = [2, 16], strides = [1, 1]} : vector<2x64xf32> to vector<2x16xf32>
      %49 = arith.negf %48 : vector<2x16xf32>
      %50 = math.exp %49 : vector<2x16xf32>
      %cst_33 = arith.constant 1.000000e+00 : f32
      %51 = vector.broadcast %cst_33 : f32 to vector<2x16xf32>
      %52 = arith.addf %51, %50 : vector<2x16xf32>
      %53 = arith.divf %51, %52 : vector<2x16xf32>
      %54 = vector.extract_strided_slice %41 {offsets = [0, 32], sizes = [2, 16], strides = [1, 1]} : vector<2x64xf32> to vector<2x16xf32>
      %55 = math.tanh %54 : vector<2x16xf32>
      %56 = vector.extract_strided_slice %41 {offsets = [0, 48], sizes = [2, 16], strides = [1, 1]} : vector<2x64xf32> to vector<2x16xf32>
      %57 = arith.negf %56 : vector<2x16xf32>
      %58 = math.exp %57 : vector<2x16xf32>
      %cst_34 = arith.constant 1.000000e+00 : f32
      %59 = vector.broadcast %cst_34 : f32 to vector<2x16xf32>
      %60 = arith.addf %59, %58 : vector<2x16xf32>
      %61 = arith.divf %59, %60 : vector<2x16xf32>
      %62 = arith.mulf %53, %arg13 : vector<2x16xf32>
      %63 = arith.mulf %47, %55 : vector<2x16xf32>
      %64 = arith.addf %62, %63 : vector<2x16xf32>
      %65 = math.tanh %64 : vector<2x16xf32>
      %66 = arith.mulf %61, %65 : vector<2x16xf32>
      %c2_i32_35 = arith.constant 2 : i32
      %67 = arith.muli %c2_i32_35, %25 : i32
      %68 = arith.index_cast %67 : i32 to index
      %c0_36 = arith.constant 0 : index
      %c0_37 = arith.constant 0 : index
      %69 = vector.load %arg0[%68, %c0_36, %c0_37] : memref<8x2x32xf32, #tpu.memory_space<vmem>>, vector<1x2x32xf32>
      %70 = vector.shape_cast %69 : vector<1x2x32xf32> to vector<2x32xf32>
      %cst_38 = arith.constant dense<0.000000e+00> : vector<2x64xf32>
      %71 = tpu.matmul %70, %8, %cst_38 {dimension_numbers = #tpu.dot_dimension_numbers<[1], [0], [0], [1], [0, 0, 1, 1], [], []>} : vector<2x32xf32>, vector<32x64xf32>, vector<2x64xf32> -> vector<2x64xf32>
      %c2_i32_39 = arith.constant 2 : i32
      %72 = arith.muli %c2_i32_39, %25 : i32
      %c1_i32_40 = arith.constant 1 : i32
      %73 = arith.addi %72, %c1_i32_40 : i32
      %74 = arith.index_cast %73 : i32 to index
      %c0_41 = arith.constant 0 : index
      %c0_42 = arith.constant 0 : index
      %75 = vector.load %arg0[%74, %c0_41, %c0_42] : memref<8x2x32xf32, #tpu.memory_space<vmem>>, vector<1x2x32xf32>
      %76 = vector.shape_cast %75 : vector<1x2x32xf32> to vector<2x32xf32>
      %cst_43 = arith.constant dense<0.000000e+00> : vector<2x64xf32>
      %77 = tpu.matmul %76, %9, %cst_43 {dimension_numbers = #tpu.dot_dimension_numbers<[1], [0], [0], [1], [0, 0, 1, 1], [], []>} : vector<2x32xf32>, vector<32x64xf32>, vector<2x64xf32> -> vector<2x64xf32>
      %78 = arith.addf %71, %77 : vector<2x64xf32>
      %cst_44 = arith.constant dense<0.000000e+00> : vector<2x64xf32>
      %79 = tpu.matmul %arg14, %2, %cst_44 {dimension_numbers = #tpu.dot_dimension_numbers<[1], [0], [0], [1], [0, 0, 1, 1], [], []>} : vector<2x16xf32>, vector<16x64xf32>, vector<2x64xf32> -> vector<2x64xf32>
      %80 = arith.addf %78, %79 : vector<2x64xf32>
      %81 = vector.broadcast %3 : vector<1x64xf32> to vector<2x64xf32>
      %82 = arith.addf %80, %81 : vector<2x64xf32>
      %83 = vector.extract_strided_slice %82 {offsets = [0, 0], sizes = [2, 16], strides = [1, 1]} : vector<2x64xf32> to vector<2x16xf32>
      %84 = arith.negf %83 : vector<2x16xf32>
      %85 = math.exp %84 : vector<2x16xf32>
      %cst_45 = arith.constant 1.000000e+00 : f32
      %86 = vector.broadcast %cst_45 : f32 to vector<2x16xf32>
      %87 = arith.addf %86, %85 : vector<2x16xf32>
      %88 = arith.divf %86, %87 : vector<2x16xf32>
      %89 = vector.extract_strided_slice %82 {offsets = [0, 16], sizes = [2, 16], strides = [1, 1]} : vector<2x64xf32> to vector<2x16xf32>
      %90 = arith.negf %89 : vector<2x16xf32>
      %91 = math.exp %90 : vector<2x16xf32>
      %cst_46 = arith.constant 1.000000e+00 : f32
      %92 = vector.broadcast %cst_46 : f32 to vector<2x16xf32>
      %93 = arith.addf %92, %91 : vector<2x16xf32>
      %94 = arith.divf %92, %93 : vector<2x16xf32>
      %95 = vector.extract_strided_slice %82 {offsets = [0, 32], sizes = [2, 16], strides = [1, 1]} : vector<2x64xf32> to vector<2x16xf32>
      %96 = math.tanh %95 : vector<2x16xf32>
      %97 = vector.extract_strided_slice %82 {offsets = [0, 48], sizes = [2, 16], strides = [1, 1]} : vector<2x64xf32> to vector<2x16xf32>
      %98 = arith.negf %97 : vector<2x16xf32>
      %99 = math.exp %98 : vector<2x16xf32>
      %cst_47 = arith.constant 1.000000e+00 : f32
      %100 = vector.broadcast %cst_47 : f32 to vector<2x16xf32>
      %101 = arith.addf %100, %99 : vector<2x16xf32>
      %102 = arith.divf %100, %101 : vector<2x16xf32>
      %103 = arith.mulf %94, %arg15 : vector<2x16xf32>
      %104 = arith.mulf %88, %96 : vector<2x16xf32>
      %105 = arith.addf %103, %104 : vector<2x16xf32>
      %106 = math.tanh %105 : vector<2x16xf32>
      %107 = arith.mulf %102, %106 : vector<2x16xf32>
      %108 = arith.index_cast %arg11 : i32 to index
      %c0_48 = arith.constant 0 : index
      %c0_49 = arith.constant 0 : index
      %109 = vector.load %arg7[%108, %c0_48, %c0_49] : memref<4x2x16xf32, #tpu.memory_space<vmem>>, vector<1x2x16xf32>
      %110 = vector.shape_cast %109 : vector<1x2x16xf32> to vector<2x16xf32>
      %111 = vector.shape_cast %66 : vector<2x16xf32> to vector<1x2x16xf32>
      tpu.vector_store %arg7[%108, %c0_48, %c0_49], %111 {strides = array<i32>} : memref<4x2x16xf32, #tpu.memory_space<vmem>>, vector<1x2x16xf32>,
      %112 = arith.index_cast %25 : i32 to index
      %c0_50 = arith.constant 0 : index
      %c0_51 = arith.constant 0 : index
      %113 = vector.load %arg8[%112, %c0_50, %c0_51] : memref<4x2x16xf32, #tpu.memory_space<vmem>>, vector<1x2x16xf32>
      %114 = vector.shape_cast %113 : vector<1x2x16xf32> to vector<2x16xf32>
      %115 = vector.shape_cast %107 : vector<2x16xf32> to vector<1x2x16xf32>
      tpu.vector_store %arg8[%112, %c0_50, %c0_51], %115 {strides = array<i32>} : memref<4x2x16xf32, #tpu.memory_space<vmem>>, vector<1x2x16xf32>,
      scf.yield %66, %64, %107, %105 : vector<2x16xf32>, vector<2x16xf32>, vector<2x16xf32>, vector<2x16xf32>
    }
    %c4_i32_11 = arith.constant 4 : i32
    %c0_12 = arith.constant 0 : index
    %c0_13 = arith.constant 0 : index
    %c0_14 = arith.constant 0 : index
    %13 = vector.load %arg9[%c0_12, %c0_13, %c0_14] : memref<2x2x16xf32, #tpu.memory_space<vmem>>, vector<1x2x16xf32>
    %14 = vector.shape_cast %13 : vector<1x2x16xf32> to vector<2x16xf32>
    %15 = vector.shape_cast %12#0 : vector<2x16xf32> to vector<1x2x16xf32>
    tpu.vector_store %arg9[%c0_12, %c0_13, %c0_14], %15 {strides = array<i32>} : memref<2x2x16xf32, #tpu.memory_space<vmem>>, vector<1x2x16xf32>,
    %c1 = arith.constant 1 : index
    %c0_15 = arith.constant 0 : index
    %c0_16 = arith.constant 0 : index
    %16 = vector.load %arg9[%c1, %c0_15, %c0_16] : memref<2x2x16xf32, #tpu.memory_space<vmem>>, vector<1x2x16xf32>
    %17 = vector.shape_cast %16 : vector<1x2x16xf32> to vector<2x16xf32>
    %18 = vector.shape_cast %12#2 : vector<2x16xf32> to vector<1x2x16xf32>
    tpu.vector_store %arg9[%c1, %c0_15, %c0_16], %18 {strides = array<i32>} : memref<2x2x16xf32, #tpu.memory_space<vmem>>, vector<1x2x16xf32>,
    %c0_17 = arith.constant 0 : index
    %c0_18 = arith.constant 0 : index
    %c0_19 = arith.constant 0 : index
    %19 = vector.load %arg10[%c0_17, %c0_18, %c0_19] : memref<2x2x16xf32, #tpu.memory_space<vmem>>, vector<1x2x16xf32>
    %20 = vector.shape_cast %19 : vector<1x2x16xf32> to vector<2x16xf32>
    %21 = vector.shape_cast %12#1 : vector<2x16xf32> to vector<1x2x16xf32>
    tpu.vector_store %arg10[%c0_17, %c0_18, %c0_19], %21 {strides = array<i32>} : memref<2x2x16xf32, #tpu.memory_space<vmem>>, vector<1x2x16xf32>,
    %c1_20 = arith.constant 1 : index
    %c0_21 = arith.constant 0 : index
    %c0_22 = arith.constant 0 : index
    %22 = vector.load %arg10[%c1_20, %c0_21, %c0_22] : memref<2x2x16xf32, #tpu.memory_space<vmem>>, vector<1x2x16xf32>
    %23 = vector.shape_cast %22 : vector<1x2x16xf32> to vector<2x16xf32>
    %24 = vector.shape_cast %12#3 : vector<2x16xf32> to vector<1x2x16xf32>
    tpu.vector_store %arg10[%c1_20, %c0_21, %c0_22], %24 {strides = array<i32>} : memref<2x2x16xf32, #tpu.memory_space<vmem>>, vector<1x2x16xf32>,
    return
  }
}

module attributes {stable_mosaic.version = 11 : i64} {
  func.func @_linear_kernel(%arg0: memref<8x32xf32, #tpu.memory_space<vmem>>, %arg1: memref<32x32xf32, #tpu.memory_space<vmem>>, %arg2: memref<1x32xf32, #tpu.memory_space<vmem>>, %arg3: memref<8x32xf32, #tpu.memory_space<vmem>>) attributes {dimension_semantics = [], scalar_prefetch = 0 : i64, scratch_operands = 0 : i64, tpu.core_type = #tpu.core_type<tc>} {
    %c0 = arith.constant 0 : index
    %c0_0 = arith.constant 0 : index
    %0 = vector.load %arg0[%c0, %c0_0] : memref<8x32xf32, #tpu.memory_space<vmem>>, vector<8x32xf32>
    %c0_1 = arith.constant 0 : index
    %c0_2 = arith.constant 0 : index
    %1 = vector.load %arg1[%c0_1, %c0_2] : memref<32x32xf32, #tpu.memory_space<vmem>>, vector<32x32xf32>
    %cst = arith.constant dense<0.000000e+00> : vector<8x32xf32>
    %2 = tpu.matmul %0, %1, %cst {dimension_numbers = #tpu.dot_dimension_numbers<[1], [0], [0], [1], [0, 0, 1, 1], [], []>} : vector<8x32xf32>, vector<32x32xf32>, vector<8x32xf32> -> vector<8x32xf32>
    %c0_3 = arith.constant 0 : index
    %c0_4 = arith.constant 0 : index
    %3 = vector.load %arg2[%c0_3, %c0_4] : memref<1x32xf32, #tpu.memory_space<vmem>>, vector<1x32xf32>
    %4 = vector.broadcast %3 : vector<1x32xf32> to vector<8x32xf32>
    %5 = arith.addf %2, %4 : vector<8x32xf32>
    %c0_5 = arith.constant 0 : index
    %c0_6 = arith.constant 0 : index
    %6 = vector.load %arg3[%c0_5, %c0_6] : memref<8x32xf32, #tpu.memory_space<vmem>>, vector<8x32xf32>
    tpu.vector_store %arg3[%c0_5, %c0_6], %5 {strides = array<i32>} : memref<8x32xf32, #tpu.memory_space<vmem>>, vector<8x32xf32>,
    return
  }
}

module attributes {stable_mosaic.version = 11 : i64} {
  func.func @_decoder_kernel(%arg0: memref<2x4x16xf32, #tpu.memory_space<vmem>>, %arg1: memref<2x4x16xf32, #tpu.memory_space<vmem>>, %arg2: memref<2x1xi32, #tpu.memory_space<vmem>>, %arg3: memref<12x16xf32, #tpu.memory_space<vmem>>, %arg4: memref<2x32xf32, #tpu.memory_space<vmem>>, %arg5: memref<2x32xf32, #tpu.memory_space<vmem>>, %arg6: memref<16x16xf32, #tpu.memory_space<vmem>>, %arg7: memref<1x16xf32, #tpu.memory_space<vmem>>, %arg8: memref<16x128xf32, #tpu.memory_space<vmem>>, %arg9: memref<16x128xf32, #tpu.memory_space<vmem>>, %arg10: memref<32x128xf32, #tpu.memory_space<vmem>>, %arg11: memref<1x128xf32, #tpu.memory_space<vmem>>, %arg12: memref<32x64xf32, #tpu.memory_space<vmem>>, %arg13: memref<16x64xf32, #tpu.memory_space<vmem>>, %arg14: memref<1x64xf32, #tpu.memory_space<vmem>>, %arg15: memref<16x16xf32, #tpu.memory_space<vmem>>, %arg16: memref<16x16xf32, #tpu.memory_space<vmem>>, %arg17: memref<1x16xf32, #tpu.memory_space<vmem>>, %arg18: memref<16x34xf32, #tpu.memory_space<vmem>>, %arg19: memref<1x34xf32, #tpu.memory_space<vmem>>, %arg20: memref<6x2xi32, #tpu.memory_space<vmem>>, %arg21: memref<1x2xi32, #tpu.memory_space<vmem>>, %arg22: memref<6x2x34xf32, #tpu.memory_space<vmem>>, %arg23: memref<1x1xf32, #tpu.memory_space<vmem>>, %arg24: memref<6x2x16xf32, #tpu.memory_space<vmem>>, %arg25: memref<6x2x128xf32, #tpu.memory_space<vmem>>) attributes {dimension_semantics = [], scalar_prefetch = 0 : i64, scratch_operands = 2 : i64, tpu.core_type = #tpu.core_type<tc>} {
    %c0 = arith.constant 0 : index
    %c0_0 = arith.constant 0 : index
    %c0_1 = arith.constant 0 : index
    %0 = vector.load %arg0[%c0, %c0_0, %c0_1] : memref<2x4x16xf32, #tpu.memory_space<vmem>>, vector<2x4x16xf32>
    %c0_2 = arith.constant 0 : index
    %c0_3 = arith.constant 0 : index
    %c0_4 = arith.constant 0 : index
    %1 = vector.load %arg1[%c0_2, %c0_3, %c0_4] : memref<2x4x16xf32, #tpu.memory_space<vmem>>, vector<2x4x16xf32>
    %c0_5 = arith.constant 0 : index
    %c0_6 = arith.constant 0 : index
    %2 = vector.load %arg2[%c0_5, %c0_6] : memref<2x1xi32, #tpu.memory_space<vmem>>, vector<2x1xi32>
    %3 = tpu.iota {dimensions = array<i32: 1>} : vector<2x4xi32>
    %4 = vector.broadcast %2 : vector<2x1xi32> to vector<2x4xi32>
    %5 = arith.cmpi sge, %3, %4 : vector<2x4xi32>
    %c0_7 = arith.constant 0 : index
    %c0_8 = arith.constant 0 : index
    %6 = vector.load %arg3[%c0_7, %c0_8] : memref<12x16xf32, #tpu.memory_space<vmem>>, vector<12x16xf32>
    %c0_9 = arith.constant 0 : index
    %c0_10 = arith.constant 0 : index
    %7 = vector.load %arg6[%c0_9, %c0_10] : memref<16x16xf32, #tpu.memory_space<vmem>>, vector<16x16xf32>
    %cst = arith.constant dense<0.000000e+00> : vector<12x16xf32>
    %8 = tpu.matmul %6, %7, %cst {dimension_numbers = #tpu.dot_dimension_numbers<[1], [0], [0], [1], [0, 0, 1, 1], [], []>} : vector<12x16xf32>, vector<16x16xf32>, vector<12x16xf32> -> vector<12x16xf32>
    %c0_11 = arith.constant 0 : index
    %c0_12 = arith.constant 0 : index
    %9 = vector.load %arg7[%c0_11, %c0_12] : memref<1x16xf32, #tpu.memory_space<vmem>>, vector<1x16xf32>
    %10 = vector.broadcast %9 : vector<1x16xf32> to vector<12x16xf32>
    %11 = arith.addf %8, %10 : vector<12x16xf32>
    %c0_13 = arith.constant 0 : index
    %c0_14 = arith.constant 0 : index
    %12 = vector.load %arg8[%c0_13, %c0_14] : memref<16x128xf32, #tpu.memory_space<vmem>>, vector<16x128xf32>
    %cst_15 = arith.constant dense<0.000000e+00> : vector<12x128xf32>
    %13 = tpu.matmul %6, %12, %cst_15 {dimension_numbers = #tpu.dot_dimension_numbers<[1], [0], [0], [1], [0, 0, 1, 1], [], []>} : vector<12x16xf32>, vector<16x128xf32>, vector<12x128xf32> -> vector<12x128xf32>
    %c0_16 = arith.constant 0 : index
    %c0_17 = arith.constant 0 : index
    %14 = vector.load %arg11[%c0_16, %c0_17] : memref<1x128xf32, #tpu.memory_space<vmem>>, vector<1x128xf32>
    %15 = vector.broadcast %14 : vector<1x128xf32> to vector<12x128xf32>
    %16 = arith.addf %13, %15 : vector<12x128xf32>
    %17 = vector.extract_strided_slice %11 {offsets = [0, 0], sizes = [2, 16], strides = [1, 1]} : vector<12x16xf32> to vector<2x16xf32>
    %c0_18 = arith.constant 0 : index
    %c0_19 = arith.constant 0 : index
    %c0_20 = arith.constant 0 : index
    %18 = vector.load %arg24[%c0_18, %c0_19, %c0_20] : memref<6x2x16xf32, #tpu.memory_space<vmem>>, vector<1x2x16xf32>
    %19 = vector.shape_cast %18 : vector<1x2x16xf32> to vector<2x16xf32>
    %20 = vector.shape_cast %17 : vector<2x16xf32> to vector<1x2x16xf32>
    tpu.vector_store %arg24[%c0_18, %c0_19, %c0_20], %20 {strides = array<i32>} : memref<6x2x16xf32, #tpu.memory_space<vmem>>, vector<1x2x16xf32>,
    %21 = vector.extract_strided_slice %16 {offsets = [0, 0], sizes = [2, 128], strides = [1, 1]} : vector<12x128xf32> to vector<2x128xf32>
    %c0_21 = arith.constant 0 : index
    %c0_22 = arith.constant 0 : index
    %c0_23 = arith.constant 0 : index
    %22 = vector.load %arg25[%c0_21, %c0_22, %c0_23] : memref<6x2x128xf32, #tpu.memory_space<vmem>>, vector<1x2x128xf32>
    %23 = vector.shape_cast %22 : vector<1x2x128xf32> to vector<2x128xf32>
    %24 = vector.shape_cast %21 : vector<2x128xf32> to vector<1x2x128xf32>
    tpu.vector_store %arg25[%c0_21, %c0_22, %c0_23], %24 {strides = array<i32>} : memref<6x2x128xf32, #tpu.memory_space<vmem>>, vector<1x2x128xf32>,
    %25 = vector.extract_strided_slice %11 {offsets = [2, 0], sizes = [2, 16], strides = [1, 1]} : vector<12x16xf32> to vector<2x16xf32>
    %c1 = arith.constant 1 : index
    %c0_24 = arith.constant 0 : index
    %c0_25 = arith.constant 0 : index
    %26 = vector.load %arg24[%c1, %c0_24, %c0_25] : memref<6x2x16xf32, #tpu.memory_space<vmem>>, vector<1x2x16xf32>
    %27 = vector.shape_cast %26 : vector<1x2x16xf32> to vector<2x16xf32>
    %28 = vector.shape_cast %25 : vector<2x16xf32> to vector<1x2x16xf32>
    tpu.vector_store %arg24[%c1, %c0_24, %c0_25], %28 {strides = array<i32>} : memref<6x2x16xf32, #tpu.memory_space<vmem>>, vector<1x2x16xf32>,
    %29 = vector.extract_strided_slice %16 {offsets = [2, 0], sizes = [2, 128], strides = [1, 1]} : vector<12x128xf32> to vector<2x128xf32>
    %c1_26 = arith.constant 1 : index
    %c0_27 = arith.constant 0 : index
    %c0_28 = arith.constant 0 : index
    %30 = vector.load %arg25[%c1_26, %c0_27, %c0_28] : memref<6x2x128xf32, #tpu.memory_space<vmem>>, vector<1x2x128xf32>
    %31 = vector.shape_cast %30 : vector<1x2x128xf32> to vector<2x128xf32>
    %32 = vector.shape_cast %29 : vector<2x128xf32> to vector<1x2x128xf32>
    tpu.vector_store %arg25[%c1_26, %c0_27, %c0_28], %32 {strides = array<i32>} : memref<6x2x128xf32, #tpu.memory_space<vmem>>, vector<1x2x128xf32>,
    %33 = vector.extract_strided_slice %11 {offsets = [4, 0], sizes = [2, 16], strides = [1, 1]} : vector<12x16xf32> to vector<2x16xf32>
    %c2 = arith.constant 2 : index
    %c0_29 = arith.constant 0 : index
    %c0_30 = arith.constant 0 : index
    %34 = vector.load %arg24[%c2, %c0_29, %c0_30] : memref<6x2x16xf32, #tpu.memory_space<vmem>>, vector<1x2x16xf32>
    %35 = vector.shape_cast %34 : vector<1x2x16xf32> to vector<2x16xf32>
    %36 = vector.shape_cast %33 : vector<2x16xf32> to vector<1x2x16xf32>
    tpu.vector_store %arg24[%c2, %c0_29, %c0_30], %36 {strides = array<i32>} : memref<6x2x16xf32, #tpu.memory_space<vmem>>, vector<1x2x16xf32>,
    %37 = vector.extract_strided_slice %16 {offsets = [4, 0], sizes = [2, 128], strides = [1, 1]} : vector<12x128xf32> to vector<2x128xf32>
    %c2_31 = arith.constant 2 : index
    %c0_32 = arith.constant 0 : index
    %c0_33 = arith.constant 0 : index
    %38 = vector.load %arg25[%c2_31, %c0_32, %c0_33] : memref<6x2x128xf32, #tpu.memory_space<vmem>>, vector<1x2x128xf32>
    %39 = vector.shape_cast %38 : vector<1x2x128xf32> to vector<2x128xf32>
    %40 = vector.shape_cast %37 : vector<2x128xf32> to vector<1x2x128xf32>
    tpu.vector_store %arg25[%c2_31, %c0_32, %c0_33], %40 {strides = array<i32>} : memref<6x2x128xf32, #tpu.memory_space<vmem>>, vector<1x2x128xf32>,
    %41 = vector.extract_strided_slice %11 {offsets = [6, 0], sizes = [2, 16], strides = [1, 1]} : vector<12x16xf32> to vector<2x16xf32>
    %c3 = arith.constant 3 : index
    %c0_34 = arith.constant 0 : index
    %c0_35 = arith.constant 0 : index
    %42 = vector.load %arg24[%c3, %c0_34, %c0_35] : memref<6x2x16xf32, #tpu.memory_space<vmem>>, vector<1x2x16xf32>
    %43 = vector.shape_cast %42 : vector<1x2x16xf32> to vector<2x16xf32>
    %44 = vector.shape_cast %41 : vector<2x16xf32> to vector<1x2x16xf32>
    tpu.vector_store %arg24[%c3, %c0_34, %c0_35], %44 {strides = array<i32>} : memref<6x2x16xf32, #tpu.memory_space<vmem>>, vector<1x2x16xf32>,
    %45 = vector.extract_strided_slice %16 {offsets = [6, 0], sizes = [2, 128], strides = [1, 1]} : vector<12x128xf32> to vector<2x128xf32>
    %c3_36 = arith.constant 3 : index
    %c0_37 = arith.constant 0 : index
    %c0_38 = arith.constant 0 : index
    %46 = vector.load %arg25[%c3_36, %c0_37, %c0_38] : memref<6x2x128xf32, #tpu.memory_space<vmem>>, vector<1x2x128xf32>
    %47 = vector.shape_cast %46 : vector<1x2x128xf32> to vector<2x128xf32>
    %48 = vector.shape_cast %45 : vector<2x128xf32> to vector<1x2x128xf32>
    tpu.vector_store %arg25[%c3_36, %c0_37, %c0_38], %48 {strides = array<i32>} : memref<6x2x128xf32, #tpu.memory_space<vmem>>, vector<1x2x128xf32>,
    %49 = vector.extract_strided_slice %11 {offsets = [8, 0], sizes = [2, 16], strides = [1, 1]} : vector<12x16xf32> to vector<2x16xf32>
    %c4 = arith.constant 4 : index
    %c0_39 = arith.constant 0 : index
    %c0_40 = arith.constant 0 : index
    %50 = vector.load %arg24[%c4, %c0_39, %c0_40] : memref<6x2x16xf32, #tpu.memory_space<vmem>>, vector<1x2x16xf32>
    %51 = vector.shape_cast %50 : vector<1x2x16xf32> to vector<2x16xf32>
    %52 = vector.shape_cast %49 : vector<2x16xf32> to vector<1x2x16xf32>
    tpu.vector_store %arg24[%c4, %c0_39, %c0_40], %52 {strides = array<i32>} : memref<6x2x16xf32, #tpu.memory_space<vmem>>, vector<1x2x16xf32>,
    %53 = vector.extract_strided_slice %16 {offsets = [8, 0], sizes = [2, 128], strides = [1, 1]} : vector<12x128xf32> to vector<2x128xf32>
    %c4_41 = arith.constant 4 : index
    %c0_42 = arith.constant 0 : index
    %c0_43 = arith.constant 0 : index
    %54 = vector.load %arg25[%c4_41, %c0_42, %c0_43] : memref<6x2x128xf32, #tpu.memory_space<vmem>>, vector<1x2x128xf32>
    %55 = vector.shape_cast %54 : vector<1x2x128xf32> to vector<2x128xf32>
    %56 = vector.shape_cast %53 : vector<2x128xf32> to vector<1x2x128xf32>
    tpu.vector_store %arg25[%c4_41, %c0_42, %c0_43], %56 {strides = array<i32>} : memref<6x2x128xf32, #tpu.memory_space<vmem>>, vector<1x2x128xf32>,
    %57 = vector.extract_strided_slice %11 {offsets = [10, 0], sizes = [2, 16], strides = [1, 1]} : vector<12x16xf32> to vector<2x16xf32>
    %c5 = arith.constant 5 : index
    %c0_44 = arith.constant 0 : index
    %c0_45 = arith.constant 0 : index
    %58 = vector.load %arg24[%c5, %c0_44, %c0_45] : memref<6x2x16xf32, #tpu.memory_space<vmem>>, vector<1x2x16xf32>
    %59 = vector.shape_cast %58 : vector<1x2x16xf32> to vector<2x16xf32>
    %60 = vector.shape_cast %57 : vector<2x16xf32> to vector<1x2x16xf32>
    tpu.vector_store %arg24[%c5, %c0_44, %c0_45], %60 {strides = array<i32>} : memref<6x2x16xf32, #tpu.memory_space<vmem>>, vector<1x2x16xf32>,
    %61 = vector.extract_strided_slice %16 {offsets = [10, 0], sizes = [2, 128], strides = [1, 1]} : vector<12x128xf32> to vector<2x128xf32>
    %c5_46 = arith.constant 5 : index
    %c0_47 = arith.constant 0 : index
    %c0_48 = arith.constant 0 : index
    %62 = vector.load %arg25[%c5_46, %c0_47, %c0_48] : memref<6x2x128xf32, #tpu.memory_space<vmem>>, vector<1x2x128xf32>
    %63 = vector.shape_cast %62 : vector<1x2x128xf32> to vector<2x128xf32>
    %64 = vector.shape_cast %61 : vector<2x128xf32> to vector<1x2x128xf32>
    tpu.vector_store %arg25[%c5_46, %c0_47, %c0_48], %64 {strides = array<i32>} : memref<6x2x128xf32, #tpu.memory_space<vmem>>, vector<1x2x128xf32>,
    %c0_49 = arith.constant 0 : index
    %c0_50 = arith.constant 0 : index
    %65 = vector.load %arg9[%c0_49, %c0_50] : memref<16x128xf32, #tpu.memory_space<vmem>>, vector<16x128xf32>
    %c0_51 = arith.constant 0 : index
    %c0_52 = arith.constant 0 : index
    %66 = vector.load %arg10[%c0_51, %c0_52] : memref<32x128xf32, #tpu.memory_space<vmem>>, vector<32x128xf32>
    %c0_53 = arith.constant 0 : index
    %c0_54 = arith.constant 0 : index
    %67 = vector.load %arg12[%c0_53, %c0_54] : memref<32x64xf32, #tpu.memory_space<vmem>>, vector<32x64xf32>
    %c0_55 = arith.constant 0 : index
    %c0_56 = arith.constant 0 : index
    %68 = vector.load %arg13[%c0_55, %c0_56] : memref<16x64xf32, #tpu.memory_space<vmem>>, vector<16x64xf32>
    %c0_57 = arith.constant 0 : index
    %c0_58 = arith.constant 0 : index
    %69 = vector.load %arg14[%c0_57, %c0_58] : memref<1x64xf32, #tpu.memory_space<vmem>>, vector<1x64xf32>
    %c0_59 = arith.constant 0 : index
    %c0_60 = arith.constant 0 : index
    %70 = vector.load %arg15[%c0_59, %c0_60] : memref<16x16xf32, #tpu.memory_space<vmem>>, vector<16x16xf32>
    %c0_61 = arith.constant 0 : index
    %c0_62 = arith.constant 0 : index
    %71 = vector.load %arg16[%c0_61, %c0_62] : memref<16x16xf32, #tpu.memory_space<vmem>>, vector<16x16xf32>
    %c0_63 = arith.constant 0 : index
    %c0_64 = arith.constant 0 : index
    %72 = vector.load %arg17[%c0_63, %c0_64] : memref<1x16xf32, #tpu.memory_space<vmem>>, vector<1x16xf32>
    %c0_65 = arith.constant 0 : index
    %c0_66 = arith.constant 0 : index
    %73 = vector.load %arg18[%c0_65, %c0_66] : memref<16x34xf32, #tpu.memory_space<vmem>>, vector<16x34xf32>
    %c0_67 = arith.constant 0 : index
    %c0_68 = arith.constant 0 : index
    %74 = vector.load %arg19[%c0_67, %c0_68] : memref<1x34xf32, #tpu.memory_space<vmem>>, vector<1x34xf32>
    %cst_69 = arith.constant 0.000000e+00 : f32
    %75 = vector.broadcast %cst_69 : f32 to vector<2x16xf32>
    %c0_70 = arith.constant 0 : index
    %c0_71 = arith.constant 0 : index
    %76 = vector.load %arg4[%c0_70, %c0_71] : memref<2x32xf32, #tpu.memory_space<vmem>>, vector<2x32xf32>
    %c0_72 = arith.constant 0 : index
    %c0_73 = arith.constant 0 : index
    %77 = vector.load %arg5[%c0_72, %c0_73] : memref<2x32xf32, #tpu.memory_space<vmem>>, vector<2x32xf32>
    %c0_i32 = arith.constant 0 : i32
    %c6_i32 = arith.constant 6 : i32
    %78 = arith.addi %c0_i32, %c6_i32 : i32
    %c1_i32 = arith.constant 1 : i32
    %79:4 = scf.for %arg26 = %c0_i32 to %78 step %c1_i32 iter_args(%arg27 = %76, %arg28 = %77, %arg29 = %75, %arg30 = %75) -> (vector<2x32xf32>, vector<2x32xf32>, vector<2x16xf32>, vector<2x16xf32>)  : i32 {
      %117 = arith.index_cast %arg26 : i32 to index
      %c0_91 = arith.constant 0 : index
      %c0_92 = arith.constant 0 : index
      %118 = vector.load %arg24[%117, %c0_91, %c0_92] : memref<6x2x16xf32, #tpu.memory_space<vmem>>, vector<1x2x16xf32>
      %119 = vector.shape_cast %118 : vector<1x2x16xf32> to vector<2x16xf32>
      %120 = vector.shape_cast %119 : vector<2x16xf32> to vector<2x1x16xf32>
      "tpu.trace_start"() <{level = 10 : i32, message = "bqk,bsk->bqs"}> : () -> ()
      %cst_93 = arith.constant dense<0.000000e+00> : vector<2x1x4xf32>
      %121 = tpu.matmul %120, %0, %cst_93 {dimension_numbers = #tpu.dot_dimension_numbers<[2], [2], [1], [1], [0, 0, 0, 1, 1, 1], [0], [0]>} : vector<2x1x16xf32>, vector<2x4x16xf32>, vector<2x1x4xf32> -> vector<2x1x4xf32>
      "tpu.trace_stop"() : () -> ()
      %122 = vector.shape_cast %121 : vector<2x1x4xf32> to vector<2x4xf32>
      %cst_94 = arith.constant 2.500000e-01 : f32
      %123 = vector.broadcast %cst_94 : f32 to vector<2x4xf32>
      %124 = arith.mulf %122, %123 : vector<2x4xf32>
      %cst_95 = arith.constant -1.000000e+09 : f32
      %125 = vector.broadcast %cst_95 : f32 to vector<2x4xf32>
      %126 = arith.select %5, %125, %124 : vector<2x4xi1>, vector<2x4xf32>
      %cst_96 = arith.constant dense<0xFF800000> : vector<2xf32>
      %127 = vector.multi_reduction <maximumf>, %126, %cst_96 [1] : vector<2x4xf32> to vector<2xf32>
      %128 = vector.shape_cast %127 : vector<2xf32> to vector<2x1xf32>
      %129 = vector.broadcast %128 : vector<2x1xf32> to vector<2x4xf32>
      %130 = arith.subf %126, %129 : vector<2x4xf32>
      %131 = math.exp %130 : vector<2x4xf32>
      %cst_97 = arith.constant dense<0.000000e+00> : vector<2xf32>
      %132 = vector.multi_reduction <add>, %131, %cst_97 [1] : vector<2x4xf32> to vector<2xf32>
      %133 = vector.shape_cast %132 : vector<2xf32> to vector<2x1xf32>
      %134 = vector.broadcast %133 : vector<2x1xf32> to vector<2x4xf32>
      %135 = arith.divf %131, %134 : vector<2x4xf32>
      %136 = vector.shape_cast %135 : vector<2x4xf32> to vector<2x1x4xf32>
      "tpu.trace_start"() <{level = 10 : i32, message = "bqs,bsv->bqv"}> : () -> ()
      %cst_98 = arith.constant dense<0.000000e+00> : vector<2x1x16xf32>
      %137 = tpu.matmul %136, %1, %cst_98 {dimension_numbers = #tpu.dot_dimension_numbers<[2], [1], [1], [2], [0, 0, 0, 1, 1, 2], [0], [0]>} : vector<2x1x4xf32>, vector<2x4x16xf32>, vector<2x1x16xf32> -> vector<2x1x16xf32>
      "tpu.trace_stop"() : () -> ()
      %138 = vector.shape_cast %137 : vector<2x1x16xf32> to vector<2x16xf32>
      %139 = arith.index_cast %arg26 : i32 to index
      %c0_99 = arith.constant 0 : index
      %c0_100 = arith.constant 0 : index
      %140 = vector.load %arg25[%139, %c0_99, %c0_100] : memref<6x2x128xf32, #tpu.memory_space<vmem>>, vector<1x2x128xf32>
      %141 = vector.shape_cast %140 : vector<1x2x128xf32> to vector<2x128xf32>
      %cst_101 = arith.constant dense<0.000000e+00> : vector<2x128xf32>
      %142 = tpu.matmul %138, %65, %cst_101 {dimension_numbers = #tpu.dot_dimension_numbers<[1], [0], [0], [1], [0, 0, 1, 1], [], []>} : vector<2x16xf32>, vector<16x128xf32>, vector<2x128xf32> -> vector<2x128xf32>
      %143 = arith.addf %141, %142 : vector<2x128xf32>
      %cst_102 = arith.constant dense<0.000000e+00> : vector<2x128xf32>
      %144 = tpu.matmul %arg27, %66, %cst_102 {dimension_numbers = #tpu.dot_dimension_numbers<[1], [0], [0], [1], [0, 0, 1, 1], [], []>} : vector<2x32xf32>, vector<32x128xf32>, vector<2x128xf32> -> vector<2x128xf32>
      %145 = arith.addf %143, %144 : vector<2x128xf32>
      %146 = vector.extract_strided_slice %145 {offsets = [0, 0], sizes = [2, 32], strides = [1, 1]} : vector<2x128xf32> to vector<2x32xf32>
      %147 = arith.negf %146 : vector<2x32xf32>
      %148 = math.exp %147 : vector<2x32xf32>
      %cst_103 = arith.constant 1.000000e+00 : f32
      %149 = vector.broadcast %cst_103 : f32 to vector<2x32xf32>
      %150 = arith.addf %149, %148 : vector<2x32xf32>
      %151 = arith.divf %149, %150 : vector<2x32xf32>
      %152 = vector.extract_strided_slice %145 {offsets = [0, 32], sizes = [2, 32], strides = [1, 1]} : vector<2x128xf32> to vector<2x32xf32>
      %153 = arith.negf %152 : vector<2x32xf32>
      %154 = math.exp %153 : vector<2x32xf32>
      %cst_104 = arith.constant 1.000000e+00 : f32
      %155 = vector.broadcast %cst_104 : f32 to vector<2x32xf32>
      %156 = arith.addf %155, %154 : vector<2x32xf32>
      %157 = arith.divf %155, %156 : vector<2x32xf32>
      %158 = vector.extract_strided_slice %145 {offsets = [0, 64], sizes = [2, 32], strides = [1, 1]} : vector<2x128xf32> to vector<2x32xf32>
      %159 = math.tanh %158 : vector<2x32xf32>
      %160 = vector.extract_strided_slice %145 {offsets = [0, 96], sizes = [2, 32], strides = [1, 1]} : vector<2x128xf32> to vector<2x32xf32>
      %161 = arith.negf %160 : vector<2x32xf32>
      %162 = math.exp %161 : vector<2x32xf32>
      %cst_105 = arith.constant 1.000000e+00 : f32
      %163 = vector.broadcast %cst_105 : f32 to vector<2x32xf32>
      %164 = arith.addf %163, %162 : vector<2x32xf32>
      %165 = arith.divf %163, %164 : vector<2x32xf32>
      %166 = arith.mulf %157, %arg28 : vector<2x32xf32>
      %167 = arith.mulf %151, %159 : vector<2x32xf32>
      %168 = arith.addf %166, %167 : vector<2x32xf32>
      %169 = math.tanh %168 : vector<2x32xf32>
      %170 = arith.mulf %165, %169 : vector<2x32xf32>
      %cst_106 = arith.constant dense<0.000000e+00> : vector<2x64xf32>
      %171 = tpu.matmul %170, %67, %cst_106 {dimension_numbers = #tpu.dot_dimension_numbers<[1], [0], [0], [1], [0, 0, 1, 1], [], []>} : vector<2x32xf32>, vector<32x64xf32>, vector<2x64xf32> -> vector<2x64xf32>
      %cst_107 = arith.constant dense<0.000000e+00> : vector<2x64xf32>
      %172 = tpu.matmul %arg29, %68, %cst_107 {dimension_numbers = #tpu.dot_dimension_numbers<[1], [0], [0], [1], [0, 0, 1, 1], [], []>} : vector<2x16xf32>, vector<16x64xf32>, vector<2x64xf32> -> vector<2x64xf32>
      %173 = arith.addf %171, %172 : vector<2x64xf32>
      %174 = vector.broadcast %69 : vector<1x64xf32> to vector<2x64xf32>
      %175 = arith.addf %173, %174 : vector<2x64xf32>
      %176 = vector.extract_strided_slice %175 {offsets = [0, 0], sizes = [2, 16], strides = [1, 1]} : vector<2x64xf32> to vector<2x16xf32>
      %177 = arith.negf %176 : vector<2x16xf32>
      %178 = math.exp %177 : vector<2x16xf32>
      %cst_108 = arith.constant 1.000000e+00 : f32
      %179 = vector.broadcast %cst_108 : f32 to vector<2x16xf32>
      %180 = arith.addf %179, %178 : vector<2x16xf32>
      %181 = arith.divf %179, %180 : vector<2x16xf32>
      %182 = vector.extract_strided_slice %175 {offsets = [0, 16], sizes = [2, 16], strides = [1, 1]} : vector<2x64xf32> to vector<2x16xf32>
      %183 = arith.negf %182 : vector<2x16xf32>
      %184 = math.exp %183 : vector<2x16xf32>
      %cst_109 = arith.constant 1.000000e+00 : f32
      %185 = vector.broadcast %cst_109 : f32 to vector<2x16xf32>
      %186 = arith.addf %185, %184 : vector<2x16xf32>
      %187 = arith.divf %185, %186 : vector<2x16xf32>
      %188 = vector.extract_strided_slice %175 {offsets = [0, 32], sizes = [2, 16], strides = [1, 1]} : vector<2x64xf32> to vector<2x16xf32>
      %189 = math.tanh %188 : vector<2x16xf32>
      %190 = vector.extract_strided_slice %175 {offsets = [0, 48], sizes = [2, 16], strides = [1, 1]} : vector<2x64xf32> to vector<2x16xf32>
      %191 = arith.negf %190 : vector<2x16xf32>
      %192 = math.exp %191 : vector<2x16xf32>
      %cst_110 = arith.constant 1.000000e+00 : f32
      %193 = vector.broadcast %cst_110 : f32 to vector<2x16xf32>
      %194 = arith.addf %193, %192 : vector<2x16xf32>
      %195 = arith.divf %193, %194 : vector<2x16xf32>
      %196 = arith.mulf %187, %arg30 : vector<2x16xf32>
      %197 = arith.mulf %181, %189 : vector<2x16xf32>
      %198 = arith.addf %196, %197 : vector<2x16xf32>
      %199 = math.tanh %198 : vector<2x16xf32>
      %200 = arith.mulf %195, %199 : vector<2x16xf32>
      %201 = vector.shape_cast %200 : vector<2x16xf32> to vector<2x1x16xf32>
      "tpu.trace_start"() <{level = 10 : i32, message = "bqk,bsk->bqs"}> : () -> ()
      %cst_111 = arith.constant dense<0.000000e+00> : vector<2x1x4xf32>
      %202 = tpu.matmul %201, %0, %cst_111 {dimension_numbers = #tpu.dot_dimension_numbers<[2], [2], [1], [1], [0, 0, 0, 1, 1, 1], [0], [0]>} : vector<2x1x16xf32>, vector<2x4x16xf32>, vector<2x1x4xf32> -> vector<2x1x4xf32>
      "tpu.trace_stop"() : () -> ()
      %203 = vector.shape_cast %202 : vector<2x1x4xf32> to vector<2x4xf32>
      %cst_112 = arith.constant 2.500000e-01 : f32
      %204 = vector.broadcast %cst_112 : f32 to vector<2x4xf32>
      %205 = arith.mulf %203, %204 : vector<2x4xf32>
      %cst_113 = arith.constant -1.000000e+09 : f32
      %206 = vector.broadcast %cst_113 : f32 to vector<2x4xf32>
      %207 = arith.select %5, %206, %205 : vector<2x4xi1>, vector<2x4xf32>
      %cst_114 = arith.constant dense<0xFF800000> : vector<2xf32>
      %208 = vector.multi_reduction <maximumf>, %207, %cst_114 [1] : vector<2x4xf32> to vector<2xf32>
      %209 = vector.shape_cast %208 : vector<2xf32> to vector<2x1xf32>
      %210 = vector.broadcast %209 : vector<2x1xf32> to vector<2x4xf32>
      %211 = arith.subf %207, %210 : vector<2x4xf32>
      %212 = math.exp %211 : vector<2x4xf32>
      %cst_115 = arith.constant dense<0.000000e+00> : vector<2xf32>
      %213 = vector.multi_reduction <add>, %212, %cst_115 [1] : vector<2x4xf32> to vector<2xf32>
      %214 = vector.shape_cast %213 : vector<2xf32> to vector<2x1xf32>
      %215 = vector.broadcast %214 : vector<2x1xf32> to vector<2x4xf32>
      %216 = arith.divf %212, %215 : vector<2x4xf32>
      %217 = vector.shape_cast %216 : vector<2x4xf32> to vector<2x1x4xf32>
      "tpu.trace_start"() <{level = 10 : i32, message = "bqs,bsv->bqv"}> : () -> ()
      %cst_116 = arith.constant dense<0.000000e+00> : vector<2x1x16xf32>
      %218 = tpu.matmul %217, %1, %cst_116 {dimension_numbers = #tpu.dot_dimension_numbers<[2], [1], [1], [2], [0, 0, 0, 1, 1, 2], [0], [0]>} : vector<2x1x4xf32>, vector<2x4x16xf32>, vector<2x1x16xf32> -> vector<2x1x16xf32>
      "tpu.trace_stop"() : () -> ()
      %219 = vector.shape_cast %218 : vector<2x1x16xf32> to vector<2x16xf32>
      %cst_117 = arith.constant dense<0.000000e+00> : vector<2x16xf32>
      %220 = tpu.matmul %200, %70, %cst_117 {dimension_numbers = #tpu.dot_dimension_numbers<[1], [0], [0], [1], [0, 0, 1, 1], [], []>} : vector<2x16xf32>, vector<16x16xf32>, vector<2x16xf32> -> vector<2x16xf32>
      %cst_118 = arith.constant dense<0.000000e+00> : vector<2x16xf32>
      %221 = tpu.matmul %219, %71, %cst_118 {dimension_numbers = #tpu.dot_dimension_numbers<[1], [0], [0], [1], [0, 0, 1, 1], [], []>} : vector<2x16xf32>, vector<16x16xf32>, vector<2x16xf32> -> vector<2x16xf32>
      %222 = arith.addf %220, %221 : vector<2x16xf32>
      %223 = vector.broadcast %72 : vector<1x16xf32> to vector<2x16xf32>
      %224 = arith.addf %222, %223 : vector<2x16xf32>
      %cst_119 = arith.constant -1.000000e+00 : f32
      %cst_120 = arith.constant 1.000000e+00 : f32
      %225 = vector.broadcast %cst_119 : f32 to vector<2x16xf32>
      %226 = arith.maximumf %225, %224 : vector<2x16xf32>
      %227 = vector.broadcast %cst_120 : f32 to vector<2x16xf32>
      %228 = arith.minimumf %227, %226 : vector<2x16xf32>
      %cst_121 = arith.constant dense<0.000000e+00> : vector<2x34xf32>
      %229 = tpu.matmul %228, %73, %cst_121 {dimension_numbers = #tpu.dot_dimension_numbers<[1], [0], [0], [1], [0, 0, 1, 1], [], []>} : vector<2x16xf32>, vector<16x34xf32>, vector<2x34xf32> -> vector<2x34xf32>
      %230 = vector.broadcast %74 : vector<1x34xf32> to vector<2x34xf32>
      %231 = arith.addf %229, %230 : vector<2x34xf32>
      %232 = arith.index_cast %arg26 : i32 to index
      %c0_122 = arith.constant 0 : index
      %c0_123 = arith.constant 0 : index
      %233 = vector.load %arg22[%232, %c0_122, %c0_123] : memref<6x2x34xf32, #tpu.memory_space<vmem>>, vector<1x2x34xf32>
      %234 = vector.shape_cast %233 : vector<1x2x34xf32> to vector<2x34xf32>
      %235 = vector.shape_cast %231 : vector<2x34xf32> to vector<1x2x34xf32>
      tpu.vector_store %arg22[%232, %c0_122, %c0_123], %235 {strides = array<i32>} : memref<6x2x34xf32, #tpu.memory_space<vmem>>, vector<1x2x34xf32>,
      scf.yield %170, %168, %200, %198 : vector<2x32xf32>, vector<2x32xf32>, vector<2x16xf32>, vector<2x16xf32>
    }
    %c6_i32_74 = arith.constant 6 : i32
    %c0_75 = arith.constant 0 : index
    %c0_76 = arith.constant 0 : index
    %c0_77 = arith.constant 0 : index
    %80 = vector.load %arg22[%c0_75, %c0_76, %c0_77] : memref<6x2x34xf32, #tpu.memory_space<vmem>>, vector<6x2x34xf32>
    %cst_78 = arith.constant dense<0xFF800000> : vector<6x2xf32>
    %81 = vector.multi_reduction <maximumf>, %80, %cst_78 [2] : vector<6x2x34xf32> to vector<6x2xf32>
    %82 = vector.shape_cast %81 : vector<6x2xf32> to vector<6x2x1xf32>
    %83 = vector.broadcast %82 : vector<6x2x1xf32> to vector<6x2x34xf32>
    %84 = arith.subf %80, %83 : vector<6x2x34xf32>
    %85 = math.exp %84 : vector<6x2x34xf32>
    %cst_79 = arith.constant dense<0.000000e+00> : vector<6x2xf32>
    %86 = vector.multi_reduction <add>, %85, %cst_79 [2] : vector<6x2x34xf32> to vector<6x2xf32>
    %87 = math.log %86 : vector<6x2xf32>
    %88 = vector.shape_cast %82 : vector<6x2x1xf32> to vector<6x2xf32>
    %89 = arith.addf %87, %88 : vector<6x2xf32>
    %c0_80 = arith.constant 0 : index
    %c0_81 = arith.constant 0 : index
    %90 = vector.load %arg20[%c0_80, %c0_81] : memref<6x2xi32, #tpu.memory_space<vmem>>, vector<6x2xi32>
    %91 = tpu.iota {dimensions = array<i32: 2>} : vector<6x2x34xi32>
    %92 = vector.shape_cast %90 : vector<6x2xi32> to vector<6x2x1xi32>
    %93 = vector.broadcast %92 : vector<6x2x1xi32> to vector<6x2x34xi32>
    %94 = arith.cmpi eq, %91, %93 : vector<6x2x34xi32>
    %cst_82 = arith.constant 0.000000e+00 : f32
    %95 = vector.broadcast %cst_82 : f32 to vector<6x2x34xf32>
    %96 = arith.select %94, %80, %95 : vector<6x2x34xi1>, vector<6x2x34xf32>
    %cst_83 = arith.constant dense<0.000000e+00> : vector<6x2xf32>
    %97 = vector.multi_reduction <add>, %96, %cst_83 [2] : vector<6x2x34xf32> to vector<6x2xf32>
    %98 = arith.subf %89, %97 : vector<6x2xf32>
    %99 = tpu.iota {dimensions = array<i32: 0>} : vector<6x2xi32>
    %c0_84 = arith.constant 0 : index
    %c0_85 = arith.constant 0 : index
    %100 = vector.load %arg21[%c0_84, %c0_85] : memref<1x2xi32, #tpu.memory_space<vmem>>, vector<1x2xi32>
    %101 = vector.broadcast %100 : vector<1x2xi32> to vector<6x2xi32>
    %102 = arith.cmpi sge, %99, %101 : vector<6x2xi32>
    %cst_86 = arith.constant 0.000000e+00 : f32
    %103 = vector.broadcast %cst_86 : f32 to vector<6x2xf32>
    %104 = arith.select %102, %103, %98 : vector<6x2xi1>, vector<6x2xf32>
    %105 = vector.shape_cast %100 : vector<1x2xi32> to vector<1x1x2xi32>
    %cst_87 = arith.constant dense<0> : vector<1xi32>
    %106 = vector.multi_reduction <add>, %105, %cst_87 [1, 2] : vector<1x1x2xi32> to vector<1xi32>
    %107 = vector.shape_cast %106 : vector<1xi32> to vector<1x1x1xi32>
    %108 = vector.extract %107[0, 0, 0] : i32 from vector<1x1x1xi32>
    %109 = arith.sitofp %108 : i32 to f32
    %110 = vector.shape_cast %104 : vector<6x2xf32> to vector<1x6x2xf32>
    %cst_88 = arith.constant dense<0.000000e+00> : vector<1xf32>
    %111 = vector.multi_reduction <add>, %110, %cst_88 [1, 2] : vector<1x6x2xf32> to vector<1xf32>
    %112 = vector.shape_cast %111 : vector<1xf32> to vector<1x1x1xf32>
    %113 = vector.extract %112[0, 0, 0] : f32 from vector<1x1x1xf32>
    %114 = arith.divf %113, %109 : f32
    %115 = vector.broadcast %114 : f32 to vector<1x1xf32>
    %c0_89 = arith.constant 0 : index
    %c0_90 = arith.constant 0 : index
    %116 = vector.load %arg23[%c0_89, %c0_90] : memref<1x1xf32, #tpu.memory_space<vmem>>, vector<1x1xf32>
    tpu.vector_store %arg23[%c0_89, %c0_90], %115 {strides = array<i32>} : memref<1x1xf32, #tpu.memory_space<vmem>>, vector<1x1xf32>,
    return
  }
}

</mosaic_0001>

<llo_original>
// kernel: _lambda_.6
$region0: #{_lambda_.6}
  #allocation0 [shape = 'u32[]', space=smem, size = 0x4, offset = 0x4, fixed_abs, tag = 'smem constant byte address 0x4 - core index']
  #allocation1 [shape = 'u32[72,128]{1,0:T(1,128)}', space=vmem, size = 0x9000, scoped, tag = 'internal scratch']
  %s0 = inlined_call_operand.vmem [shape: f32[16,2,32], index: 0, kind: input, shape index: {}]
  %s1 = inlined_call_operand.vmem [shape: f32[64,64], index: 1, kind: input, shape index: {}]
  %s2 = inlined_call_operand.vmem [shape: f32[16,64], index: 2, kind: input, shape index: {}]
  %s3 = inlined_call_operand.vmem [shape: f32[1,64], index: 3, kind: input, shape index: {}]
  %s4 = inlined_call_operand.vmem [shape: f32[64,64], index: 4, kind: input, shape index: {}]
  %s5 = inlined_call_operand.vmem [shape: f32[16,64], index: 5, kind: input, shape index: {}]
  %s6 = inlined_call_operand.vmem [shape: f32[1,64], index: 6, kind: input, shape index: {}]
  %s7 = inlined_call_operand.vmem [shape: f32[8,2,16], index: 7, kind: output, shape index: {0}]
  %s8 = inlined_call_operand.vmem [shape: f32[8,2,16], index: 8, kind: output, shape index: {1}]
  %s9 = inlined_call_operand.hbm [shape: f32[2,2,16], index: 9, kind: output, shape index: {2}]
  %s10 = inlined_call_operand.hbm [shape: f32[2,2,16], index: 10, kind: output, shape index: {3}]
  %11 = xla_tuple %s7, %s8, %s9, %s10
  %s12 = sld [smem:[#allocation0]]
  $region69: #{_lambda_.6} parent=0
    _
  %s14 = ssub.s32 1, %s12
  %s15 = scalar_select 0, %s14, %s12
  $region1: #{_lambda_.6} parent=0
    #allocation2 [shape = 'u8[2048]{0}', space=vmem, size = 0x800, scoped, tag = 'output window, operand 2, single buffered']
    #allocation3 [shape = 's32[1]{0}', space=sflag, size = 0x4, scoped, tag = 'scoped memory for _lambda_.6']
    #allocation4 [shape = 'u8[2048]{0}', space=vmem, size = 0x800, scoped, tag = 'output window, operand 3, single buffered']
    #allocation5 [shape = 's32[1]{0}', space=sflag, size = 0x4, scoped, tag = 'scoped memory for _lambda_.6']
    %16 = vsyncpa [#allocation3], 0
    %17 = vsyncpa [#allocation5], 0
    // Predicated region
    $region2: #{_lambda_.6} parent=1 // pred_check
      _
    $region3: #{_lambda_.6} parent=1 // pred_check_branch
      %19 = sbr.rel (0) target = $region5
    $region4: #{_lambda_.6} parent=1 // pred_region
      _
    $region5: #{_lambda_.6} parent=1 // pred_fallthru
      _
    // Predicated region
    $region6: #{_lambda_.6} parent=1 // pred_check
      _
    $region7: #{_lambda_.6} parent=1 // pred_check_branch
      %21 = sbr.rel (0) target = $region9
    $region8: #{_lambda_.6} parent=1 // pred_region
      _
    $region9: #{_lambda_.6} parent=1 // pred_fallthru
      _
    // Predicated region
    $region10: #{_lambda_.6} parent=1 // pred_check
      _
    $region11: #{_lambda_.6} parent=1 // pred_check_branch
      %23 = sbr.rel (0) target = $region13
    $region12: #{_lambda_.6} parent=1 // pred_region
      _
    $region13: #{_lambda_.6} parent=1 // pred_fallthru
      _
    // Predicated region
    $region14: #{_lambda_.6} parent=1 // pred_check
      _
    $region15: #{_lambda_.6} parent=1 // pred_check_branch
      %25 = sbr.rel (0) target = $region17
    $region16: #{_lambda_.6} parent=1 // pred_region
      _
    $region17: #{_lambda_.6} parent=1 // pred_fallthru
      _
    // Predicated region
    $region18: #{_lambda_.6} parent=1 // pred_check
      _
    $region19: #{_lambda_.6} parent=1 // pred_check_branch
      %27 = sbr.rel (0) target = $region21
    $region20: #{_lambda_.6} parent=1 // pred_region
      _
    $region21: #{_lambda_.6} parent=1 // pred_fallthru
      _
    // Predicated region
    $region22: #{_lambda_.6} parent=1 // pred_check
      _
    $region23: #{_lambda_.6} parent=1 // pred_check_branch
      %29 = sbr.rel (0) target = $region25
    $region24: #{_lambda_.6} parent=1 // pred_region
      _
    $region25: #{_lambda_.6} parent=1 // pred_fallthru
      _
    // Predicated region
    $region26: #{_lambda_.6} parent=1 // pred_check
      _
    $region27: #{_lambda_.6} parent=1 // pred_check_branch
      %31 = sbr.rel (0) target = $region29
    $region28: #{_lambda_.6} parent=1 // pred_region
      _
    $region29: #{_lambda_.6} parent=1 // pred_fallthru
      _
    %v32 = vld [vmem:[%s2] sm:$0xff]
    %v33 = vld [vmem:[%s2 + $0x8] sm:$0xff]
    %v34 = vld [vmem:[%s3] sm:$0x1]
    %v35 = vld [vmem:[%s5] sm:$0xff]
    %v36 = vld [vmem:[%s5 + $0x8] sm:$0xff]
    %v37 = vld [vmem:[%s6] sm:$0x1]
    %v38 = vld [vmem:[%s1] sm:$0xff]
    %v39 = vld [vmem:[%s1 + $0x8] sm:$0xff]
    %v40 = vld [vmem:[%s1 + $0x10] sm:$0xff]
    %v41 = vld [vmem:[%s1 + $0x18] sm:$0xff]
    %v42 = vld [vmem:[%s1 + $0x20] sm:$0xff]
    %v43 = vld [vmem:[%s1 + $0x28] sm:$0xff]
    %v44 = vld [vmem:[%s1 + $0x30] sm:$0xff]
    %v45 = vld [vmem:[%s1 + $0x38] sm:$0xff]
    %v46 = vld [vmem:[%s4] sm:$0xff]
    %v47 = vld [vmem:[%s4 + $0x8] sm:$0xff]
    %v48 = vld [vmem:[%s4 + $0x10] sm:$0xff]
    %v49 = vld [vmem:[%s4 + $0x18] sm:$0xff]
    %v50 = vld [vmem:[%s4 + $0x20] sm:$0xff]
    %v51 = vld [vmem:[%s4 + $0x28] sm:$0xff]
    %v52 = vld [vmem:[%s4 + $0x30] sm:$0xff]
    %v53 = vld [vmem:[%s4 + $0x38] sm:$0xff]
    loop: start=0, step=1, limit=8
    $region30: #{_lambda_.6} parent=1 // loop_pre_header
      _
    $region31: #{_lambda_.6} parent=1 // loop_header
      %s55 = sphi 0, %s59
      %p56 = scmp.ge.s32.totalorder %s55, 8
      %v60 = vphi 0.0, %v187
      %v61 = vphi 0.0, %v181
      %v62 = vphi 0.0, %v308
      %v63 = vphi 0.0, %v302
    $region32: #{_lambda_.6} parent=1 // loop_header_branch
      %58 = sbr.rel (%p56) target = $region36
    $region33: #{_lambda_.6} parent=1 // loop_body
      %s64 = ssub.s32 7, %s55
      %s65 = smul.u32 %s55, 2
      %s66 = smul.u32 %s65, 2
      %s67 = scalar_lea.vmem %s0, %s66
      %v68 = vld [vmem:[%s67] sm:$0x3]
      %s69 = sadd.s32 %s65, 1
      %s70 = smul.u32 %s69, 2
      %s71 = scalar_lea.vmem %s0, %s70
      %v72 = vld [vmem:[%s71] sm:$0x3]
      %vm73 = vcmask 261120
      %v75 = vsel %vm73, %v72, 0
      %77 = vmatpush.msra.mxu0 0.0
      %78 = vmatpush.msra.mxu0 0.0
      %79 = vmatpush.msra.mxu0 0.0
      %80 = vmatpush.msra.mxu0 0.0
      %81 = vmatpush.msra.mxu0 0.0
      %82 = vmatpush.msra.mxu0 0.0
      %83 = vmatpush.msra.mxu0 0.0
      %84 = vmatpush.msra.mxu0 0.0
      %85 = vmatpush.msra.mxu0 0.0
      %86 = vmatpush.msra.mxu0 0.0
      %87 = vmatpush.msra.mxu0 0.0
      %88 = vmatpush.msra.mxu0 0.0
      %89 = vmatpush.msra.mxu0 %v45
      %90 = vmatpush.msra.mxu0 %v44
      %91 = vmatpush.msra.mxu0 %v43
      %92 = vmatpush.msra.mxu0 %v42
      %93 = vmatmul.f32.gmra.mxu0 %v75
      %v94 = vpop.f32.mrf.mxu0
      %v95 = vadd.f32 0.0, %v94
      %96 = vdwg.mxu0
      %v98 = vsel %vm73, %v68, 0
      %100 = vmatpush.msra.mxu0 0.0
      %101 = vmatpush.msra.mxu0 0.0
      %102 = vmatpush.msra.mxu0 0.0
      %103 = vmatpush.msra.mxu0 0.0
      %104 = vmatpush.msra.mxu0 0.0
      %105 = vmatpush.msra.mxu0 0.0
      %106 = vmatpush.msra.mxu0 0.0
      %107 = vmatpush.msra.mxu0 0.0
      %108 = vmatpush.msra.mxu0 0.0
      %109 = vmatpush.msra.mxu0 0.0
      %110 = vmatpush.msra.mxu0 0.0
      %111 = vmatpush.msra.mxu0 0.0
      %112 = vmatpush.msra.mxu0 %v41
      %113 = vmatpush.msra.mxu0 %v40
      %114 = vmatpush.msra.mxu0 %v39
      %115 = vmatpush.msra.mxu0 %v38
      %116 = vmatmul.f32.gmra.mxu0 %v98
      %v117 = vpop.f32.mrf.mxu0
      %v118 = vadd.f32 %v95, %v117
      %119 = vdwg.mxu0
      %121 = vrot.lane.b32.xlu0 %v60, 80
      %v122 = vpop.permute.xlu0 %121
      %vm123 = vcmask 130048
      %v124 = vsel %vm123, %v122, 0
      %126 = vmatpush.msra.mxu0 0.0
      %127 = vmatpush.msra.mxu0 0.0
      %128 = vmatpush.msra.mxu0 0.0
      %129 = vmatpush.msra.mxu0 0.0
      %130 = vmatpush.msra.mxu0 0.0
      %131 = vmatpush.msra.mxu0 0.0
      %132 = vmatpush.msra.mxu0 0.0
      %133 = vmatpush.msra.mxu0 0.0
      %134 = vmatpush.msra.mxu0 0.0
      %135 = vmatpush.msra.mxu0 0.0
      %136 = vmatpush.msra.mxu0 0.0
      %137 = vmatpush.msra.mxu0 0.0
      %138 = vmatpush.msra.mxu0 0.0
      %139 = vmatpush.msra.mxu0 0.0
      %140 = vmatpush.msra.mxu0 %v33
      %141 = vmatpush.msra.mxu0 %v32
      %142 = vmatmul.f32.gmra.mxu0 %v124
      %v143 = vpop.f32.mrf.mxu0
      %v144 = vadd.f32 0.0, %v143
      %145 = vdwg.mxu0
      %v146 = vadd.f32 %v118, %v144
      %v148 = vperm.slane %v34, 0
      %v150 = vadd.f32 %v146, %v148
      %v151 = vxor.u32 %v150, 2147483648
      %v152 = vmul.f32 %v151, 1.442695
      %v153 = vpow.pop %v152
      %v154 = vadd.f32 %v153, 1.0
      %v155 = vrcp.pop %v154
      %v156 = vmul.f32 %v154, %v155
      %v157 = vsub.f32 1.0, %v156
      %v158 = vmul.f32 %v155, %v157
      %v159 = vadd.f32 %v155, %v158
      %vm160 = vweird.f32 %v154
      %vm161 = vweird.f32 %v155
      %vm162 = vmor %vm160, %vm161
      %v163 = vsel %vm162, %v155, %v159
      %v164 = vand.u32 2147483647, %v154
      %vm165 = vcmp.eq.f32.partialorder %v164, 8.507059e+37
      %v166 = vand.u32 %v154, 2147483648
      %v167 = vor.u32 1.1754944e-38, %v166
      %v168 = vsel %vm165, %v167, %v163
      %v169 = vmul.f32 1.0, %v168
      %v170 = vtanh.pop %v150
      %v171 = vmul.f32 %v169, %v61
      %173 = vrot.lane.b32.xlu0 %v170, 96
      %v174 = vpop.permute.xlu0 %173
      %v176 = vmul.f32 %v169, %v174
      %178 = vrot.lane.b32.xlu0 %v176, 16
      %v179 = vpop.permute.xlu0 %178
      %v181 = vadd.f32 %v171, %v179
      %v182 = vtanh.pop %v181
      %184 = vrot.lane.b32.xlu0 %v182, 32
      %v185 = vpop.permute.xlu0 %184
      %v187 = vmul.f32 %v169, %v185
      %s188 = smul.u32 %s64, 2
      %s189 = smul.u32 %s188, 2
      %s190 = scalar_lea.vmem %s0, %s189
      %v191 = vld [vmem:[%s190] sm:$0x3]
      %s192 = sadd.s32 %s188, 1
      %s193 = smul.u32 %s192, 2
      %s194 = scalar_lea.vmem %s0, %s193
      %v195 = vld [vmem:[%s194] sm:$0x3]
      %v197 = vsel %vm73, %v195, 0
      %199 = vmatpush.msra.mxu0 0.0
      %200 = vmatpush.msra.mxu0 0.0
      %201 = vmatpush.msra.mxu0 0.0
      %202 = vmatpush.msra.mxu0 0.0
      %203 = vmatpush.msra.mxu0 0.0
      %204 = vmatpush.msra.mxu0 0.0
      %205 = vmatpush.msra.mxu0 0.0
      %206 = vmatpush.msra.mxu0 0.0
      %207 = vmatpush.msra.mxu0 0.0
      %208 = vmatpush.msra.mxu0 0.0
      %209 = vmatpush.msra.mxu0 0.0
      %210 = vmatpush.msra.mxu0 0.0
      %211 = vmatpush.msra.mxu0 %v53
      %212 = vmatpush.msra.mxu0 %v52
      %213 = vmatpush.msra.mxu0 %v51
      %214 = vmatpush.msra.mxu0 %v50
      %215 = vmatmul.f32.gmra.mxu0 %v197
      %v216 = vpop.f32.mrf.mxu0
      %v217 = vadd.f32 0.0, %v216
      %218 = vdwg.mxu0
      %v220 = vsel %vm73, %v191, 0
      %222 = vmatpush.msra.mxu0 0.0
      %223 = vmatpush.msra.mxu0 0.0
      %224 = vmatpush.msra.mxu0 0.0
      %225 = vmatpush.msra.mxu0 0.0
      %226 = vmatpush.msra.mxu0 0.0
      %227 = vmatpush.msra.mxu0 0.0
      %228 = vmatpush.msra.mxu0 0.0
      %229 = vmatpush.msra.mxu0 0.0
      %230 = vmatpush.msra.mxu0 0.0
      %231 = vmatpush.msra.mxu0 0.0
      %232 = vmatpush.msra.mxu0 0.0
      %233 = vmatpush.msra.mxu0 0.0
      %234 = vmatpush.msra.mxu0 %v49
      %235 = vmatpush.msra.mxu0 %v48
      %236 = vmatpush.msra.mxu0 %v47
      %237 = vmatpush.msra.mxu0 %v46
      %238 = vmatmul.f32.gmra.mxu0 %v220
      %v239 = vpop.f32.mrf.mxu0
      %v240 = vadd.f32 %v217, %v239
      %241 = vdwg.mxu0
      %243 = vrot.lane.b32.xlu0 %v62, 80
      %v244 = vpop.permute.xlu0 %243
      %v245 = vsel %vm123, %v244, 0
      %247 = vmatpush.msra.mxu0 0.0
      %248 = vmatpush.msra.mxu0 0.0
      %249 = vmatpush.msra.mxu0 0.0
      %250 = vmatpush.msra.mxu0 0.0
      %251 = vmatpush.msra.mxu0 0.0
      %252 = vmatpush.msra.mxu0 0.0
      %253 = vmatpush.msra.mxu0 0.0
      %254 = vmatpush.msra.mxu0 0.0
      %255 = vmatpush.msra.mxu0 0.0
      %256 = vmatpush.msra.mxu0 0.0
      %257 = vmatpush.msra.mxu0 0.0
      %258 = vmatpush.msra.mxu0 0.0
      %259 = vmatpush.msra.mxu0 0.0
      %260 = vmatpush.msra.mxu0 0.0
      %261 = vmatpush.msra.mxu0 %v36
      %262 = vmatpush.msra.mxu0 %v35
      %263 = vmatmul.f32.gmra.mxu0 %v245
      %v264 = vpop.f32.mrf.mxu0
      %v265 = vadd.f32 0.0, %v264
      %266 = vdwg.mxu0
      %v267 = vadd.f32 %v240, %v265
      %v269 = vperm.slane %v37, 0
      %v271 = vadd.f32 %v267, %v269
      %v272 = vxor.u32 %v271, 2147483648
      %v273 = vmul.f32 %v272, 1.442695
      %v274 = vpow.pop %v273
      %v275 = vadd.f32 %v274, 1.0
      %v276 = vrcp.pop %v275
      %v277 = vmul.f32 %v275, %v276
      %v278 = vsub.f32 1.0, %v277
      %v279 = vmul.f32 %v276, %v278
      %v280 = vadd.f32 %v276, %v279
      %vm281 = vweird.f32 %v275
      %vm282 = vweird.f32 %v276
      %vm283 = vmor %vm281, %vm282
      %v284 = vsel %vm283, %v276, %v280
      %v285 = vand.u32 2147483647, %v275
      %vm286 = vcmp.eq.f32.partialorder %v285, 8.507059e+37
      %v287 = vand.u32 %v275, 2147483648
      %v288 = vor.u32 1.1754944e-38, %v287
      %v289 = vsel %vm286, %v288, %v284
      %v290 = vmul.f32 1.0, %v289
      %v291 = vtanh.pop %v271
      %v292 = vmul.f32 %v290, %v63
      %294 = vrot.lane.b32.xlu0 %v291, 96
      %v295 = vpop.permute.xlu0 %294
      %v297 = vmul.f32 %v290, %v295
      %299 = vrot.lane.b32.xlu0 %v297, 16
      %v300 = vpop.permute.xlu0 %299
      %v302 = vadd.f32 %v292, %v300
      %v303 = vtanh.pop %v302
      %305 = vrot.lane.b32.xlu0 %v303, 32
      %v306 = vpop.permute.xlu0 %305
      %v308 = vmul.f32 %v290, %v306
      %310 = vrot.lane.b32.xlu0 %v187, 80
      %v311 = vpop.permute.xlu0 %310
      %s313 = scalar_lea.vmem %s7, %s65
      %vm314 = vcmask 123904
      %315 = vst.msk [vmem:[%s313] sm:$0x3] %vm314, %v311
      %317 = vrot.lane.b32.xlu0 %v308, 80
      %v318 = vpop.permute.xlu0 %317
      %s320 = scalar_lea.vmem %s8, %s188
      %321 = vst.msk [vmem:[%s320] sm:$0x3] %vm314, %v318
    $region34: #{_lambda_.6} parent=1 // loop_footer
      %s59 = sadd.s32 1, %s55
    $region35: #{_lambda_.6} parent=1 // loop_footer_branch
      %54 = sbr.rel target = $region31
    $region36: #{_lambda_.6} parent=1 // loop_exit
      _
    %323 = vrot.lane.b32.xlu0 %v60, 80
    %v324 = vpop.permute.xlu0 %323
    %vm326 = vcmask 123904
    %327 = vst.msk [vmem:[#allocation2] sm:$0x3] %vm326, %v324
    %329 = vrot.lane.b32.xlu0 %v62, 80
    %v330 = vpop.permute.xlu0 %329
    %s332 = scalar_lea.vmem [#allocation2], 2
    %333 = vst.msk [vmem:[%s332] sm:$0x3] %vm326, %v330
    %335 = vrot.lane.b32.xlu0 %v61, 112
    %v336 = vpop.permute.xlu0 %335
    %338 = vst.msk [vmem:[#allocation4] sm:$0x3] %vm326, %v336
    %340 = vrot.lane.b32.xlu0 %v63, 112
    %v341 = vpop.permute.xlu0 %340
    %s343 = scalar_lea.vmem [#allocation4], 2
    %344 = vst.msk [vmem:[%s343] sm:$0x3] %vm326, %v341
    // Predicated region
    $region37: #{_lambda_.6} parent=1 // pred_check
      _
    $region38: #{_lambda_.6} parent=1 // pred_check_branch
      %346 = sbr.rel (0) target = $region40
    $region39: #{_lambda_.6} parent=1 // pred_region
      _
    $region40: #{_lambda_.6} parent=1 // pred_fallthru
      _
    // Predicated region
    $region41: #{_lambda_.6} parent=1 // pred_check
      _
    $region42: #{_lambda_.6} parent=1 // pred_check_branch
      %348 = sbr.rel (0) target = $region44
    $region43: #{_lambda_.6} parent=1 // pred_region
      _
    $region44: #{_lambda_.6} parent=1 // pred_fallthru
      _
    // Predicated region
    $region45: #{_lambda_.6} parent=1 // pred_check
      _
    $region46: #{_lambda_.6} parent=1 // pred_check_branch
      %350 = sbr.rel (0) target = $region48
    $region47: #{_lambda_.6} parent=1 // pred_region
      %352 = vsyncadd [#allocation3], 0
      %s353 = sshll.u32 [#allocation2], 4
      %s354 = int_to_ptr.vmem [resolvable:$true] %s353
      %s355 = sshll.u32 %s9, 4
      %s356 = int_to_ptr.hbm [resolvable:$true] %s355
      %361 = dma.vmem_to_hbm [thread:$0]  %s354, 64, %s356, [#allocation3], 32, 32, 2
    $region48: #{_lambda_.6} parent=1 // pred_fallthru
      _
    // Predicated region
    $region49: #{_lambda_.6} parent=1 // pred_check
      _
    $region50: #{_lambda_.6} parent=1 // pred_check_branch
      %363 = sbr.rel (0) target = $region52
    $region51: #{_lambda_.6} parent=1 // pred_region
      %365 = vsyncadd [#allocation5], 0
      %s366 = sshll.u32 [#allocation4], 4
      %s367 = int_to_ptr.vmem [resolvable:$true] %s366
      %s368 = sshll.u32 %s10, 4
      %s369 = int_to_ptr.hbm [resolvable:$true] %s368
      %374 = dma.vmem_to_hbm [thread:$0]  %s367, 64, %s369, [#allocation5], 32, 32, 2
    $region52: #{_lambda_.6} parent=1 // pred_fallthru
      _
    // Predicated region
    $region53: #{_lambda_.6} parent=1 // pred_check
      _
    $region54: #{_lambda_.6} parent=1 // pred_check_branch
      %376 = sbr.rel (0) target = $region56
    $region55: #{_lambda_.6} parent=1 // pred_region
      _
    $region56: #{_lambda_.6} parent=1 // pred_fallthru
      _
    // Predicated region
    $region57: #{_lambda_.6} parent=1 // pred_check
      _
    $region58: #{_lambda_.6} parent=1 // pred_check_branch
      %378 = sbr.rel (0) target = $region60
    $region59: #{_lambda_.6} parent=1 // pred_region
      _
    $region60: #{_lambda_.6} parent=1 // pred_fallthru
      _
    // Predicated region
    $region61: #{_lambda_.6} parent=1 // pred_check
      _
    $region62: #{_lambda_.6} parent=1 // pred_check_branch
      %380 = sbr.rel (0) target = $region64
    $region63: #{_lambda_.6} parent=1 // pred_region
      %382 = dma.done [#allocation3], 64
    $region64: #{_lambda_.6} parent=1 // pred_fallthru
      _
    // Predicated region
    $region65: #{_lambda_.6} parent=1 // pred_check
      _
    $region66: #{_lambda_.6} parent=1 // pred_check_branch
      %384 = sbr.rel (0) target = $region68
    $region67: #{_lambda_.6} parent=1 // pred_region
      %386 = dma.done [#allocation5], 64
    $region68: #{_lambda_.6} parent=1 // pred_fallthru
      _
    %387 = vsyncpa [#allocation3], 1
    %388 = vsyncpa [#allocation5], 1

// kernel: _lambda_.5
$region0: #{_lambda_.5}
  #allocation0 [shape = 'u32[]', space=smem, size = 0x4, offset = 0x4, fixed_abs, tag = 'smem constant byte address 0x4 - core index']
  #allocation1 [shape = 'u32[72,128]{1,0:T(1,128)}', space=vmem, size = 0x9000, scoped, tag = 'internal scratch']
  %s0 = inlined_call_operand.vmem [shape: f32[2,16,8], index: 0, kind: input, shape index: {}]
  %s1 = inlined_call_operand.hbm [shape: f32[8,64], index: 1, kind: input, shape index: {}]
  %s2 = inlined_call_operand.vmem [shape: f32[16,64], index: 2, kind: input, shape index: {}]
  %s3 = inlined_call_operand.vmem [shape: f32[1,64], index: 3, kind: input, shape index: {}]
  %s4 = inlined_call_operand.hbm [shape: f32[8,64], index: 4, kind: input, shape index: {}]
  %s5 = inlined_call_operand.vmem [shape: f32[16,64], index: 5, kind: input, shape index: {}]
  %s6 = inlined_call_operand.vmem [shape: f32[1,64], index: 6, kind: input, shape index: {}]
  %s7 = inlined_call_operand.vmem [shape: f32[2,16,16], index: 7, kind: output, shape index: {0}]
  %s8 = inlined_call_operand.vmem [shape: f32[2,16,16], index: 8, kind: output, shape index: {1}]
  %s9 = inlined_call_operand.hbm [shape: f32[2,16,16], index: 9, kind: output, shape index: {2}]
  %s10 = inlined_call_operand.hbm [shape: f32[2,16,16], index: 10, kind: output, shape index: {3}]
  %11 = xla_tuple %s7, %s8, %s9, %s10
  %s12 = sld [smem:[#allocation0]]
  $region77: #{_lambda_.5} parent=0
    _
  %s14 = ssub.s32 1, %s12
  %s15 = scalar_select 0, %s14, %s12
  $region1: #{_lambda_.5} parent=0
    #allocation2 [shape = 'u8[4096]{0}', space=vmem, size = 0x1000, scoped, tag = 'input window, operand 1, single buffered']
    #allocation3 [shape = 's32[1]{0}', space=sflag, size = 0x4, scoped, tag = 'scoped memory for _lambda_.5']
    #allocation4 [shape = 's32[1]{0}', space=sflag, size = 0x4, scoped, tag = 'scoped memory for _lambda_.5']
    #allocation5 [shape = 'u8[4096]{0}', space=vmem, size = 0x1000, scoped, tag = 'input window, operand 4, single buffered']
    #allocation6 [shape = 's32[1]{0}', space=sflag, size = 0x4, scoped, tag = 'scoped memory for _lambda_.5']
    #allocation7 [shape = 'u8[16384]{0}', space=vmem, size = 0x4000, scoped, tag = 'output window, operand 2, single buffered']
    #allocation8 [shape = 'u8[16384]{0}', space=vmem, size = 0x4000, scoped, tag = 'output window, operand 3, single buffered']
    #allocation9 [shape = 's32[1]{0}', space=sflag, size = 0x4, scoped, tag = 'scoped memory for _lambda_.5']
    %16 = vsyncpa [#allocation3], 0
    %17 = vsyncpa [#allocation6], 0
    %18 = vsyncpa [#allocation4], 0
    %19 = vsyncpa [#allocation9], 0
    // Predicated region
    $region2: #{_lambda_.5} parent=1 // pred_check
      _
    $region3: #{_lambda_.5} parent=1 // pred_check_branch
      %21 = sbr.rel (0) target = $region5
    $region4: #{_lambda_.5} parent=1 // pred_region
      _
    $region5: #{_lambda_.5} parent=1 // pred_fallthru
      _
    // Predicated region
    $region6: #{_lambda_.5} parent=1 // pred_check
      _
    $region7: #{_lambda_.5} parent=1 // pred_check_branch
      %23 = sbr.rel (0) target = $region9
    $region8: #{_lambda_.5} parent=1 // pred_region
      %25 = vsyncadd [#allocation3], 0
      %s27 = sshll.u32 %s1, 4
      %s28 = int_to_ptr.hbm [resolvable:$true] %s27
      %s29 = sshll.u32 [#allocation2], 4
      %s30 = int_to_ptr.vmem [resolvable:$true] %s29
      %32 = dma.hbm_to_vmem [thread:$0]  %s28, 128, %s30, [#allocation3]
    $region9: #{_lambda_.5} parent=1 // pred_fallthru
      _
    // Predicated region
    $region10: #{_lambda_.5} parent=1 // pred_check
      _
    $region11: #{_lambda_.5} parent=1 // pred_check_branch
      %34 = sbr.rel (0) target = $region13
    $region12: #{_lambda_.5} parent=1 // pred_region
      _
    $region13: #{_lambda_.5} parent=1 // pred_fallthru
      _
    // Predicated region
    $region14: #{_lambda_.5} parent=1 // pred_check
      _
    $region15: #{_lambda_.5} parent=1 // pred_check_branch
      %36 = sbr.rel (0) target = $region17
    $region16: #{_lambda_.5} parent=1 // pred_region
      _
    $region17: #{_lambda_.5} parent=1 // pred_fallthru
      _
    // Predicated region
    $region18: #{_lambda_.5} parent=1 // pred_check
      _
    $region19: #{_lambda_.5} parent=1 // pred_check_branch
      %38 = sbr.rel (0) target = $region21
    $region20: #{_lambda_.5} parent=1 // pred_region
      %40 = vsyncadd [#allocation6], 0
      %s42 = sshll.u32 %s4, 4
      %s43 = int_to_ptr.hbm [resolvable:$true] %s42
      %s44 = sshll.u32 [#allocation5], 4
      %s45 = int_to_ptr.vmem [resolvable:$true] %s44
      %47 = dma.hbm_to_vmem [thread:$0]  %s43, 128, %s45, [#allocation6]
    $region21: #{_lambda_.5} parent=1 // pred_fallthru
      _
    // Predicated region
    $region22: #{_lambda_.5} parent=1 // pred_check
      _
    $region23: #{_lambda_.5} parent=1 // pred_check_branch
      %49 = sbr.rel (0) target = $region25
    $region24: #{_lambda_.5} parent=1 // pred_region
      _
    $region25: #{_lambda_.5} parent=1 // pred_fallthru
      _
    // Predicated region
    $region26: #{_lambda_.5} parent=1 // pred_check
      _
    $region27: #{_lambda_.5} parent=1 // pred_check_branch
      %51 = sbr.rel (0) target = $region29
    $region28: #{_lambda_.5} parent=1 // pred_region
      _
    $region29: #{_lambda_.5} parent=1 // pred_fallthru
      _
    // Predicated region
    $region30: #{_lambda_.5} parent=1 // pred_check
      _
    $region31: #{_lambda_.5} parent=1 // pred_check_branch
      %53 = sbr.rel (0) target = $region33
    $region32: #{_lambda_.5} parent=1 // pred_region
      %55 = dma.done [#allocation3], 128
    $region33: #{_lambda_.5} parent=1 // pred_fallthru
      _
    // Predicated region
    $region34: #{_lambda_.5} parent=1 // pred_check
      _
    $region35: #{_lambda_.5} parent=1 // pred_check_branch
      %57 = sbr.rel (0) target = $region37
    $region36: #{_lambda_.5} parent=1 // pred_region
      %59 = dma.done [#allocation6], 128
    $region37: #{_lambda_.5} parent=1 // pred_fallthru
      _
    %v60 = vld [vmem:[%s2] sm:$0xff]
    %v61 = vld [vmem:[%s2 + $0x8] sm:$0xff]
    %v62 = vld [vmem:[%s3] sm:$0x1]
    %v63 = vld [vmem:[%s5] sm:$0xff]
    %v64 = vld [vmem:[%s5 + $0x8] sm:$0xff]
    %v65 = vld [vmem:[%s6] sm:$0x1]
    %v66 = vld [vmem:[#allocation2] sm:$0xff]
    %v67 = vld [vmem:[#allocation5] sm:$0xff]
    loop: start=0, step=1, limit=2
    $region38: #{_lambda_.5} parent=1 // loop_pre_header
      _
    $region39: #{_lambda_.5} parent=1 // loop_header
      %s69 = sphi 0, %s73
      %p70 = scmp.ge.s32.totalorder %s69, 2
      %v74 = vphi 0.0, %v228
      %v75 = vphi 0.0, %v229
      %v76 = vphi 0.0, %v216
      %v77 = vphi 0.0, %v217
      %v78 = vphi 0.0, %v373
      %v79 = vphi 0.0, %v374
      %v80 = vphi 0.0, %v361
      %v81 = vphi 0.0, %v362
    $region40: #{_lambda_.5} parent=1 // loop_header_branch
      %72 = sbr.rel (%p70) target = $region44
    $region41: #{_lambda_.5} parent=1 // loop_body
      %s82 = ssub.s32 1, %s69
      %s83 = smul.u32 %s69, 16
      %s84 = scalar_lea.vmem %s0, %s83
      %v85 = vld [vmem:[%s84] sm:$0xff]
      %v86 = vld [vmem:[%s84 + $0x8] sm:$0xff]
      %89 = vrot.lane.b32.xlu0 %v74, 80
      %v90 = vpop.permute.xlu0 %89
      %91 = vrot.lane.b32.xlu0 %v75, 80
      %v92 = vpop.permute.xlu0 %91
      %vm93 = vcmask 130048
      %v94 = vsel %vm93, %v90, 0
      %v96 = vsel %vm93, %v92, 0
      %98 = vmatpush.msra.mxu0 0.0
      %99 = vmatpush.msra.mxu0 0.0
      %100 = vmatpush.msra.mxu0 0.0
      %101 = vmatpush.msra.mxu0 0.0
      %102 = vmatpush.msra.mxu0 0.0
      %103 = vmatpush.msra.mxu0 0.0
      %104 = vmatpush.msra.mxu0 0.0
      %105 = vmatpush.msra.mxu0 0.0
      %106 = vmatpush.msra.mxu0 0.0
      %107 = vmatpush.msra.mxu0 0.0
      %108 = vmatpush.msra.mxu0 0.0
      %109 = vmatpush.msra.mxu0 0.0
      %110 = vmatpush.msra.mxu0 0.0
      %111 = vmatpush.msra.mxu0 0.0
      %112 = vmatpush.msra.mxu0 %v61
      %113 = vmatpush.msra.mxu0 %v60
      %114 = vmatmul.f32.gmra.mxu0 %v94
      %v115 = vpop.f32.mrf.mxu0
      %v116 = vadd.f32 0.0, %v115
      %117 = vmatmul.f32.gmra.mxu0 %v96
      %v118 = vpop.f32.mrf.mxu0
      %v119 = vadd.f32 0.0, %v118
      %120 = vdwg.mxu0
      %vm121 = vcmask 64512
      %v123 = vsel %vm121, %v85, 0
      %v126 = vsel %vm121, %v86, 0
      %128 = vmatpush.msra.mxu0 0.0
      %129 = vmatpush.msra.mxu0 0.0
      %130 = vmatpush.msra.mxu0 0.0
      %131 = vmatpush.msra.mxu0 0.0
      %132 = vmatpush.msra.mxu0 0.0
      %133 = vmatpush.msra.mxu0 0.0
      %134 = vmatpush.msra.mxu0 0.0
      %135 = vmatpush.msra.mxu0 0.0
      %136 = vmatpush.msra.mxu0 0.0
      %137 = vmatpush.msra.mxu0 0.0
      %138 = vmatpush.msra.mxu0 0.0
      %139 = vmatpush.msra.mxu0 0.0
      %140 = vmatpush.msra.mxu0 0.0
      %141 = vmatpush.msra.mxu0 0.0
      %142 = vmatpush.msra.mxu0 0.0
      %143 = vmatpush.msra.mxu0 %v66
      %144 = vmatmul.f32.gmra.mxu0 %v123
      %v145 = vpop.f32.mrf.mxu0
      %v146 = vadd.f32 %v116, %v145
      %147 = vmatmul.f32.gmra.mxu0 %v126
      %v148 = vpop.f32.mrf.mxu0
      %v149 = vadd.f32 %v119, %v148
      %150 = vdwg.mxu0
      %v152 = vperm.slane %v62, 0
      %v154 = vadd.f32 %v146, %v152
      %v155 = vadd.f32 %v149, %v152
      %v156 = vxor.u32 %v154, 2147483648
      %v157 = vxor.u32 %v155, 2147483648
      %v158 = vmul.f32 %v156, 1.442695
      %v159 = vpow.pop %v158
      %v160 = vmul.f32 %v157, 1.442695
      %v161 = vpow.pop %v160
      %v162 = vadd.f32 %v159, 1.0
      %v163 = vadd.f32 %v161, 1.0
      %v164 = vrcp.pop %v162
      %v165 = vmul.f32 %v162, %v164
      %v166 = vsub.f32 1.0, %v165
      %v167 = vmul.f32 %v164, %v166
      %v168 = vadd.f32 %v164, %v167
      %vm169 = vweird.f32 %v162
      %vm170 = vweird.f32 %v164
      %vm171 = vmor %vm169, %vm170
      %v172 = vsel %vm171, %v164, %v168
      %v173 = vand.u32 2147483647, %v162
      %vm174 = vcmp.eq.f32.partialorder %v173, 8.507059e+37
      %v175 = vand.u32 %v162, 2147483648
      %v176 = vor.u32 1.1754944e-38, %v175
      %v177 = vsel %vm174, %v176, %v172
      %v178 = vmul.f32 1.0, %v177
      %v179 = vrcp.pop %v163
      %v180 = vmul.f32 %v163, %v179
      %v181 = vsub.f32 1.0, %v180
      %v182 = vmul.f32 %v179, %v181
      %v183 = vadd.f32 %v179, %v182
      %vm184 = vweird.f32 %v163
      %vm185 = vweird.f32 %v179
      %vm186 = vmor %vm184, %vm185
      %v187 = vsel %vm186, %v179, %v183
      %v188 = vand.u32 2147483647, %v163
      %vm189 = vcmp.eq.f32.partialorder %v188, 8.507059e+37
      %v190 = vand.u32 %v163, 2147483648
      %v191 = vor.u32 1.1754944e-38, %v190
      %v192 = vsel %vm189, %v191, %v187
      %v193 = vmul.f32 1.0, %v192
      %v194 = vtanh.pop %v154
      %v195 = vtanh.pop %v155
      %v196 = vmul.f32 %v178, %v76
      %v197 = vmul.f32 %v193, %v77
      %200 = vrot.lane.b32.xlu0 %v194, 96
      %v201 = vpop.permute.xlu0 %200
      %202 = vrot.lane.b32.xlu0 %v195, 96
      %v203 = vpop.permute.xlu0 %202
      %v206 = vmul.f32 %v178, %v201
      %v207 = vmul.f32 %v193, %v203
      %210 = vrot.lane.b32.xlu0 %v206, 16
      %v211 = vpop.permute.xlu0 %210
      %212 = vrot.lane.b32.xlu0 %v207, 16
      %v213 = vpop.permute.xlu0 %212
      %v216 = vadd.f32 %v196, %v211
      %v217 = vadd.f32 %v197, %v213
      %v218 = vtanh.pop %v216
      %v219 = vtanh.pop %v217
      %222 = vrot.lane.b32.xlu0 %v218, 32
      %v223 = vpop.permute.xlu0 %222
      %224 = vrot.lane.b32.xlu0 %v219, 32
      %v225 = vpop.permute.xlu0 %224
      %v228 = vmul.f32 %v178, %v223
      %v229 = vmul.f32 %v193, %v225
      %s230 = smul.u32 %s82, 16
      %s231 = scalar_lea.vmem %s0, %s230
      %v232 = vld [vmem:[%s231] sm:$0xff]
      %v233 = vld [vmem:[%s231 + $0x8] sm:$0xff]
      %236 = vrot.lane.b32.xlu0 %v78, 80
      %v237 = vpop.permute.xlu0 %236
      %238 = vrot.lane.b32.xlu0 %v79, 80
      %v239 = vpop.permute.xlu0 %238
      %v240 = vsel %vm93, %v237, 0
      %v242 = vsel %vm93, %v239, 0
      %244 = vmatpush.msra.mxu0 0.0
      %245 = vmatpush.msra.mxu0 0.0
      %246 = vmatpush.msra.mxu0 0.0
      %247 = vmatpush.msra.mxu0 0.0
      %248 = vmatpush.msra.mxu0 0.0
      %249 = vmatpush.msra.mxu0 0.0
      %250 = vmatpush.msra.mxu0 0.0
      %251 = vmatpush.msra.mxu0 0.0
      %252 = vmatpush.msra.mxu0 0.0
      %253 = vmatpush.msra.mxu0 0.0
      %254 = vmatpush.msra.mxu0 0.0
      %255 = vmatpush.msra.mxu0 0.0
      %256 = vmatpush.msra.mxu0 0.0
      %257 = vmatpush.msra.mxu0 0.0
      %258 = vmatpush.msra.mxu0 %v64
      %259 = vmatpush.msra.mxu0 %v63
      %260 = vmatmul.f32.gmra.mxu0 %v240
      %v261 = vpop.f32.mrf.mxu0
      %v262 = vadd.f32 0.0, %v261
      %263 = vmatmul.f32.gmra.mxu0 %v242
      %v264 = vpop.f32.mrf.mxu0
      %v265 = vadd.f32 0.0, %v264
      %266 = vdwg.mxu0
      %v268 = vsel %vm121, %v232, 0
      %v271 = vsel %vm121, %v233, 0
      %273 = vmatpush.msra.mxu0 0.0
      %274 = vmatpush.msra.mxu0 0.0
      %275 = vmatpush.msra.mxu0 0.0
      %276 = vmatpush.msra.mxu0 0.0
      %277 = vmatpush.msra.mxu0 0.0
      %278 = vmatpush.msra.mxu0 0.0
      %279 = vmatpush.msra.mxu0 0.0
      %280 = vmatpush.msra.mxu0 0.0
      %281 = vmatpush.msra.mxu0 0.0
      %282 = vmatpush.msra.mxu0 0.0
      %283 = vmatpush.msra.mxu0 0.0
      %284 = vmatpush.msra.mxu0 0.0
      %285 = vmatpush.msra.mxu0 0.0
      %286 = vmatpush.msra.mxu0 0.0
      %287 = vmatpush.msra.mxu0 0.0
      %288 = vmatpush.msra.mxu0 %v67
      %289 = vmatmul.f32.gmra.mxu0 %v268
      %v290 = vpop.f32.mrf.mxu0
      %v291 = vadd.f32 %v262, %v290
      %292 = vmatmul.f32.gmra.mxu0 %v271
      %v293 = vpop.f32.mrf.mxu0
      %v294 = vadd.f32 %v265, %v293
      %295 = vdwg.mxu0
      %v297 = vperm.slane %v65, 0
      %v299 = vadd.f32 %v291, %v297
      %v300 = vadd.f32 %v294, %v297
      %v301 = vxor.u32 %v299, 2147483648
      %v302 = vxor.u32 %v300, 2147483648
      %v303 = vmul.f32 %v301, 1.442695
      %v304 = vpow.pop %v303
      %v305 = vmul.f32 %v302, 1.442695
      %v306 = vpow.pop %v305
      %v307 = vadd.f32 %v304, 1.0
      %v308 = vadd.f32 %v306, 1.0
      %v309 = vrcp.pop %v307
      %v310 = vmul.f32 %v307, %v309
      %v311 = vsub.f32 1.0, %v310
      %v312 = vmul.f32 %v309, %v311
      %v313 = vadd.f32 %v309, %v312
      %vm314 = vweird.f32 %v307
      %vm315 = vweird.f32 %v309
      %vm316 = vmor %vm314, %vm315
      %v317 = vsel %vm316, %v309, %v313
      %v318 = vand.u32 2147483647, %v307
      %vm319 = vcmp.eq.f32.partialorder %v318, 8.507059e+37
      %v320 = vand.u32 %v307, 2147483648
      %v321 = vor.u32 1.1754944e-38, %v320
      %v322 = vsel %vm319, %v321, %v317
      %v323 = vmul.f32 1.0, %v322
      %v324 = vrcp.pop %v308
      %v325 = vmul.f32 %v308, %v324
      %v326 = vsub.f32 1.0, %v325
      %v327 = vmul.f32 %v324, %v326
      %v328 = vadd.f32 %v324, %v327
      %vm329 = vweird.f32 %v308
      %vm330 = vweird.f32 %v324
      %vm331 = vmor %vm329, %vm330
      %v332 = vsel %vm331, %v324, %v328
      %v333 = vand.u32 2147483647, %v308
      %vm334 = vcmp.eq.f32.partialorder %v333, 8.507059e+37
      %v335 = vand.u32 %v308, 2147483648
      %v336 = vor.u32 1.1754944e-38, %v335
      %v337 = vsel %vm334, %v336, %v332
      %v338 = vmul.f32 1.0, %v337
      %v339 = vtanh.pop %v299
      %v340 = vtanh.pop %v300
      %v341 = vmul.f32 %v323, %v80
      %v342 = vmul.f32 %v338, %v81
      %345 = vrot.lane.b32.xlu0 %v339, 96
      %v346 = vpop.permute.xlu0 %345
      %347 = vrot.lane.b32.xlu0 %v340, 96
      %v348 = vpop.permute.xlu0 %347
      %v351 = vmul.f32 %v323, %v346
      %v352 = vmul.f32 %v338, %v348
      %355 = vrot.lane.b32.xlu0 %v351, 16
      %v356 = vpop.permute.xlu0 %355
      %357 = vrot.lane.b32.xlu0 %v352, 16
      %v358 = vpop.permute.xlu0 %357
      %v361 = vadd.f32 %v341, %v356
      %v362 = vadd.f32 %v342, %v358
      %v363 = vtanh.pop %v361
      %v364 = vtanh.pop %v362
      %367 = vrot.lane.b32.xlu0 %v363, 32
      %v368 = vpop.permute.xlu0 %367
      %369 = vrot.lane.b32.xlu0 %v364, 32
      %v370 = vpop.permute.xlu0 %369
      %v373 = vmul.f32 %v323, %v368
      %v374 = vmul.f32 %v338, %v370
      %377 = vrot.lane.b32.xlu0 %v228, 80
      %v378 = vpop.permute.xlu0 %377
      %379 = vrot.lane.b32.xlu0 %v229, 80
      %v380 = vpop.permute.xlu0 %379
      %s383 = scalar_lea.vmem %s7, %s83
      %384 = vst.msk [vmem:[%s383] sm:$0xff] %vm93, %v378
      %385 = vst.msk [vmem:[%s383 + $0x8] sm:$0xff] %vm93, %v380
      %388 = vrot.lane.b32.xlu0 %v373, 80
      %v389 = vpop.permute.xlu0 %388
      %390 = vrot.lane.b32.xlu0 %v374, 80
      %v391 = vpop.permute.xlu0 %390
      %s394 = scalar_lea.vmem %s8, %s230
      %395 = vst.msk [vmem:[%s394] sm:$0xff] %vm93, %v389
      %396 = vst.msk [vmem:[%s394 + $0x8] sm:$0xff] %vm93, %v391
    $region42: #{_lambda_.5} parent=1 // loop_footer
      %s73 = sadd.s32 1, %s69
    $region43: #{_lambda_.5} parent=1 // loop_footer_branch
      %68 = sbr.rel target = $region39
    $region44: #{_lambda_.5} parent=1 // loop_exit
      _
    %399 = vrot.lane.b32.xlu0 %v74, 80
    %v400 = vpop.permute.xlu0 %399
    %401 = vrot.lane.b32.xlu0 %v75, 80
    %v402 = vpop.permute.xlu0 %401
    %vm405 = vcmask 130048
    %406 = vst.msk [vmem:[#allocation7] sm:$0xff] %vm405, %v400
    %407 = vst.msk [vmem:[#allocation7 + $0x8] sm:$0xff] %vm405, %v402
    %410 = vrot.lane.b32.xlu0 %v78, 80
    %v411 = vpop.permute.xlu0 %410
    %412 = vrot.lane.b32.xlu0 %v79, 80
    %v413 = vpop.permute.xlu0 %412
    %s416 = scalar_lea.vmem [#allocation7], 16
    %417 = vst.msk [vmem:[%s416] sm:$0xff] %vm405, %v411
    %418 = vst.msk [vmem:[%s416 + $0x8] sm:$0xff] %vm405, %v413
    %421 = vrot.lane.b32.xlu0 %v76, 112
    %v422 = vpop.permute.xlu0 %421
    %423 = vrot.lane.b32.xlu0 %v77, 112
    %v424 = vpop.permute.xlu0 %423
    %427 = vst.msk [vmem:[#allocation8] sm:$0xff] %vm405, %v422
    %428 = vst.msk [vmem:[#allocation8 + $0x8] sm:$0xff] %vm405, %v424
    %431 = vrot.lane.b32.xlu0 %v80, 112
    %v432 = vpop.permute.xlu0 %431
    %433 = vrot.lane.b32.xlu0 %v81, 112
    %v434 = vpop.permute.xlu0 %433
    %s437 = scalar_lea.vmem [#allocation8], 16
    %438 = vst.msk [vmem:[%s437] sm:$0xff] %vm405, %v432
    %439 = vst.msk [vmem:[%s437 + $0x8] sm:$0xff] %vm405, %v434
    // Predicated region
    $region45: #{_lambda_.5} parent=1 // pred_check
      _
    $region46: #{_lambda_.5} parent=1 // pred_check_branch
      %441 = sbr.rel (0) target = $region48
    $region47: #{_lambda_.5} parent=1 // pred_region
      _
    $region48: #{_lambda_.5} parent=1 // pred_fallthru
      _
    // Predicated region
    $region49: #{_lambda_.5} parent=1 // pred_check
      _
    $region50: #{_lambda_.5} parent=1 // pred_check_branch
      %443 = sbr.rel (0) target = $region52
    $region51: #{_lambda_.5} parent=1 // pred_region
      _
    $region52: #{_lambda_.5} parent=1 // pred_fallthru
      _
    // Predicated region
    $region53: #{_lambda_.5} parent=1 // pred_check
      _
    $region54: #{_lambda_.5} parent=1 // pred_check_branch
      %445 = sbr.rel (0) target = $region56
    $region55: #{_lambda_.5} parent=1 // pred_region
      %447 = vsyncadd [#allocation4], 0
      %s448 = sshll.u32 [#allocation7], 4
      %s449 = int_to_ptr.vmem [resolvable:$true] %s448
      %s450 = sshll.u32 %s9, 4
      %s451 = int_to_ptr.hbm [resolvable:$true] %s450
      %456 = dma.vmem_to_hbm [thread:$0]  %s449, 512, %s451, [#allocation4], 128, 128, 8
    $region56: #{_lambda_.5} parent=1 // pred_fallthru
      _
    // Predicated region
    $region57: #{_lambda_.5} parent=1 // pred_check
      _
    $region58: #{_lambda_.5} parent=1 // pred_check_branch
      %458 = sbr.rel (0) target = $region60
    $region59: #{_lambda_.5} parent=1 // pred_region
      %460 = vsyncadd [#allocation9], 0
      %s461 = sshll.u32 [#allocation8], 4
      %s462 = int_to_ptr.vmem [resolvable:$true] %s461
      %s463 = sshll.u32 %s10, 4
      %s464 = int_to_ptr.hbm [resolvable:$true] %s463
      %469 = dma.vmem_to_hbm [thread:$0]  %s462, 512, %s464, [#allocation9], 128, 128, 8
    $region60: #{_lambda_.5} parent=1 // pred_fallthru
      _
    // Predicated region
    $region61: #{_lambda_.5} parent=1 // pred_check
      _
    $region62: #{_lambda_.5} parent=1 // pred_check_branch
      %471 = sbr.rel (0) target = $region64
    $region63: #{_lambda_.5} parent=1 // pred_region
      _
    $region64: #{_lambda_.5} parent=1 // pred_fallthru
      _
    // Predicated region
    $region65: #{_lambda_.5} parent=1 // pred_check
      _
    $region66: #{_lambda_.5} parent=1 // pred_check_branch
      %473 = sbr.rel (0) target = $region68
    $region67: #{_lambda_.5} parent=1 // pred_region
      _
    $region68: #{_lambda_.5} parent=1 // pred_fallthru
      _
    // Predicated region
    $region69: #{_lambda_.5} parent=1 // pred_check
      _
    $region70: #{_lambda_.5} parent=1 // pred_check_branch
      %475 = sbr.rel (0) target = $region72
    $region71: #{_lambda_.5} parent=1 // pred_region
      %477 = dma.done [#allocation4], 512
    $region72: #{_lambda_.5} parent=1 // pred_fallthru
      _
    // Predicated region
    $region73: #{_lambda_.5} parent=1 // pred_check
      _
    $region74: #{_lambda_.5} parent=1 // pred_check_branch
      %479 = sbr.rel (0) target = $region76
    $region75: #{_lambda_.5} parent=1 // pred_region
      %481 = dma.done [#allocation9], 512
    $region76: #{_lambda_.5} parent=1 // pred_fallthru
      _
    %482 = vsyncpa [#allocation3], 1
    %483 = vsyncpa [#allocation6], 1
    %484 = vsyncpa [#allocation4], 1
    %485 = vsyncpa [#allocation9], 1

// kernel: _lambda_.8
$region0: #{_lambda_.8}
  #allocation0 [shape = 'u32[]', space=smem, size = 0x4, offset = 0x4, fixed_abs, tag = 'smem constant byte address 0x4 - core index']
  #allocation1 [shape = 'u32[72,128]{1,0:T(1,128)}', space=vmem, size = 0x9000, scoped, tag = 'internal scratch']
  %s0 = inlined_call_operand.vmem [shape: f32[8,32], index: 0, kind: input, shape index: {}]
  %s1 = inlined_call_operand.vmem [shape: f32[32,32], index: 1, kind: input, shape index: {}]
  %s2 = inlined_call_operand.vmem [shape: f32[1,32], index: 2, kind: input, shape index: {}]
  %s3 = inlined_call_operand.vmem [shape: f32[8,32], index: 3, kind: output, shape index: {}]
  %s4 = sld [smem:[#allocation0]]
  $region22: #{_lambda_.8} parent=0
    _
  %s6 = ssub.s32 1, %s4
  %s7 = scalar_select 0, %s6, %s4
  // Predicated region
  $region2: #{_lambda_.8} parent=0 // pred_check
    _
  $region3: #{_lambda_.8} parent=0 // pred_check_branch
    %9 = sbr.rel (0) target = $region5
  $region4: #{_lambda_.8} parent=0 // pred_region
    _
  $region5: #{_lambda_.8} parent=0 // pred_fallthru
    _
  // Predicated region
  $region6: #{_lambda_.8} parent=0 // pred_check
    _
  $region7: #{_lambda_.8} parent=0 // pred_check_branch
    %11 = sbr.rel (0) target = $region9
  $region8: #{_lambda_.8} parent=0 // pred_region
    _
  $region9: #{_lambda_.8} parent=0 // pred_fallthru
    _
  // Predicated region
  $region10: #{_lambda_.8} parent=0 // pred_check
    _
  $region11: #{_lambda_.8} parent=0 // pred_check_branch
    %13 = sbr.rel (0) target = $region13
  $region12: #{_lambda_.8} parent=0 // pred_region
    _
  $region13: #{_lambda_.8} parent=0 // pred_fallthru
    _
  %v14 = vld [vmem:[%s0] sm:$0xff]
  %v15 = vld [vmem:[%s1] sm:$0xff]
  %v16 = vld [vmem:[%s1 + $0x8] sm:$0xff]
  %v17 = vld [vmem:[%s1 + $0x10] sm:$0xff]
  %v18 = vld [vmem:[%s1 + $0x18] sm:$0xff]
  %v19 = vld [vmem:[%s2] sm:$0x1]
  %v21 = vperm.slane %v19, 0
  %vm23 = vcmask 261120
  %v25 = vsel %vm23, %v14, 0
  %27 = vmatpush.msra.mxu0 0.0
  %28 = vmatpush.msra.mxu0 0.0
  %29 = vmatpush.msra.mxu0 0.0
  %30 = vmatpush.msra.mxu0 0.0
  %31 = vmatpush.msra.mxu0 0.0
  %32 = vmatpush.msra.mxu0 0.0
  %33 = vmatpush.msra.mxu0 0.0
  %34 = vmatpush.msra.mxu0 0.0
  %35 = vmatpush.msra.mxu0 0.0
  %36 = vmatpush.msra.mxu0 0.0
  %37 = vmatpush.msra.mxu0 0.0
  %38 = vmatpush.msra.mxu0 0.0
  %39 = vmatpush.msra.mxu0 %v18
  %40 = vmatpush.msra.mxu0 %v17
  %41 = vmatpush.msra.mxu0 %v16
  %42 = vmatpush.msra.mxu0 %v15
  %43 = vmatmul.f32.gmra.mxu0 %v25
  %v44 = vpop.f32.mrf.mxu0
  %v45 = vadd.f32 %v21, %v44
  %46 = vdwg.mxu0
  %47 = vst.msk [vmem:[%s3] sm:$0xff] %vm23, %v45
  // Predicated region
  $region14: #{_lambda_.8} parent=0 // pred_check
    _
  $region15: #{_lambda_.8} parent=0 // pred_check_branch
    %49 = sbr.rel (0) target = $region17
  $region16: #{_lambda_.8} parent=0 // pred_region
    _
  $region17: #{_lambda_.8} parent=0 // pred_fallthru
    _
  // Predicated region
  $region18: #{_lambda_.8} parent=0 // pred_check
    _
  $region19: #{_lambda_.8} parent=0 // pred_check_branch
    %51 = sbr.rel (0) target = $region21
  $region20: #{_lambda_.8} parent=0 // pred_region
    _
  $region21: #{_lambda_.8} parent=0 // pred_fallthru
    _

// kernel: _lambda_.7
$region0: #{_lambda_.7}
  #allocation0 [shape = 'u32[]', space=smem, size = 0x4, offset = 0x4, fixed_abs, tag = 'smem constant byte address 0x4 - core index']
  #allocation1 [shape = 'u32[72,128]{1,0:T(1,128)}', space=vmem, size = 0x9000, scoped, tag = 'internal scratch']
  %s0 = inlined_call_operand.vmem [shape: f32[8,2,32], index: 0, kind: input, shape index: {}]
  %s1 = inlined_call_operand.vmem [shape: f32[64,64], index: 1, kind: input, shape index: {}]
  %s2 = inlined_call_operand.vmem [shape: f32[16,64], index: 2, kind: input, shape index: {}]
  %s3 = inlined_call_operand.vmem [shape: f32[1,64], index: 3, kind: input, shape index: {}]
  %s4 = inlined_call_operand.vmem [shape: f32[64,64], index: 4, kind: input, shape index: {}]
  %s5 = inlined_call_operand.hbm [shape: f32[16,64], index: 5, kind: input, shape index: {}]
  %s6 = inlined_call_operand.hbm [shape: f32[1,64], index: 6, kind: input, shape index: {}]
  %s7 = inlined_call_operand.vmem [shape: f32[4,2,16], index: 7, kind: output, shape index: {0}]
  %s8 = inlined_call_operand.vmem [shape: f32[4,2,16], index: 8, kind: output, shape index: {1}]
  %s9 = inlined_call_operand.vmem [shape: f32[2,2,16], index: 9, kind: output, shape index: {2}]
  %s10 = inlined_call_operand.vmem [shape: f32[2,2,16], index: 10, kind: output, shape index: {3}]
  %11 = xla_tuple %s7, %s8, %s9, %s10
  %s12 = sld [smem:[#allocation0]]
  $region77: #{_lambda_.7} parent=0
    _
  %s14 = ssub.s32 1, %s12
  %s15 = scalar_select 0, %s14, %s12
  $region1: #{_lambda_.7} parent=0
    #allocation2 [shape = 'u8[8192]{0}', space=vmem, size = 0x2000, scoped, tag = 'input window, operand 5, single buffered']
    #allocation3 [shape = 's32[1]{0}', space=sflag, size = 0x4, scoped, tag = 'scoped memory for _lambda_.7']
    #allocation4 [shape = 'u8[512]{0}', space=vmem, size = 0x400, scoped, tag = 'input window, operand 6, single buffered']
    #allocation5 [shape = 's32[1]{0}', space=sflag, size = 0x4, scoped, tag = 'scoped memory for _lambda_.7']
    %16 = vsyncpa [#allocation3], 0
    %17 = vsyncpa [#allocation5], 0
    // Predicated region
    $region2: #{_lambda_.7} parent=1 // pred_check
      _
    $region3: #{_lambda_.7} parent=1 // pred_check_branch
      %19 = sbr.rel (0) target = $region5
    $region4: #{_lambda_.7} parent=1 // pred_region
      _
    $region5: #{_lambda_.7} parent=1 // pred_fallthru
      _
    // Predicated region
    $region6: #{_lambda_.7} parent=1 // pred_check
      _
    $region7: #{_lambda_.7} parent=1 // pred_check_branch
      %21 = sbr.rel (0) target = $region9
    $region8: #{_lambda_.7} parent=1 // pred_region
      _
    $region9: #{_lambda_.7} parent=1 // pred_fallthru
      _
    // Predicated region
    $region10: #{_lambda_.7} parent=1 // pred_check
      _
    $region11: #{_lambda_.7} parent=1 // pred_check_branch
      %23 = sbr.rel (0) target = $region13
    $region12: #{_lambda_.7} parent=1 // pred_region
      _
    $region13: #{_lambda_.7} parent=1 // pred_fallthru
      _
    // Predicated region
    $region14: #{_lambda_.7} parent=1 // pred_check
      _
    $region15: #{_lambda_.7} parent=1 // pred_check_branch
      %25 = sbr.rel (0) target = $region17
    $region16: #{_lambda_.7} parent=1 // pred_region
      _
    $region17: #{_lambda_.7} parent=1 // pred_fallthru
      _
    // Predicated region
    $region18: #{_lambda_.7} parent=1 // pred_check
      _
    $region19: #{_lambda_.7} parent=1 // pred_check_branch
      %27 = sbr.rel (0) target = $region21
    $region20: #{_lambda_.7} parent=1 // pred_region
      _
    $region21: #{_lambda_.7} parent=1 // pred_fallthru
      _
    // Predicated region
    $region22: #{_lambda_.7} parent=1 // pred_check
      _
    $region23: #{_lambda_.7} parent=1 // pred_check_branch
      %29 = sbr.rel (0) target = $region25
    $region24: #{_lambda_.7} parent=1 // pred_region
      %31 = vsyncadd [#allocation3], 0
      %s32 = sshll.u32 %s5, 4
      %s33 = int_to_ptr.hbm [resolvable:$true] %s32
      %s34 = sshll.u32 [#allocation2], 4
      %s35 = int_to_ptr.vmem [resolvable:$true] %s34
      %40 = dma.hbm_to_vmem [thread:$0]  %s33, 256, %s35, [#allocation3], 128, 128, 8
    $region25: #{_lambda_.7} parent=1 // pred_fallthru
      _
    // Predicated region
    $region26: #{_lambda_.7} parent=1 // pred_check
      _
    $region27: #{_lambda_.7} parent=1 // pred_check_branch
      %42 = sbr.rel (0) target = $region29
    $region28: #{_lambda_.7} parent=1 // pred_region
      %44 = vsyncadd [#allocation5], 0
      %s46 = sshll.u32 %s6, 4
      %s47 = int_to_ptr.hbm [resolvable:$true] %s46
      %s48 = sshll.u32 [#allocation4], 4
      %s49 = int_to_ptr.vmem [resolvable:$true] %s48
      %51 = dma.hbm_to_vmem [thread:$0]  %s47, 16, %s49, [#allocation5]
    $region29: #{_lambda_.7} parent=1 // pred_fallthru
      _
    // Predicated region
    $region30: #{_lambda_.7} parent=1 // pred_check
      _
    $region31: #{_lambda_.7} parent=1 // pred_check_branch
      %53 = sbr.rel (0) target = $region33
    $region32: #{_lambda_.7} parent=1 // pred_region
      %55 = dma.done [#allocation3], 256
    $region33: #{_lambda_.7} parent=1 // pred_fallthru
      _
    // Predicated region
    $region34: #{_lambda_.7} parent=1 // pred_check
      _
    $region35: #{_lambda_.7} parent=1 // pred_check_branch
      %57 = sbr.rel (0) target = $region37
    $region36: #{_lambda_.7} parent=1 // pred_region
      %59 = dma.done [#allocation5], 16
    $region37: #{_lambda_.7} parent=1 // pred_fallthru
      _
    %v60 = vld [vmem:[%s2] sm:$0xff]
    %v61 = vld [vmem:[%s2 + $0x8] sm:$0xff]
    %v62 = vld [vmem:[%s3] sm:$0x1]
    %v63 = vld [vmem:[#allocation2] sm:$0xff]
    %v64 = vld [vmem:[#allocation2 + $0x8] sm:$0xff]
    %v65 = vld [vmem:[#allocation4] sm:$0x1]
    %v66 = vld [vmem:[%s1] sm:$0xff]
    %v67 = vld [vmem:[%s1 + $0x8] sm:$0xff]
    %v68 = vld [vmem:[%s1 + $0x10] sm:$0xff]
    %v69 = vld [vmem:[%s1 + $0x18] sm:$0xff]
    %v70 = vld [vmem:[%s1 + $0x20] sm:$0xff]
    %v71 = vld [vmem:[%s1 + $0x28] sm:$0xff]
    %v72 = vld [vmem:[%s1 + $0x30] sm:$0xff]
    %v73 = vld [vmem:[%s1 + $0x38] sm:$0xff]
    %v74 = vld [vmem:[%s4] sm:$0xff]
    %v75 = vld [vmem:[%s4 + $0x8] sm:$0xff]
    %v76 = vld [vmem:[%s4 + $0x10] sm:$0xff]
    %v77 = vld [vmem:[%s4 + $0x18] sm:$0xff]
    %v78 = vld [vmem:[%s4 + $0x20] sm:$0xff]
    %v79 = vld [vmem:[%s4 + $0x28] sm:$0xff]
    %v80 = vld [vmem:[%s4 + $0x30] sm:$0xff]
    %v81 = vld [vmem:[%s4 + $0x38] sm:$0xff]
    loop: start=0, step=1, limit=4
    $region38: #{_lambda_.7} parent=1 // loop_pre_header
      _
    $region39: #{_lambda_.7} parent=1 // loop_header
      %s83 = sphi 0, %s87
      %p84 = scmp.ge.s32.totalorder %s83, 4
      %v88 = vphi 0.0, %v215
      %v89 = vphi 0.0, %v209
      %v90 = vphi 0.0, %v336
      %v91 = vphi 0.0, %v330
    $region40: #{_lambda_.7} parent=1 // loop_header_branch
      %86 = sbr.rel (%p84) target = $region44
    $region41: #{_lambda_.7} parent=1 // loop_body
      %s92 = ssub.s32 3, %s83
      %s93 = smul.u32 %s83, 2
      %s94 = smul.u32 %s93, 2
      %s95 = scalar_lea.vmem %s0, %s94
      %v96 = vld [vmem:[%s95] sm:$0x3]
      %s97 = sadd.s32 %s93, 1
      %s98 = smul.u32 %s97, 2
      %s99 = scalar_lea.vmem %s0, %s98
      %v100 = vld [vmem:[%s99] sm:$0x3]
      %vm101 = vcmask 261120
      %v103 = vsel %vm101, %v100, 0
      %105 = vmatpush.msra.mxu0 0.0
      %106 = vmatpush.msra.mxu0 0.0
      %107 = vmatpush.msra.mxu0 0.0
      %108 = vmatpush.msra.mxu0 0.0
      %109 = vmatpush.msra.mxu0 0.0
      %110 = vmatpush.msra.mxu0 0.0
      %111 = vmatpush.msra.mxu0 0.0
      %112 = vmatpush.msra.mxu0 0.0
      %113 = vmatpush.msra.mxu0 0.0
      %114 = vmatpush.msra.mxu0 0.0
      %115 = vmatpush.msra.mxu0 0.0
      %116 = vmatpush.msra.mxu0 0.0
      %117 = vmatpush.msra.mxu0 %v73
      %118 = vmatpush.msra.mxu0 %v72
      %119 = vmatpush.msra.mxu0 %v71
      %120 = vmatpush.msra.mxu0 %v70
      %121 = vmatmul.f32.gmra.mxu0 %v103
      %v122 = vpop.f32.mrf.mxu0
      %v123 = vadd.f32 0.0, %v122
      %124 = vdwg.mxu0
      %v126 = vsel %vm101, %v96, 0
      %128 = vmatpush.msra.mxu0 0.0
      %129 = vmatpush.msra.mxu0 0.0
      %130 = vmatpush.msra.mxu0 0.0
      %131 = vmatpush.msra.mxu0 0.0
      %132 = vmatpush.msra.mxu0 0.0
      %133 = vmatpush.msra.mxu0 0.0
      %134 = vmatpush.msra.mxu0 0.0
      %135 = vmatpush.msra.mxu0 0.0
      %136 = vmatpush.msra.mxu0 0.0
      %137 = vmatpush.msra.mxu0 0.0
      %138 = vmatpush.msra.mxu0 0.0
      %139 = vmatpush.msra.mxu0 0.0
      %140 = vmatpush.msra.mxu0 %v69
      %141 = vmatpush.msra.mxu0 %v68
      %142 = vmatpush.msra.mxu0 %v67
      %143 = vmatpush.msra.mxu0 %v66
      %144 = vmatmul.f32.gmra.mxu0 %v126
      %v145 = vpop.f32.mrf.mxu0
      %v146 = vadd.f32 %v123, %v145
      %147 = vdwg.mxu0
      %149 = vrot.lane.b32.xlu0 %v88, 80
      %v150 = vpop.permute.xlu0 %149
      %vm151 = vcmask 130048
      %v152 = vsel %vm151, %v150, 0
      %154 = vmatpush.msra.mxu0 0.0
      %155 = vmatpush.msra.mxu0 0.0
      %156 = vmatpush.msra.mxu0 0.0
      %157 = vmatpush.msra.mxu0 0.0
      %158 = vmatpush.msra.mxu0 0.0
      %159 = vmatpush.msra.mxu0 0.0
      %160 = vmatpush.msra.mxu0 0.0
      %161 = vmatpush.msra.mxu0 0.0
      %162 = vmatpush.msra.mxu0 0.0
      %163 = vmatpush.msra.mxu0 0.0
      %164 = vmatpush.msra.mxu0 0.0
      %165 = vmatpush.msra.mxu0 0.0
      %166 = vmatpush.msra.mxu0 0.0
      %167 = vmatpush.msra.mxu0 0.0
      %168 = vmatpush.msra.mxu0 %v61
      %169 = vmatpush.msra.mxu0 %v60
      %170 = vmatmul.f32.gmra.mxu0 %v152
      %v171 = vpop.f32.mrf.mxu0
      %v172 = vadd.f32 0.0, %v171
      %173 = vdwg.mxu0
      %v174 = vadd.f32 %v146, %v172
      %v176 = vperm.slane %v62, 0
      %v178 = vadd.f32 %v174, %v176
      %v179 = vxor.u32 %v178, 2147483648
      %v180 = vmul.f32 %v179, 1.442695
      %v181 = vpow.pop %v180
      %v182 = vadd.f32 %v181, 1.0
      %v183 = vrcp.pop %v182
      %v184 = vmul.f32 %v182, %v183
      %v185 = vsub.f32 1.0, %v184
      %v186 = vmul.f32 %v183, %v185
      %v187 = vadd.f32 %v183, %v186
      %vm188 = vweird.f32 %v182
      %vm189 = vweird.f32 %v183
      %vm190 = vmor %vm188, %vm189
      %v191 = vsel %vm190, %v183, %v187
      %v192 = vand.u32 2147483647, %v182
      %vm193 = vcmp.eq.f32.partialorder %v192, 8.507059e+37
      %v194 = vand.u32 %v182, 2147483648
      %v195 = vor.u32 1.1754944e-38, %v194
      %v196 = vsel %vm193, %v195, %v191
      %v197 = vmul.f32 1.0, %v196
      %v198 = vtanh.pop %v178
      %v199 = vmul.f32 %v197, %v89
      %201 = vrot.lane.b32.xlu0 %v198, 96
      %v202 = vpop.permute.xlu0 %201
      %v204 = vmul.f32 %v197, %v202
      %206 = vrot.lane.b32.xlu0 %v204, 16
      %v207 = vpop.permute.xlu0 %206
      %v209 = vadd.f32 %v199, %v207
      %v210 = vtanh.pop %v209
      %212 = vrot.lane.b32.xlu0 %v210, 32
      %v213 = vpop.permute.xlu0 %212
      %v215 = vmul.f32 %v197, %v213
      %s216 = smul.u32 %s92, 2
      %s217 = smul.u32 %s216, 2
      %s218 = scalar_lea.vmem %s0, %s217
      %v219 = vld [vmem:[%s218] sm:$0x3]
      %s220 = sadd.s32 %s216, 1
      %s221 = smul.u32 %s220, 2
      %s222 = scalar_lea.vmem %s0, %s221
      %v223 = vld [vmem:[%s222] sm:$0x3]
      %v225 = vsel %vm101, %v223, 0
      %227 = vmatpush.msra.mxu0 0.0
      %228 = vmatpush.msra.mxu0 0.0
      %229 = vmatpush.msra.mxu0 0.0
      %230 = vmatpush.msra.mxu0 0.0
      %231 = vmatpush.msra.mxu0 0.0
      %232 = vmatpush.msra.mxu0 0.0
      %233 = vmatpush.msra.mxu0 0.0
      %234 = vmatpush.msra.mxu0 0.0
      %235 = vmatpush.msra.mxu0 0.0
      %236 = vmatpush.msra.mxu0 0.0
      %237 = vmatpush.msra.mxu0 0.0
      %238 = vmatpush.msra.mxu0 0.0
      %239 = vmatpush.msra.mxu0 %v81
      %240 = vmatpush.msra.mxu0 %v80
      %241 = vmatpush.msra.mxu0 %v79
      %242 = vmatpush.msra.mxu0 %v78
      %243 = vmatmul.f32.gmra.mxu0 %v225
      %v244 = vpop.f32.mrf.mxu0
      %v245 = vadd.f32 0.0, %v244
      %246 = vdwg.mxu0
      %v248 = vsel %vm101, %v219, 0
      %250 = vmatpush.msra.mxu0 0.0
      %251 = vmatpush.msra.mxu0 0.0
      %252 = vmatpush.msra.mxu0 0.0
      %253 = vmatpush.msra.mxu0 0.0
      %254 = vmatpush.msra.mxu0 0.0
      %255 = vmatpush.msra.mxu0 0.0
      %256 = vmatpush.msra.mxu0 0.0
      %257 = vmatpush.msra.mxu0 0.0
      %258 = vmatpush.msra.mxu0 0.0
      %259 = vmatpush.msra.mxu0 0.0
      %260 = vmatpush.msra.mxu0 0.0
      %261 = vmatpush.msra.mxu0 0.0
      %262 = vmatpush.msra.mxu0 %v77
      %263 = vmatpush.msra.mxu0 %v76
      %264 = vmatpush.msra.mxu0 %v75
      %265 = vmatpush.msra.mxu0 %v74
      %266 = vmatmul.f32.gmra.mxu0 %v248
      %v267 = vpop.f32.mrf.mxu0
      %v268 = vadd.f32 %v245, %v267
      %269 = vdwg.mxu0
      %271 = vrot.lane.b32.xlu0 %v90, 80
      %v272 = vpop.permute.xlu0 %271
      %v273 = vsel %vm151, %v272, 0
      %275 = vmatpush.msra.mxu0 0.0
      %276 = vmatpush.msra.mxu0 0.0
      %277 = vmatpush.msra.mxu0 0.0
      %278 = vmatpush.msra.mxu0 0.0
      %279 = vmatpush.msra.mxu0 0.0
      %280 = vmatpush.msra.mxu0 0.0
      %281 = vmatpush.msra.mxu0 0.0
      %282 = vmatpush.msra.mxu0 0.0
      %283 = vmatpush.msra.mxu0 0.0
      %284 = vmatpush.msra.mxu0 0.0
      %285 = vmatpush.msra.mxu0 0.0
      %286 = vmatpush.msra.mxu0 0.0
      %287 = vmatpush.msra.mxu0 0.0
      %288 = vmatpush.msra.mxu0 0.0
      %289 = vmatpush.msra.mxu0 %v64
      %290 = vmatpush.msra.mxu0 %v63
      %291 = vmatmul.f32.gmra.mxu0 %v273
      %v292 = vpop.f32.mrf.mxu0
      %v293 = vadd.f32 0.0, %v292
      %294 = vdwg.mxu0
      %v295 = vadd.f32 %v268, %v293
      %v297 = vperm.slane %v65, 0
      %v299 = vadd.f32 %v295, %v297
      %v300 = vxor.u32 %v299, 2147483648
      %v301 = vmul.f32 %v300, 1.442695
      %v302 = vpow.pop %v301
      %v303 = vadd.f32 %v302, 1.0
      %v304 = vrcp.pop %v303
      %v305 = vmul.f32 %v303, %v304
      %v306 = vsub.f32 1.0, %v305
      %v307 = vmul.f32 %v304, %v306
      %v308 = vadd.f32 %v304, %v307
      %vm309 = vweird.f32 %v303
      %vm310 = vweird.f32 %v304
      %vm311 = vmor %vm309, %vm310
      %v312 = vsel %vm311, %v304, %v308
      %v313 = vand.u32 2147483647, %v303
      %vm314 = vcmp.eq.f32.partialorder %v313, 8.507059e+37
      %v315 = vand.u32 %v303, 2147483648
      %v316 = vor.u32 1.1754944e-38, %v315
      %v317 = vsel %vm314, %v316, %v312
      %v318 = vmul.f32 1.0, %v317
      %v319 = vtanh.pop %v299
      %v320 = vmul.f32 %v318, %v91
      %322 = vrot.lane.b32.xlu0 %v319, 96
      %v323 = vpop.permute.xlu0 %322
      %v325 = vmul.f32 %v318, %v323
      %327 = vrot.lane.b32.xlu0 %v325, 16
      %v328 = vpop.permute.xlu0 %327
      %v330 = vadd.f32 %v320, %v328
      %v331 = vtanh.pop %v330
      %333 = vrot.lane.b32.xlu0 %v331, 32
      %v334 = vpop.permute.xlu0 %333
      %v336 = vmul.f32 %v318, %v334
      %338 = vrot.lane.b32.xlu0 %v215, 80
      %v339 = vpop.permute.xlu0 %338
      %s341 = scalar_lea.vmem %s7, %s93
      %vm342 = vcmask 123904
      %343 = vst.msk [vmem:[%s341] sm:$0x3] %vm342, %v339
      %345 = vrot.lane.b32.xlu0 %v336, 80
      %v346 = vpop.permute.xlu0 %345
      %s348 = scalar_lea.vmem %s8, %s216
      %349 = vst.msk [vmem:[%s348] sm:$0x3] %vm342, %v346
    $region42: #{_lambda_.7} parent=1 // loop_footer
      %s87 = sadd.s32 1, %s83
    $region43: #{_lambda_.7} parent=1 // loop_footer_branch
      %82 = sbr.rel target = $region39
    $region44: #{_lambda_.7} parent=1 // loop_exit
      _
    %351 = vrot.lane.b32.xlu0 %v88, 80
    %v352 = vpop.permute.xlu0 %351
    %vm354 = vcmask 123904
    %355 = vst.msk [vmem:[%s9] sm:$0x3] %vm354, %v352
    %357 = vrot.lane.b32.xlu0 %v90, 80
    %v358 = vpop.permute.xlu0 %357
    %s360 = scalar_lea.vmem %s9, 2
    %361 = vst.msk [vmem:[%s360] sm:$0x3] %vm354, %v358
    %363 = vrot.lane.b32.xlu0 %v89, 112
    %v364 = vpop.permute.xlu0 %363
    %366 = vst.msk [vmem:[%s10] sm:$0x3] %vm354, %v364
    %368 = vrot.lane.b32.xlu0 %v91, 112
    %v369 = vpop.permute.xlu0 %368
    %s371 = scalar_lea.vmem %s10, 2
    %372 = vst.msk [vmem:[%s371] sm:$0x3] %vm354, %v369
    // Predicated region
    $region45: #{_lambda_.7} parent=1 // pred_check
      _
    $region46: #{_lambda_.7} parent=1 // pred_check_branch
      %374 = sbr.rel (0) target = $region48
    $region47: #{_lambda_.7} parent=1 // pred_region
      _
    $region48: #{_lambda_.7} parent=1 // pred_fallthru
      _
    // Predicated region
    $region49: #{_lambda_.7} parent=1 // pred_check
      _
    $region50: #{_lambda_.7} parent=1 // pred_check_branch
      %376 = sbr.rel (0) target = $region52
    $region51: #{_lambda_.7} parent=1 // pred_region
      _
    $region52: #{_lambda_.7} parent=1 // pred_fallthru
      _
    // Predicated region
    $region53: #{_lambda_.7} parent=1 // pred_check
      _
    $region54: #{_lambda_.7} parent=1 // pred_check_branch
      %378 = sbr.rel (0) target = $region56
    $region55: #{_lambda_.7} parent=1 // pred_region
      _
    $region56: #{_lambda_.7} parent=1 // pred_fallthru
      _
    // Predicated region
    $region57: #{_lambda_.7} parent=1 // pred_check
      _
    $region58: #{_lambda_.7} parent=1 // pred_check_branch
      %380 = sbr.rel (0) target = $region60
    $region59: #{_lambda_.7} parent=1 // pred_region
      _
    $region60: #{_lambda_.7} parent=1 // pred_fallthru
      _
    // Predicated region
    $region61: #{_lambda_.7} parent=1 // pred_check
      _
    $region62: #{_lambda_.7} parent=1 // pred_check_branch
      %382 = sbr.rel (0) target = $region64
    $region63: #{_lambda_.7} parent=1 // pred_region
      _
    $region64: #{_lambda_.7} parent=1 // pred_fallthru
      _
    // Predicated region
    $region65: #{_lambda_.7} parent=1 // pred_check
      _
    $region66: #{_lambda_.7} parent=1 // pred_check_branch
      %384 = sbr.rel (0) target = $region68
    $region67: #{_lambda_.7} parent=1 // pred_region
      _
    $region68: #{_lambda_.7} parent=1 // pred_fallthru
      _
    // Predicated region
    $region69: #{_lambda_.7} parent=1 // pred_check
      _
    $region70: #{_lambda_.7} parent=1 // pred_check_branch
      %386 = sbr.rel (0) target = $region72
    $region71: #{_lambda_.7} parent=1 // pred_region
      _
    $region72: #{_lambda_.7} parent=1 // pred_fallthru
      _
    // Predicated region
    $region73: #{_lambda_.7} parent=1 // pred_check
      _
    $region74: #{_lambda_.7} parent=1 // pred_check_branch
      %388 = sbr.rel (0) target = $region76
    $region75: #{_lambda_.7} parent=1 // pred_region
      _
    $region76: #{_lambda_.7} parent=1 // pred_fallthru
      _
    %389 = vsyncpa [#allocation3], 1
    %390 = vsyncpa [#allocation5], 1

// kernel: _lambda_.9
$region0: #{_lambda_.9}
  #allocation0 [shape = 'u32[]', space=smem, size = 0x4, offset = 0x4, fixed_abs, tag = 'smem constant byte address 0x4 - core index']
  #allocation1 [shape = 'u32[72,128]{1,0:T(1,128)}', space=vmem, size = 0x9000, scoped, tag = 'internal scratch']
  #allocation2 [shape = 'f32[6,2,16]{2,1,0:T(2,128)}', space=vmem, size = 0x1800, scoped, tag = 'scratch operand']
  #allocation3 [shape = 'f32[6,2,128]{2,1,0:T(2,128)}', space=vmem, size = 0x1800, scoped, tag = 'scratch operand']
  %s0 = inlined_call_operand.vmem [shape: f32[2,4,16], index: 0, kind: input, shape index: {}]
  %s1 = inlined_call_operand.vmem [shape: f32[2,4,16], index: 1, kind: input, shape index: {}]
  %s2 = inlined_call_operand.vmem [shape: s32[2,1], index: 2, kind: input, shape index: {}]
  %s3 = inlined_call_operand.vmem [shape: f32[12,16], index: 3, kind: input, shape index: {}]
  %s4 = inlined_call_operand.vmem [shape: f32[2,32], index: 4, kind: input, shape index: {}]
  %s5 = inlined_call_operand.vmem [shape: f32[2,32], index: 5, kind: input, shape index: {}]
  %s6 = inlined_call_operand.vmem [shape: f32[16,16], index: 6, kind: input, shape index: {}]
  %s7 = inlined_call_operand.vmem [shape: f32[1,16], index: 7, kind: input, shape index: {}]
  %s8 = inlined_call_operand.vmem [shape: f32[16,128], index: 8, kind: input, shape index: {}]
  %s9 = inlined_call_operand.vmem [shape: f32[16,128], index: 9, kind: input, shape index: {}]
  %s10 = inlined_call_operand.vmem [shape: f32[32,128], index: 10, kind: input, shape index: {}]
  %s11 = inlined_call_operand.vmem [shape: f32[1,128], index: 11, kind: input, shape index: {}]
  %s12 = inlined_call_operand.vmem [shape: f32[32,64], index: 12, kind: input, shape index: {}]
  %s13 = inlined_call_operand.vmem [shape: f32[16,64], index: 13, kind: input, shape index: {}]
  %s14 = inlined_call_operand.vmem [shape: f32[1,64], index: 14, kind: input, shape index: {}]
  %s15 = inlined_call_operand.vmem [shape: f32[16,16], index: 15, kind: input, shape index: {}]
  %s16 = inlined_call_operand.vmem [shape: f32[16,16], index: 16, kind: input, shape index: {}]
  %s17 = inlined_call_operand.vmem [shape: f32[1,16], index: 17, kind: input, shape index: {}]
  %s18 = inlined_call_operand.vmem [shape: f32[16,34], index: 18, kind: input, shape index: {}]
  %s19 = inlined_call_operand.vmem [shape: f32[1,34], index: 19, kind: input, shape index: {}]
  %s20 = inlined_call_operand.vmem [shape: s32[6,2], index: 20, kind: input, shape index: {}]
  %s21 = inlined_call_operand.vmem [shape: s32[1,2], index: 21, kind: input, shape index: {}]
  %s22 = inlined_call_operand.hbm [shape: f32[6,2,34], index: 22, kind: output, shape index: {0}]
  %s23 = inlined_call_operand.hbm [shape: f32[1,1], index: 23, kind: output, shape index: {1}]
  %24 = xla_tuple %s22, %s23
  %s25 = sld [smem:[#allocation0]]
  $region113: #{_lambda_.9} parent=0
    _
  %s27 = ssub.s32 1, %s25
  %s28 = scalar_select 0, %s27, %s25
  $region1: #{_lambda_.9} parent=0
    #allocation4 [shape = 'u8[6144]{0}', space=vmem, size = 0x1800, scoped, tag = 'output window, operand 0, single buffered']
    #allocation5 [shape = 's32[1]{0}', space=sflag, size = 0x4, scoped, tag = 'scoped memory for _lambda_.9']
    #allocation6 [shape = 'u8[512]{0}', space=vmem, size = 0x400, scoped, tag = 'output window, operand 1, single buffered']
    #allocation7 [shape = 's32[1]{0}', space=sflag, size = 0x4, scoped, tag = 'scoped memory for _lambda_.9']
    %29 = vsyncpa [#allocation5], 0
    %30 = vsyncpa [#allocation7], 0
    // Predicated region
    $region2: #{_lambda_.9} parent=1 // pred_check
      _
    $region3: #{_lambda_.9} parent=1 // pred_check_branch
      %32 = sbr.rel (0) target = $region5
    $region4: #{_lambda_.9} parent=1 // pred_region
      _
    $region5: #{_lambda_.9} parent=1 // pred_fallthru
      _
    // Predicated region
    $region6: #{_lambda_.9} parent=1 // pred_check
      _
    $region7: #{_lambda_.9} parent=1 // pred_check_branch
      %34 = sbr.rel (0) target = $region9
    $region8: #{_lambda_.9} parent=1 // pred_region
      _
    $region9: #{_lambda_.9} parent=1 // pred_fallthru
      _
    // Predicated region
    $region10: #{_lambda_.9} parent=1 // pred_check
      _
    $region11: #{_lambda_.9} parent=1 // pred_check_branch
      %36 = sbr.rel (0) target = $region13
    $region12: #{_lambda_.9} parent=1 // pred_region
      _
    $region13: #{_lambda_.9} parent=1 // pred_fallthru
      _
    // Predicated region
    $region14: #{_lambda_.9} parent=1 // pred_check
      _
    $region15: #{_lambda_.9} parent=1 // pred_check_branch
      %38 = sbr.rel (0) target = $region17
    $region16: #{_lambda_.9} parent=1 // pred_region
      _
    $region17: #{_lambda_.9} parent=1 // pred_fallthru
      _
    // Predicated region
    $region18: #{_lambda_.9} parent=1 // pred_check
      _
    $region19: #{_lambda_.9} parent=1 // pred_check_branch
      %40 = sbr.rel (0) target = $region21
    $region20: #{_lambda_.9} parent=1 // pred_region
      _
    $region21: #{_lambda_.9} parent=1 // pred_fallthru
      _
    // Predicated region
    $region22: #{_lambda_.9} parent=1 // pred_check
      _
    $region23: #{_lambda_.9} parent=1 // pred_check_branch
      %42 = sbr.rel (0) target = $region25
    $region24: #{_lambda_.9} parent=1 // pred_region
      _
    $region25: #{_lambda_.9} parent=1 // pred_fallthru
      _
    // Predicated region
    $region26: #{_lambda_.9} parent=1 // pred_check
      _
    $region27: #{_lambda_.9} parent=1 // pred_check_branch
      %44 = sbr.rel (0) target = $region29
    $region28: #{_lambda_.9} parent=1 // pred_region
      _
    $region29: #{_lambda_.9} parent=1 // pred_fallthru
      _
    // Predicated region
    $region30: #{_lambda_.9} parent=1 // pred_check
      _
    $region31: #{_lambda_.9} parent=1 // pred_check_branch
      %46 = sbr.rel (0) target = $region33
    $region32: #{_lambda_.9} parent=1 // pred_region
      _
    $region33: #{_lambda_.9} parent=1 // pred_fallthru
      _
    // Predicated region
    $region34: #{_lambda_.9} parent=1 // pred_check
      _
    $region35: #{_lambda_.9} parent=1 // pred_check_branch
      %48 = sbr.rel (0) target = $region37
    $region36: #{_lambda_.9} parent=1 // pred_region
      _
    $region37: #{_lambda_.9} parent=1 // pred_fallthru
      _
    // Predicated region
    $region38: #{_lambda_.9} parent=1 // pred_check
      _
    $region39: #{_lambda_.9} parent=1 // pred_check_branch
      %50 = sbr.rel (0) target = $region41
    $region40: #{_lambda_.9} parent=1 // pred_region
      _
    $region41: #{_lambda_.9} parent=1 // pred_fallthru
      _
    // Predicated region
    $region42: #{_lambda_.9} parent=1 // pred_check
      _
    $region43: #{_lambda_.9} parent=1 // pred_check_branch
      %52 = sbr.rel (0) target = $region45
    $region44: #{_lambda_.9} parent=1 // pred_region
      _
    $region45: #{_lambda_.9} parent=1 // pred_fallthru
      _
    // Predicated region
    $region46: #{_lambda_.9} parent=1 // pred_check
      _
    $region47: #{_lambda_.9} parent=1 // pred_check_branch
      %54 = sbr.rel (0) target = $region49
    $region48: #{_lambda_.9} parent=1 // pred_region
      _
    $region49: #{_lambda_.9} parent=1 // pred_fallthru
      _
    // Predicated region
    $region50: #{_lambda_.9} parent=1 // pred_check
      _
    $region51: #{_lambda_.9} parent=1 // pred_check_branch
      %56 = sbr.rel (0) target = $region53
    $region52: #{_lambda_.9} parent=1 // pred_region
      _
    $region53: #{_lambda_.9} parent=1 // pred_fallthru
      _
    // Predicated region
    $region54: #{_lambda_.9} parent=1 // pred_check
      _
    $region55: #{_lambda_.9} parent=1 // pred_check_branch
      %58 = sbr.rel (0) target = $region57
    $region56: #{_lambda_.9} parent=1 // pred_region
      _
    $region57: #{_lambda_.9} parent=1 // pred_fallthru
      _
    // Predicated region
    $region58: #{_lambda_.9} parent=1 // pred_check
      _
    $region59: #{_lambda_.9} parent=1 // pred_check_branch
      %60 = sbr.rel (0) target = $region61
    $region60: #{_lambda_.9} parent=1 // pred_region
      _
    $region61: #{_lambda_.9} parent=1 // pred_fallthru
      _
    // Predicated region
    $region62: #{_lambda_.9} parent=1 // pred_check
      _
    $region63: #{_lambda_.9} parent=1 // pred_check_branch
      %62 = sbr.rel (0) target = $region65
    $region64: #{_lambda_.9} parent=1 // pred_region
      _
    $region65: #{_lambda_.9} parent=1 // pred_fallthru
      _
    // Predicated region
    $region66: #{_lambda_.9} parent=1 // pred_check
      _
    $region67: #{_lambda_.9} parent=1 // pred_check_branch
      %64 = sbr.rel (0) target = $region69
    $region68: #{_lambda_.9} parent=1 // pred_region
      _
    $region69: #{_lambda_.9} parent=1 // pred_fallthru
      _
    // Predicated region
    $region70: #{_lambda_.9} parent=1 // pred_check
      _
    $region71: #{_lambda_.9} parent=1 // pred_check_branch
      %66 = sbr.rel (0) target = $region73
    $region72: #{_lambda_.9} parent=1 // pred_region
      _
    $region73: #{_lambda_.9} parent=1 // pred_fallthru
      _
    // Predicated region
    $region74: #{_lambda_.9} parent=1 // pred_check
      _
    $region75: #{_lambda_.9} parent=1 // pred_check_branch
      %68 = sbr.rel (0) target = $region77
    $region76: #{_lambda_.9} parent=1 // pred_region
      _
    $region77: #{_lambda_.9} parent=1 // pred_fallthru
      _
    // Predicated region
    $region78: #{_lambda_.9} parent=1 // pred_check
      _
    $region79: #{_lambda_.9} parent=1 // pred_check_branch
      %70 = sbr.rel (0) target = $region81
    $region80: #{_lambda_.9} parent=1 // pred_region
      _
    $region81: #{_lambda_.9} parent=1 // pred_fallthru
      _
    // Predicated region
    $region82: #{_lambda_.9} parent=1 // pred_check
      _
    $region83: #{_lambda_.9} parent=1 // pred_check_branch
      %72 = sbr.rel (0) target = $region85
    $region84: #{_lambda_.9} parent=1 // pred_region
      _
    $region85: #{_lambda_.9} parent=1 // pred_fallthru
      _
    // Predicated region
    $region86: #{_lambda_.9} parent=1 // pred_check
      _
    $region87: #{_lambda_.9} parent=1 // pred_check_branch
      %74 = sbr.rel (0) target = $region89
    $region88: #{_lambda_.9} parent=1 // pred_region
      _
    $region89: #{_lambda_.9} parent=1 // pred_fallthru
      _
    %v75 = vld [vmem:[%s0] sm:$0xf]
    %v76 = vld [vmem:[%s0 + $0x4] sm:$0xf]
    %v77 = vld [vmem:[%s1] sm:$0xf]
    %v78 = vld [vmem:[%s1 + $0x4] sm:$0xf]
    %v79 = vld [vmem:[%s2] sm:$0x3]
    %v80 = vlaneseq
    %v81 = vand.u32 %v80, 127
    %82 = vset.pattern.permute.xlu0 0
    %83 = vperm.xlu0 %82, %v79
    %v84 = vpop.permute.xlu0 %83
    %vm85 = vcmp.ge.s32.totalorder %v81, %v84
    %v86 = vld [vmem:[%s3] sm:$0xff]
    %v87 = vld [vmem:[%s3 + $0x8] sm:$0xf]
    %v88 = vld [vmem:[%s6] sm:$0xff]
    %v89 = vld [vmem:[%s6 + $0x8] sm:$0xff]
    %v90 = vld [vmem:[%s7] sm:$0x1]
    %v92 = vperm.slane %v90, 0
    %vm94 = vcmask 130048
    %v96 = vsel %vm94, %v86, 0
    %v99 = vsel %vm94, %v87, 0
    %101 = vmatpush.msra.mxu0 0.0
    %102 = vmatpush.msra.mxu0 0.0
    %103 = vmatpush.msra.mxu0 0.0
    %104 = vmatpush.msra.mxu0 0.0
    %105 = vmatpush.msra.mxu0 0.0
    %106 = vmatpush.msra.mxu0 0.0
    %107 = vmatpush.msra.mxu0 0.0
    %108 = vmatpush.msra.mxu0 0.0
    %109 = vmatpush.msra.mxu0 0.0
    %110 = vmatpush.msra.mxu0 0.0
    %111 = vmatpush.msra.mxu0 0.0
    %112 = vmatpush.msra.mxu0 0.0
    %113 = vmatpush.msra.mxu0 0.0
    %114 = vmatpush.msra.mxu0 0.0
    %115 = vmatpush.msra.mxu0 %v89
    %116 = vmatpush.msra.mxu0 %v88
    %117 = vmatmul.f32.gmra.mxu0 %v96
    %v118 = vpop.f32.mrf.mxu0
    %v119 = vadd.f32 %v92, %v118
    %120 = vmatmul.f32.gmra.mxu0 %v99
    %v121 = vpop.f32.mrf.mxu0
    %v122 = vadd.f32 %v92, %v121
    %123 = vdwg.mxu0
    %v124 = vld [vmem:[%s8] sm:$0xff]
    %v125 = vld [vmem:[%s8 + $0x8] sm:$0xff]
    %v126 = vld [vmem:[%s11] sm:$0x1]
    %v128 = vperm.slane %v126, 0
    %130 = vmatpush.msra.mxu0 0.0
    %131 = vmatpush.msra.mxu0 0.0
    %132 = vmatpush.msra.mxu0 0.0
    %133 = vmatpush.msra.mxu0 0.0
    %134 = vmatpush.msra.mxu0 0.0
    %135 = vmatpush.msra.mxu0 0.0
    %136 = vmatpush.msra.mxu0 0.0
    %137 = vmatpush.msra.mxu0 0.0
    %138 = vmatpush.msra.mxu0 0.0
    %139 = vmatpush.msra.mxu0 0.0
    %140 = vmatpush.msra.mxu0 0.0
    %141 = vmatpush.msra.mxu0 0.0
    %142 = vmatpush.msra.mxu0 0.0
    %143 = vmatpush.msra.mxu0 0.0
    %144 = vmatpush.msra.mxu0 %v125
    %145 = vmatpush.msra.mxu0 %v124
    %146 = vmatmul.f32.gmra.mxu0 %v96
    %v147 = vpop.f32.mrf.mxu0
    %v148 = vadd.f32 %v128, %v147
    %149 = vmatmul.f32.gmra.mxu0 %v99
    %v150 = vpop.f32.mrf.mxu0
    %v151 = vadd.f32 %v128, %v150
    %152 = vdwg.mxu0
    %vm153 = vcmask 123904
    %154 = vst.msk [vmem:[#allocation2] sm:$0x3] %vm153, %v119
    %155 = vst [vmem:[#allocation3] sm:$0x3] %v148
    %s156 = scalar_lea.vmem [#allocation2], 2
    %vm157 = vcmask 125954
    %158 = vst.msk [vmem:[%s156 - $0x2] sm:$0xc] %vm157, %v119
    %s159 = scalar_lea.vmem [#allocation3], 2
    %160 = vst [vmem:[%s159 - $0x2] sm:$0xc] %v148
    %s161 = scalar_lea.vmem [#allocation2], 4
    %vm162 = vcmask 128004
    %163 = vst.msk [vmem:[%s161 - $0x4] sm:$0x30] %vm162, %v119
    %s164 = scalar_lea.vmem [#allocation3], 4
    %165 = vst [vmem:[%s164 - $0x4] sm:$0x30] %v148
    %s166 = scalar_lea.vmem [#allocation2], 6
    %vm167 = vcmask 130054
    %168 = vst.msk [vmem:[%s166 - $0x6] sm:$0xc0] %vm167, %v119
    %s169 = scalar_lea.vmem [#allocation3], 6
    %170 = vst [vmem:[%s169 - $0x6] sm:$0xc0] %v148
    %s171 = scalar_lea.vmem [#allocation2], 8
    %172 = vst.msk [vmem:[%s171] sm:$0x3] %vm153, %v122
    %s173 = scalar_lea.vmem [#allocation3], 8
    %174 = vst [vmem:[%s173] sm:$0x3] %v151
    %s175 = scalar_lea.vmem [#allocation2], 10
    %176 = vst.msk [vmem:[%s175 - $0x2] sm:$0xc] %vm157, %v122
    %s177 = scalar_lea.vmem [#allocation3], 10
    %178 = vst [vmem:[%s177 - $0x2] sm:$0xc] %v151
    %v179 = vld [vmem:[%s9] sm:$0xff]
    %v180 = vld [vmem:[%s9 + $0x8] sm:$0xff]
    %v181 = vld [vmem:[%s10] sm:$0xff]
    %v182 = vld [vmem:[%s10 + $0x8] sm:$0xff]
    %v183 = vld [vmem:[%s10 + $0x10] sm:$0xff]
    %v184 = vld [vmem:[%s10 + $0x18] sm:$0xff]
    %v185 = vld [vmem:[%s12] sm:$0xff]
    %v186 = vld [vmem:[%s12 + $0x8] sm:$0xff]
    %v187 = vld [vmem:[%s12 + $0x10] sm:$0xff]
    %v188 = vld [vmem:[%s12 + $0x18] sm:$0xff]
    %v189 = vld [vmem:[%s13] sm:$0xff]
    %v190 = vld [vmem:[%s13 + $0x8] sm:$0xff]
    %v191 = vld [vmem:[%s14] sm:$0x1]
    %v192 = vld [vmem:[%s15] sm:$0xff]
    %v193 = vld [vmem:[%s15 + $0x8] sm:$0xff]
    %v194 = vld [vmem:[%s16] sm:$0xff]
    %v195 = vld [vmem:[%s16 + $0x8] sm:$0xff]
    %v196 = vld [vmem:[%s17] sm:$0x1]
    %v197 = vld [vmem:[%s18] sm:$0xff]
    %v198 = vld [vmem:[%s18 + $0x8] sm:$0xff]
    %v199 = vld [vmem:[%s19] sm:$0x1]
    %v200 = vld [vmem:[%s4] sm:$0x3]
    %v201 = vld [vmem:[%s5] sm:$0x3]
    loop: start=0, step=1, limit=6
    $region90: #{_lambda_.9} parent=1 // loop_pre_header
      _
    $region91: #{_lambda_.9} parent=1 // loop_header
      %s203 = sphi 0, %s207
      %p204 = scmp.ge.s32.totalorder %s203, 6
      %v208 = vphi %v200, %v477
      %v209 = vphi %v201, %v759
      %v210 = vphi 0.0, %v540
      %v211 = vphi 0.0, %v534
    $region92: #{_lambda_.9} parent=1 // loop_header_branch
      %206 = sbr.rel (%p204) target = $region96
    $region93: #{_lambda_.9} parent=1 // loop_body
      %s212 = smul.u32 %s203, 2
      %s213 = scalar_lea.vmem [#allocation2], %s212
      %v214 = vld [vmem:[%s213] sm:$0x3]
      %v216 = vrot.slane %v214, 1
      %v217 = vsel %vm94, %v214, 0
      %v220 = vsel %vm94, %v75, 0
      %222 = vmatpush.xpose.msra.mxu0 0.0
      %223 = vmatpush.xpose.msra.mxu0 0.0
      %224 = vmatpush.xpose.msra.mxu0 0.0
      %225 = vmatpush.xpose.msra.mxu0 0.0
      %226 = vmatpush.xpose.msra.mxu0 0.0
      %227 = vmatpush.xpose.msra.mxu0 0.0
      %228 = vmatpush.xpose.msra.mxu0 0.0
      %229 = vmatpush.xpose.msra.mxu0 0.0
      %230 = vmatpush.xpose.msra.mxu0 0.0
      %231 = vmatpush.xpose.msra.mxu0 0.0
      %232 = vmatpush.xpose.msra.mxu0 0.0
      %233 = vmatpush.xpose.msra.mxu0 0.0
      %234 = vmatpush.xpose.msra.mxu0 0.0
      %235 = vmatpush.xpose.msra.mxu0 0.0
      %236 = vmatpush.xpose.msra.mxu0 0.0
      %237 = vmatpush.xpose.msra.mxu0 %v220
      %238 = vmatmul.f32.gmra.mxu0 %v217
      %v239 = vpop.f32.mrf.mxu0
      %v240 = vadd.f32 0.0, %v239
      %241 = vdwg.mxu0
      %v242 = vsel %vm94, %v216, 0
      %v245 = vsel %vm94, %v76, 0
      %247 = vmatpush.xpose.msra.mxu0 0.0
      %248 = vmatpush.xpose.msra.mxu0 0.0
      %249 = vmatpush.xpose.msra.mxu0 0.0
      %250 = vmatpush.xpose.msra.mxu0 0.0
      %251 = vmatpush.xpose.msra.mxu0 0.0
      %252 = vmatpush.xpose.msra.mxu0 0.0
      %253 = vmatpush.xpose.msra.mxu0 0.0
      %254 = vmatpush.xpose.msra.mxu0 0.0
      %255 = vmatpush.xpose.msra.mxu0 0.0
      %256 = vmatpush.xpose.msra.mxu0 0.0
      %257 = vmatpush.xpose.msra.mxu0 0.0
      %258 = vmatpush.xpose.msra.mxu0 0.0
      %259 = vmatpush.xpose.msra.mxu0 0.0
      %260 = vmatpush.xpose.msra.mxu0 0.0
      %261 = vmatpush.xpose.msra.mxu0 0.0
      %262 = vmatpush.xpose.msra.mxu0 %v245
      %263 = vmatmul.f32.gmra.mxu0 %v242
      %v264 = vpop.f32.mrf.mxu0
      %v265 = vadd.f32 0.0, %v264
      %266 = vdwg.mxu0
      %v267 = vmul.f32 %v240, 0.25
      %v268 = vmul.f32 %v265, 0.25
      %v271 = vrot.slane %v268, 7
      %vm272 = vcmask 1041409
      %v273 = vsel %vm272, %v271, %v267
      %v275 = vsel %vm85, -1e+09, %v273
      %vm276 = vcmask 25600
      %v277 = vsel %vm276, %v275, -inf
      %278 = vmax.xlane.f32.xlu0 %v277
      %v279 = vpop.xlane.xlu0 %278
      %v280 = vsub.f32 %v275, %v279
      %v281 = vmul.f32 %v280, 1.442695
      %v282 = vpow.pop %v281
      %v283 = vsel %vm276, %v282, 0.0
      %284 = vadd.xlane.f32.xlu0 %v283
      %v285 = vpop.xlane.xlu0 %284
      %v286 = vrcp.pop %v285
      %v287 = vmul.f32 %v285, %v286
      %v288 = vsub.f32 1.0, %v287
      %v289 = vmul.f32 %v286, %v288
      %v290 = vadd.f32 %v286, %v289
      %vm291 = vweird.f32 %v285
      %vm292 = vweird.f32 %v286
      %vm293 = vmor %vm291, %vm292
      %v294 = vsel %vm293, %v286, %v290
      %v295 = vand.u32 2147483647, %v285
      %vm296 = vcmp.eq.f32.partialorder %v295, 8.507059e+37
      %v297 = vand.u32 %v285, 2147483648
      %v298 = vor.u32 1.1754944e-38, %v297
      %v299 = vsel %vm296, %v298, %v294
      %v300 = vmul.f32 %v282, %v299
      %v302 = vrot.slane %v300, 1
      %vm303 = vcmask 31744
      %v304 = vsel %vm303, %v300, 0
      %vm306 = vcmask 1043456
      %v308 = vsel %vm306, %v77, 0
      %310 = vmatpush.msra.mxu0 0.0
      %311 = vmatpush.msra.mxu0 0.0
      %312 = vmatpush.msra.mxu0 0.0
      %313 = vmatpush.msra.mxu0 0.0
      %314 = vmatpush.msra.mxu0 0.0
      %315 = vmatpush.msra.mxu0 0.0
      %316 = vmatpush.msra.mxu0 0.0
      %317 = vmatpush.msra.mxu0 0.0
      %318 = vmatpush.msra.mxu0 0.0
      %319 = vmatpush.msra.mxu0 0.0
      %320 = vmatpush.msra.mxu0 0.0
      %321 = vmatpush.msra.mxu0 0.0
      %322 = vmatpush.msra.mxu0 0.0
      %323 = vmatpush.msra.mxu0 0.0
      %324 = vmatpush.msra.mxu0 0.0
      %325 = vmatpush.msra.mxu0 %v308
      %326 = vmatmul.f32.gmra.mxu0 %v304
      %v327 = vpop.f32.mrf.mxu0
      %v328 = vadd.f32 0.0, %v327
      %329 = vdwg.mxu0
      %v330 = vsel %vm303, %v302, 0
      %v333 = vsel %vm306, %v78, 0
      %335 = vmatpush.msra.mxu0 0.0
      %336 = vmatpush.msra.mxu0 0.0
      %337 = vmatpush.msra.mxu0 0.0
      %338 = vmatpush.msra.mxu0 0.0
      %339 = vmatpush.msra.mxu0 0.0
      %340 = vmatpush.msra.mxu0 0.0
      %341 = vmatpush.msra.mxu0 0.0
      %342 = vmatpush.msra.mxu0 0.0
      %343 = vmatpush.msra.mxu0 0.0
      %344 = vmatpush.msra.mxu0 0.0
      %345 = vmatpush.msra.mxu0 0.0
      %346 = vmatpush.msra.mxu0 0.0
      %347 = vmatpush.msra.mxu0 0.0
      %348 = vmatpush.msra.mxu0 0.0
      %349 = vmatpush.msra.mxu0 0.0
      %350 = vmatpush.msra.mxu0 %v333
      %351 = vmatmul.f32.gmra.mxu0 %v330
      %v352 = vpop.f32.mrf.mxu0
      %v353 = vadd.f32 0.0, %v352
      %354 = vdwg.mxu0
      %s355 = scalar_lea.vmem [#allocation3], %s212
      %v356 = vld [vmem:[%s355] sm:$0x3]
      %v359 = vrot.slane %v353, 7
      %v360 = vsel %vm272, %v359, %v328
      %v361 = vsel %vm94, %v360, 0
      %363 = vmatpush.msra.mxu0 0.0
      %364 = vmatpush.msra.mxu0 0.0
      %365 = vmatpush.msra.mxu0 0.0
      %366 = vmatpush.msra.mxu0 0.0
      %367 = vmatpush.msra.mxu0 0.0
      %368 = vmatpush.msra.mxu0 0.0
      %369 = vmatpush.msra.mxu0 0.0
      %370 = vmatpush.msra.mxu0 0.0
      %371 = vmatpush.msra.mxu0 0.0
      %372 = vmatpush.msra.mxu0 0.0
      %373 = vmatpush.msra.mxu0 0.0
      %374 = vmatpush.msra.mxu0 0.0
      %375 = vmatpush.msra.mxu0 0.0
      %376 = vmatpush.msra.mxu0 0.0
      %377 = vmatpush.msra.mxu0 %v180
      %378 = vmatpush.msra.mxu0 %v179
      %379 = vmatmul.f32.gmra.mxu0 %v361
      %v380 = vpop.f32.mrf.mxu0
      %v381 = vadd.f32 0.0, %v380
      %382 = vdwg.mxu0
      %v383 = vadd.f32 %v356, %v381
      %vm384 = vcmask 261120
      %v386 = vsel %vm384, %v208, 0
      %388 = vmatpush.msra.mxu0 0.0
      %389 = vmatpush.msra.mxu0 0.0
      %390 = vmatpush.msra.mxu0 0.0
      %391 = vmatpush.msra.mxu0 0.0
      %392 = vmatpush.msra.mxu0 0.0
      %393 = vmatpush.msra.mxu0 0.0
      %394 = vmatpush.msra.mxu0 0.0
      %395 = vmatpush.msra.mxu0 0.0
      %396 = vmatpush.msra.mxu0 0.0
      %397 = vmatpush.msra.mxu0 0.0
      %398 = vmatpush.msra.mxu0 0.0
      %399 = vmatpush.msra.mxu0 0.0
      %400 = vmatpush.msra.mxu0 %v184
      %401 = vmatpush.msra.mxu0 %v183
      %402 = vmatpush.msra.mxu0 %v182
      %403 = vmatpush.msra.mxu0 %v181
      %404 = vmatmul.f32.gmra.mxu0 %v386
      %v405 = vpop.f32.mrf.mxu0
      %v406 = vadd.f32 0.0, %v405
      %407 = vdwg.mxu0
      %v408 = vadd.f32 %v383, %v406
      %v409 = vxor.u32 %v408, 2147483648
      %v410 = vmul.f32 %v409, 1.442695
      %v411 = vpow.pop %v410
      %v412 = vadd.f32 %v411, 1.0
      %v413 = vrcp.pop %v412
      %v414 = vmul.f32 %v412, %v413
      %v415 = vsub.f32 1.0, %v414
      %v416 = vmul.f32 %v413, %v415
      %v417 = vadd.f32 %v413, %v416
      %vm418 = vweird.f32 %v412
      %vm419 = vweird.f32 %v413
      %vm420 = vmor %vm418, %vm419
      %v421 = vsel %vm420, %v413, %v417
      %v422 = vand.u32 2147483647, %v412
      %vm423 = vcmp.eq.f32.partialorder %v422, 8.507059e+37
      %v424 = vand.u32 %v412, 2147483648
      %v425 = vor.u32 1.1754944e-38, %v424
      %v426 = vsel %vm423, %v425, %v421
      %v427 = vmul.f32 1.0, %v426
      %v428 = vtanh.pop %v408
      %430 = vrot.lane.b32.xlu0 %v209, 32
      %v431 = vpop.permute.xlu0 %430
      %v433 = vmul.f32 %v427, %v431
      %435 = vrot.lane.b32.xlu0 %v428, 64
      %v436 = vpop.permute.xlu0 %435
      %v438 = vmul.f32 %v427, %v436
      %440 = vrot.lane.b32.xlu0 %v438, 32
      %v441 = vpop.permute.xlu0 %440
      %v443 = vadd.f32 %v433, %v441
      %v444 = vtanh.pop %v443
      %446 = vrot.lane.b32.xlu0 %v444, 64
      %v447 = vpop.permute.xlu0 %446
      %v449 = vmul.f32 %v427, %v447
      %451 = vrot.lane.b32.xlu0 %v210, 80
      %v452 = vpop.permute.xlu0 %451
      %v453 = vsel %vm94, %v452, 0
      %455 = vmatpush.msra.mxu0 0.0
      %456 = vmatpush.msra.mxu0 0.0
      %457 = vmatpush.msra.mxu0 0.0
      %458 = vmatpush.msra.mxu0 0.0
      %459 = vmatpush.msra.mxu0 0.0
      %460 = vmatpush.msra.mxu0 0.0
      %461 = vmatpush.msra.mxu0 0.0
      %462 = vmatpush.msra.mxu0 0.0
      %463 = vmatpush.msra.mxu0 0.0
      %464 = vmatpush.msra.mxu0 0.0
      %465 = vmatpush.msra.mxu0 0.0
      %466 = vmatpush.msra.mxu0 0.0
      %467 = vmatpush.msra.mxu0 0.0
      %468 = vmatpush.msra.mxu0 0.0
      %469 = vmatpush.msra.mxu0 %v190
      %470 = vmatpush.msra.mxu0 %v189
      %471 = vmatmul.f32.gmra.mxu0 %v453
      %v472 = vpop.f32.mrf.mxu0
      %v473 = vadd.f32 0.0, %v472
      %474 = vdwg.mxu0
      %476 = vrot.lane.b32.xlu0 %v449, 32
      %v477 = vpop.permute.xlu0 %476
      %v478 = vsel %vm384, %v477, 0
      %480 = vmatpush.msra.mxu0 0.0
      %481 = vmatpush.msra.mxu0 0.0
      %482 = vmatpush.msra.mxu0 0.0
      %483 = vmatpush.msra.mxu0 0.0
      %484 = vmatpush.msra.mxu0 0.0
      %485 = vmatpush.msra.mxu0 0.0
      %486 = vmatpush.msra.mxu0 0.0
      %487 = vmatpush.msra.mxu0 0.0
      %488 = vmatpush.msra.mxu0 0.0
      %489 = vmatpush.msra.mxu0 0.0
      %490 = vmatpush.msra.mxu0 0.0
      %491 = vmatpush.msra.mxu0 0.0
      %492 = vmatpush.msra.mxu0 %v188
      %493 = vmatpush.msra.mxu0 %v187
      %494 = vmatpush.msra.mxu0 %v186
      %495 = vmatpush.msra.mxu0 %v185
      %496 = vmatmul.f32.gmra.mxu0 %v478
      %v497 = vpop.f32.mrf.mxu0
      %v498 = vadd.f32 %v473, %v497
      %499 = vdwg.mxu0
      %v501 = vperm.slane %v191, 0
      %v503 = vadd.f32 %v498, %v501
      %v504 = vxor.u32 %v503, 2147483648
      %v505 = vmul.f32 %v504, 1.442695
      %v506 = vpow.pop %v505
      %v507 = vadd.f32 %v506, 1.0
      %v508 = vrcp.pop %v507
      %v509 = vmul.f32 %v507, %v508
      %v510 = vsub.f32 1.0, %v509
      %v511 = vmul.f32 %v508, %v510
      %v512 = vadd.f32 %v508, %v511
      %vm513 = vweird.f32 %v507
      %vm514 = vweird.f32 %v508
      %vm515 = vmor %vm513, %vm514
      %v516 = vsel %vm515, %v508, %v512
      %v517 = vand.u32 2147483647, %v507
      %vm518 = vcmp.eq.f32.partialorder %v517, 8.507059e+37
      %v519 = vand.u32 %v507, 2147483648
      %v520 = vor.u32 1.1754944e-38, %v519
      %v521 = vsel %vm518, %v520, %v516
      %v522 = vmul.f32 1.0, %v521
      %v523 = vtanh.pop %v503
      %v524 = vmul.f32 %v522, %v211
      %526 = vrot.lane.b32.xlu0 %v523, 96
      %v527 = vpop.permute.xlu0 %526
      %v529 = vmul.f32 %v522, %v527
      %531 = vrot.lane.b32.xlu0 %v529, 16
      %v532 = vpop.permute.xlu0 %531
      %v534 = vadd.f32 %v524, %v532
      %v535 = vtanh.pop %v534
      %537 = vrot.lane.b32.xlu0 %v535, 32
      %v538 = vpop.permute.xlu0 %537
      %v540 = vmul.f32 %v522, %v538
      %v542 = vrot.slane %v540, 1
      %v543 = vperm.slane %v540, 0
      %544 = vrot.lane.b32.xlu0 %v543, 80
      %v545 = vpop.permute.xlu0 %544
      %v546 = vsel %vm94, %v545, 0
      %548 = vmatpush.xpose.msra.mxu0 0.0
      %549 = vmatpush.xpose.msra.mxu0 0.0
      %550 = vmatpush.xpose.msra.mxu0 0.0
      %551 = vmatpush.xpose.msra.mxu0 0.0
      %552 = vmatpush.xpose.msra.mxu0 0.0
      %553 = vmatpush.xpose.msra.mxu0 0.0
      %554 = vmatpush.xpose.msra.mxu0 0.0
      %555 = vmatpush.xpose.msra.mxu0 0.0
      %556 = vmatpush.xpose.msra.mxu0 0.0
      %557 = vmatpush.xpose.msra.mxu0 0.0
      %558 = vmatpush.xpose.msra.mxu0 0.0
      %559 = vmatpush.xpose.msra.mxu0 0.0
      %560 = vmatpush.xpose.msra.mxu0 0.0
      %561 = vmatpush.xpose.msra.mxu0 0.0
      %562 = vmatpush.xpose.msra.mxu0 0.0
      %563 = vmatpush.xpose.msra.mxu0 %v220
      %564 = vmatmul.f32.gmra.mxu0 %v546
      %v565 = vpop.f32.mrf.mxu0
      %v566 = vadd.f32 0.0, %v565
      %567 = vdwg.mxu0
      %v568 = vperm.slane %v542, 0
      %569 = vrot.lane.b32.xlu0 %v568, 80
      %v570 = vpop.permute.xlu0 %569
      %v571 = vsel %vm94, %v570, 0
      %573 = vmatpush.xpose.msra.mxu0 0.0
      %574 = vmatpush.xpose.msra.mxu0 0.0
      %575 = vmatpush.xpose.msra.mxu0 0.0
      %576 = vmatpush.xpose.msra.mxu0 0.0
      %577 = vmatpush.xpose.msra.mxu0 0.0
      %578 = vmatpush.xpose.msra.mxu0 0.0
      %579 = vmatpush.xpose.msra.mxu0 0.0
      %580 = vmatpush.xpose.msra.mxu0 0.0
      %581 = vmatpush.xpose.msra.mxu0 0.0
      %582 = vmatpush.xpose.msra.mxu0 0.0
      %583 = vmatpush.xpose.msra.mxu0 0.0
      %584 = vmatpush.xpose.msra.mxu0 0.0
      %585 = vmatpush.xpose.msra.mxu0 0.0
      %586 = vmatpush.xpose.msra.mxu0 0.0
      %587 = vmatpush.xpose.msra.mxu0 0.0
      %588 = vmatpush.xpose.msra.mxu0 %v245
      %589 = vmatmul.f32.gmra.mxu0 %v571
      %v590 = vpop.f32.mrf.mxu0
      %v591 = vadd.f32 0.0, %v590
      %592 = vdwg.mxu0
      %v593 = vmul.f32 %v566, 0.25
      %v594 = vmul.f32 %v591, 0.25
      %v597 = vrot.slane %v594, 7
      %v598 = vsel %vm272, %v597, %v593
      %v600 = vsel %vm85, -1e+09, %v598
      %v601 = vsel %vm276, %v600, -inf
      %602 = vmax.xlane.f32.xlu0 %v601
      %v603 = vpop.xlane.xlu0 %602
      %v604 = vsub.f32 %v600, %v603
      %v605 = vmul.f32 %v604, 1.442695
      %v606 = vpow.pop %v605
      %v607 = vsel %vm276, %v606, 0.0
      %608 = vadd.xlane.f32.xlu0 %v607
      %v609 = vpop.xlane.xlu0 %608
      %v610 = vrcp.pop %v609
      %v611 = vmul.f32 %v609, %v610
      %v612 = vsub.f32 1.0, %v611
      %v613 = vmul.f32 %v610, %v612
      %v614 = vadd.f32 %v610, %v613
      %vm615 = vweird.f32 %v609
      %vm616 = vweird.f32 %v610
      %vm617 = vmor %vm615, %vm616
      %v618 = vsel %vm617, %v610, %v614
      %v619 = vand.u32 2147483647, %v609
      %vm620 = vcmp.eq.f32.partialorder %v619, 8.507059e+37
      %v621 = vand.u32 %v609, 2147483648
      %v622 = vor.u32 1.1754944e-38, %v621
      %v623 = vsel %vm620, %v622, %v618
      %v624 = vmul.f32 %v606, %v623
      %v626 = vrot.slane %v624, 1
      %v627 = vsel %vm303, %v624, 0
      %629 = vmatpush.msra.mxu0 0.0
      %630 = vmatpush.msra.mxu0 0.0
      %631 = vmatpush.msra.mxu0 0.0
      %632 = vmatpush.msra.mxu0 0.0
      %633 = vmatpush.msra.mxu0 0.0
      %634 = vmatpush.msra.mxu0 0.0
      %635 = vmatpush.msra.mxu0 0.0
      %636 = vmatpush.msra.mxu0 0.0
      %637 = vmatpush.msra.mxu0 0.0
      %638 = vmatpush.msra.mxu0 0.0
      %639 = vmatpush.msra.mxu0 0.0
      %640 = vmatpush.msra.mxu0 0.0
      %641 = vmatpush.msra.mxu0 0.0
      %642 = vmatpush.msra.mxu0 0.0
      %643 = vmatpush.msra.mxu0 0.0
      %644 = vmatpush.msra.mxu0 %v308
      %645 = vmatmul.f32.gmra.mxu0 %v627
      %v646 = vpop.f32.mrf.mxu0
      %v647 = vadd.f32 0.0, %v646
      %648 = vdwg.mxu0
      %v649 = vsel %vm303, %v626, 0
      %651 = vmatpush.msra.mxu0 0.0
      %652 = vmatpush.msra.mxu0 0.0
      %653 = vmatpush.msra.mxu0 0.0
      %654 = vmatpush.msra.mxu0 0.0
      %655 = vmatpush.msra.mxu0 0.0
      %656 = vmatpush.msra.mxu0 0.0
      %657 = vmatpush.msra.mxu0 0.0
      %658 = vmatpush.msra.mxu0 0.0
      %659 = vmatpush.msra.mxu0 0.0
      %660 = vmatpush.msra.mxu0 0.0
      %661 = vmatpush.msra.mxu0 0.0
      %662 = vmatpush.msra.mxu0 0.0
      %663 = vmatpush.msra.mxu0 0.0
      %664 = vmatpush.msra.mxu0 0.0
      %665 = vmatpush.msra.mxu0 0.0
      %666 = vmatpush.msra.mxu0 %v333
      %667 = vmatmul.f32.gmra.mxu0 %v649
      %v668 = vpop.f32.mrf.mxu0
      %v669 = vadd.f32 0.0, %v668
      %670 = vdwg.mxu0
      %v673 = vrot.slane %v669, 7
      %v674 = vsel %vm272, %v673, %v647
      %v675 = vsel %vm94, %v674, 0
      %677 = vmatpush.msra.mxu0 0.0
      %678 = vmatpush.msra.mxu0 0.0
      %679 = vmatpush.msra.mxu0 0.0
      %680 = vmatpush.msra.mxu0 0.0
      %681 = vmatpush.msra.mxu0 0.0
      %682 = vmatpush.msra.mxu0 0.0
      %683 = vmatpush.msra.mxu0 0.0
      %684 = vmatpush.msra.mxu0 0.0
      %685 = vmatpush.msra.mxu0 0.0
      %686 = vmatpush.msra.mxu0 0.0
      %687 = vmatpush.msra.mxu0 0.0
      %688 = vmatpush.msra.mxu0 0.0
      %689 = vmatpush.msra.mxu0 0.0
      %690 = vmatpush.msra.mxu0 0.0
      %691 = vmatpush.msra.mxu0 %v195
      %692 = vmatpush.msra.mxu0 %v194
      %693 = vmatmul.f32.gmra.mxu0 %v675
      %v694 = vpop.f32.mrf.mxu0
      %v695 = vadd.f32 0.0, %v694
      %696 = vdwg.mxu0
      %697 = vrot.lane.b32.xlu0 %v540, 80
      %v698 = vpop.permute.xlu0 %697
      %v699 = vsel %vm94, %v698, 0
      %701 = vmatpush.msra.mxu0 0.0
      %702 = vmatpush.msra.mxu0 0.0
      %703 = vmatpush.msra.mxu0 0.0
      %704 = vmatpush.msra.mxu0 0.0
      %705 = vmatpush.msra.mxu0 0.0
      %706 = vmatpush.msra.mxu0 0.0
      %707 = vmatpush.msra.mxu0 0.0
      %708 = vmatpush.msra.mxu0 0.0
      %709 = vmatpush.msra.mxu0 0.0
      %710 = vmatpush.msra.mxu0 0.0
      %711 = vmatpush.msra.mxu0 0.0
      %712 = vmatpush.msra.mxu0 0.0
      %713 = vmatpush.msra.mxu0 0.0
      %714 = vmatpush.msra.mxu0 0.0
      %715 = vmatpush.msra.mxu0 %v193
      %716 = vmatpush.msra.mxu0 %v192
      %717 = vmatmul.f32.gmra.mxu0 %v699
      %v718 = vpop.f32.mrf.mxu0
      %v719 = vadd.f32 %v695, %v718
      %720 = vdwg.mxu0
      %v722 = vperm.slane %v196, 0
      %v724 = vadd.f32 %v719, %v722
      %v725 = vmax.f32 %v724, -1.0
      %v726 = vmin.f32 %v725, 1.0
      %v728 = vperm.slane %v199, 0
      %v731 = vsel %vm94, %v726, 0
      %733 = vmatpush.msra.mxu0 0.0
      %734 = vmatpush.msra.mxu0 0.0
      %735 = vmatpush.msra.mxu0 0.0
      %736 = vmatpush.msra.mxu0 0.0
      %737 = vmatpush.msra.mxu0 0.0
      %738 = vmatpush.msra.mxu0 0.0
      %739 = vmatpush.msra.mxu0 0.0
      %740 = vmatpush.msra.mxu0 0.0
      %741 = vmatpush.msra.mxu0 0.0
      %742 = vmatpush.msra.mxu0 0.0
      %743 = vmatpush.msra.mxu0 0.0
      %744 = vmatpush.msra.mxu0 0.0
      %745 = vmatpush.msra.mxu0 0.0
      %746 = vmatpush.msra.mxu0 0.0
      %747 = vmatpush.msra.mxu0 %v198
      %748 = vmatpush.msra.mxu0 %v197
      %749 = vmatmul.f32.gmra.mxu0 %v731
      %v750 = vpop.f32.mrf.mxu0
      %v751 = vadd.f32 %v728, %v750
      %752 = vdwg.mxu0
      %s753 = scalar_lea.vmem [#allocation4], %s212
      %vm754 = vcmask 271360
      %755 = vst.msk [vmem:[%s753] sm:$0x3] %vm754, %v751
      %758 = vrot.lane.b32.xlu0 %v443, 96
      %v759 = vpop.permute.xlu0 %758
    $region94: #{_lambda_.9} parent=1 // loop_footer
      %s207 = sadd.s32 1, %s203
    $region95: #{_lambda_.9} parent=1 // loop_footer_branch
      %202 = sbr.rel target = $region91
    $region96: #{_lambda_.9} parent=1 // loop_exit
      _
    %v761 = vld [vmem:[#allocation4] sm:$0x3]
    %v762 = vld [vmem:[#allocation4 + $0x2] sm:$0x3]
    %v763 = vld [vmem:[#allocation4 + $0x4] sm:$0x3]
    %v764 = vld [vmem:[#allocation4 + $0x6] sm:$0x3]
    %v765 = vld [vmem:[#allocation4 + $0x8] sm:$0x3]
    %v766 = vld [vmem:[#allocation4 + $0xa] sm:$0x3]
    %vm767 = vcmask 271360
    %v768 = vsel %vm767, %v761, -inf
    %769 = vmax.xlane.f32.xlu0 %v768
    %v770 = vpop.xlane.xlu0 %769
    %v771 = vsel %vm767, %v762, -inf
    %772 = vmax.xlane.f32.xlu0 %v771
    %v773 = vpop.xlane.xlu0 %772
    %v774 = vsel %vm767, %v763, -inf
    %775 = vmax.xlane.f32.xlu0 %v774
    %v776 = vpop.xlane.xlu0 %775
    %v777 = vsel %vm767, %v764, -inf
    %778 = vmax.xlane.f32.xlu0 %v777
    %v779 = vpop.xlane.xlu0 %778
    %v780 = vsel %vm767, %v765, -inf
    %781 = vmax.xlane.f32.xlu0 %v780
    %v782 = vpop.xlane.xlu0 %781
    %v783 = vsel %vm767, %v766, -inf
    %784 = vmax.xlane.f32.xlu0 %v783
    %v785 = vpop.xlane.xlu0 %784
    %v786 = vsub.f32 %v761, %v770
    %v787 = vsub.f32 %v762, %v773
    %v788 = vsub.f32 %v763, %v776
    %v789 = vsub.f32 %v764, %v779
    %v790 = vsub.f32 %v765, %v782
    %v791 = vsub.f32 %v766, %v785
    %v792 = vmul.f32 %v786, 1.442695
    %v793 = vpow.pop %v792
    %v794 = vmul.f32 %v787, 1.442695
    %v795 = vpow.pop %v794
    %v796 = vmul.f32 %v788, 1.442695
    %v797 = vpow.pop %v796
    %v798 = vmul.f32 %v789, 1.442695
    %v799 = vpow.pop %v798
    %v800 = vmul.f32 %v790, 1.442695
    %v801 = vpow.pop %v800
    %v802 = vmul.f32 %v791, 1.442695
    %v803 = vpow.pop %v802
    %v804 = vsel %vm767, %v793, 0.0
    %805 = vadd.xlane.f32.xlu0 %v804
    %v806 = vpop.xlane.xlu0 %805
    %v807 = vsel %vm767, %v795, 0.0
    %808 = vadd.xlane.f32.xlu0 %v807
    %v809 = vpop.xlane.xlu0 %808
    %v810 = vsel %vm767, %v797, 0.0
    %811 = vadd.xlane.f32.xlu0 %v810
    %v812 = vpop.xlane.xlu0 %811
    %v813 = vsel %vm767, %v799, 0.0
    %814 = vadd.xlane.f32.xlu0 %v813
    %v815 = vpop.xlane.xlu0 %814
    %v816 = vsel %vm767, %v801, 0.0
    %817 = vadd.xlane.f32.xlu0 %v816
    %v818 = vpop.xlane.xlu0 %817
    %v819 = vsel %vm767, %v803, 0.0
    %820 = vadd.xlane.f32.xlu0 %v819
    %v821 = vpop.xlane.xlu0 %820
    %v822 = vlog2.pop %v806
    %v823 = vmul.f32 %v822, 0.6931472
    %v824 = vlog2.pop %v809
    %v825 = vmul.f32 %v824, 0.6931472
    %v826 = vlog2.pop %v812
    %v827 = vmul.f32 %v826, 0.6931472
    %v828 = vlog2.pop %v815
    %v829 = vmul.f32 %v828, 0.6931472
    %v830 = vlog2.pop %v818
    %v831 = vmul.f32 %v830, 0.6931472
    %v832 = vlog2.pop %v821
    %v833 = vmul.f32 %v832, 0.6931472
    %v834 = vadd.f32 %v823, %v770
    %v835 = vadd.f32 %v825, %v773
    %v836 = vadd.f32 %v827, %v776
    %v837 = vadd.f32 %v829, %v779
    %v838 = vadd.f32 %v831, %v782
    %v839 = vadd.f32 %v833, %v785
    %v840 = vld [vmem:[%s20] sm:$0x3f]
    %v841 = vperm.slane %v840, 0
    %v842 = vlaneseq
    %v843 = vshrl.u32 %v842, 7
    %845 = vset.pattern.permute.xlu0 %v843
    %846 = vperm.xlu0 %845, %v841
    %v847 = vpop.permute.xlu0 %846
    %v848 = vperm.slane %v840, 1
    %v849 = vlaneseq
    %v850 = vshrl.u32 %v849, 7
    %852 = vset.pattern.permute.xlu0 %v850
    %853 = vperm.xlu0 %852, %v848
    %v854 = vpop.permute.xlu0 %853
    %v855 = vperm.slane %v840, 2
    %v856 = vlaneseq
    %v857 = vshrl.u32 %v856, 7
    %859 = vset.pattern.permute.xlu0 %v857
    %860 = vperm.xlu0 %859, %v855
    %v861 = vpop.permute.xlu0 %860
    %v862 = vperm.slane %v840, 3
    %v863 = vlaneseq
    %v864 = vshrl.u32 %v863, 7
    %866 = vset.pattern.permute.xlu0 %v864
    %867 = vperm.xlu0 %866, %v862
    %v868 = vpop.permute.xlu0 %867
    %v869 = vperm.slane %v840, 4
    %v870 = vlaneseq
    %v871 = vshrl.u32 %v870, 7
    %873 = vset.pattern.permute.xlu0 %v871
    %874 = vperm.xlu0 %873, %v869
    %v875 = vpop.permute.xlu0 %874
    %v876 = vperm.slane %v840, 5
    %v877 = vlaneseq
    %v878 = vshrl.u32 %v877, 7
    %880 = vset.pattern.permute.xlu0 %v878
    %881 = vperm.xlu0 %880, %v876
    %v882 = vpop.permute.xlu0 %881
    %vm883 = vcmp.eq.s32.totalorder %v81, %v847
    %vm884 = vcmp.eq.s32.totalorder %v81, %v854
    %vm885 = vcmp.eq.s32.totalorder %v81, %v861
    %vm886 = vcmp.eq.s32.totalorder %v81, %v868
    %vm887 = vcmp.eq.s32.totalorder %v81, %v875
    %vm888 = vcmp.eq.s32.totalorder %v81, %v882
    %v889 = vsel %vm883, %v761, 0.0
    %v890 = vsel %vm884, %v762, 0.0
    %v891 = vsel %vm885, %v763, 0.0
    %v892 = vsel %vm886, %v764, 0.0
    %v893 = vsel %vm887, %v765, 0.0
    %v894 = vsel %vm888, %v766, 0.0
    %v895 = vsel %vm767, %v889, 0.0
    %896 = vadd.xlane.f32.xlu0 %v895
    %v897 = vpop.xlane.xlu0 %896
    %v898 = vsel %vm767, %v890, 0.0
    %899 = vadd.xlane.f32.xlu0 %v898
    %v900 = vpop.xlane.xlu0 %899
    %v901 = vsel %vm767, %v891, 0.0
    %902 = vadd.xlane.f32.xlu0 %v901
    %v903 = vpop.xlane.xlu0 %902
    %v904 = vsel %vm767, %v892, 0.0
    %905 = vadd.xlane.f32.xlu0 %v904
    %v906 = vpop.xlane.xlu0 %905
    %v907 = vsel %vm767, %v893, 0.0
    %908 = vadd.xlane.f32.xlu0 %v907
    %v909 = vpop.xlane.xlu0 %908
    %v910 = vsel %vm767, %v894, 0.0
    %911 = vadd.xlane.f32.xlu0 %v910
    %v912 = vpop.xlane.xlu0 %911
    %v913 = vsub.f32 %v834, %v897
    %v914 = vsub.f32 %v835, %v900
    %v915 = vsub.f32 %v836, %v903
    %v916 = vsub.f32 %v837, %v906
    %v917 = vsub.f32 %v838, %v909
    %v918 = vsub.f32 %v839, %v912
    %v919 = vlaneseq
    %v920 = vshrl.u32 %v919, 7
    %v921 = vld [vmem:[%s21] sm:$0x1]
    %v922 = vperm.slane %v921, 0
    %vm923 = vcmp.ge.s32.totalorder %v920, %v922
    %v930 = vperm.slane %v913, %v81
    %v931 = vperm.slane %v914, %v81
    %v932 = vperm.slane %v915, %v81
    %v933 = vperm.slane %v916, %v81
    %v934 = vperm.slane %v917, %v81
    %v935 = vperm.slane %v918, %v81
    %vm936 = vcmask 1041409
    %v937 = vsel %vm936, %v931, %v930
    %vm938 = vcmask 1042434
    %v939 = vsel %vm938, %v932, %v937
    %vm940 = vcmask 1043459
    %v941 = vsel %vm940, %v933, %v939
    %vm942 = vcmask 1044484
    %v943 = vsel %vm942, %v934, %v941
    %vm944 = vcmask 1045509
    %v945 = vsel %vm944, %v935, %v943
    %v947 = vsel %vm923, 0.0, %v945
    %vm948 = vcmask 8192
    %v949 = vsel %vm948, %v921, 0
    %v950 = vand.u32 %v949, 65535
    %v951 = vshrl.u32 %v949, 16
    %v952 = vcvt.s32.f32 %v950
    %v953 = vcvt.s32.f32 %v951
    %954 = vadd.xlane.f32.xlu0 %v952
    %v955 = vpop.xlane.xlu0 %954
    %956 = vadd.xlane.f32.xlu0 %v953
    %v957 = vpop.xlane.xlu0 %956
    %v958 = vcvt.f32.s32 %v955
    %v959 = vcvt.f32.s32 %v957
    %v960 = vshll.u32 %v959, 16
    %v961 = vadd.s32 %v960, %v958
    %v962 = vrot.slane %v961, 4
    %v963 = vadd.s32 %v961, %v962
    %v964 = vrot.slane %v963, 2
    %v965 = vadd.s32 %v963, %v964
    %v966 = vrot.slane %v965, 1
    %v967 = vadd.s32 %v965, %v966
    %s968 = vtos %v967
    %s969 = scvt.s32.f32 %s968
    %vm970 = vcmask 13312
    %v971 = vsel %vm970, %v947, 0.0
    %972 = vadd.xlane.f32.xlu0 %v971
    %v973 = vpop.xlane.xlu0 %972
    %v974 = vrot.slane %v973, 4
    %v975 = vadd.f32 %v973, %v974
    %v976 = vrot.slane %v975, 2
    %v977 = vadd.f32 %v975, %v976
    %v978 = vrot.slane %v977, 1
    %v979 = vadd.f32 %v977, %v978
    %s980 = vtos %v979
    %v981 = vstv %s969
    %v982 = vrcp.pop %v981
    %v983 = vmul.f32 %v981, %v982
    %v984 = vsub.f32 1.0, %v983
    %v985 = vmul.f32 %v982, %v984
    %v986 = vadd.f32 %v982, %v985
    %vm987 = vweird.f32 %v981
    %vm988 = vweird.f32 %v982
    %vm989 = vmor %vm987, %vm988
    %v990 = vsel %vm989, %v982, %v986
    %v991 = vand.u32 2147483647, %v981
    %vm992 = vcmp.eq.f32.partialorder %v991, 8.507059e+37
    %v993 = vand.u32 %v981, 2147483648
    %v994 = vor.u32 1.1754944e-38, %v993
    %v995 = vsel %vm992, %v994, %v990
    %s996 = vtos %v995
    %s997 = smul.f32 %s980, %s996
    %v998 = vstv %s997
    %vm999 = vcmask 0
    %1000 = vst.msk [vmem:[#allocation6] sm:$0x1] %vm999, %v998
    // Predicated region
    $region97: #{_lambda_.9} parent=1 // pred_check
      _
    $region98: #{_lambda_.9} parent=1 // pred_check_branch
      %1002 = sbr.rel (0) target = $region100
    $region99: #{_lambda_.9} parent=1 // pred_region
      %1004 = vsyncadd [#allocation5], 0
      %s1005 = sshll.u32 [#allocation4], 4
      %s1006 = int_to_ptr.vmem [resolvable:$true] %s1005
      %s1007 = sshll.u32 %s22, 4
      %s1008 = int_to_ptr.hbm [resolvable:$true] %s1007
      %1013 = dma.vmem_to_hbm [thread:$0]  %s1006, 192, %s1008, [#allocation5], 32, 32, 2
    $region100: #{_lambda_.9} parent=1 // pred_fallthru
      _
    // Predicated region
    $region101: #{_lambda_.9} parent=1 // pred_check
      _
    $region102: #{_lambda_.9} parent=1 // pred_check_branch
      %1015 = sbr.rel (0) target = $region104
    $region103: #{_lambda_.9} parent=1 // pred_region
      %1017 = vsyncadd [#allocation7], 0
      %s1019 = sshll.u32 [#allocation6], 4
      %s1020 = int_to_ptr.vmem [resolvable:$true] %s1019
      %s1021 = sshll.u32 %s23, 4
      %s1022 = int_to_ptr.hbm [resolvable:$true] %s1021
      %1024 = dma.vmem_to_hbm [thread:$0]  %s1020, 16, %s1022, [#allocation7]
    $region104: #{_lambda_.9} parent=1 // pred_fallthru
      _
    // Predicated region
    $region105: #{_lambda_.9} parent=1 // pred_check
      _
    $region106: #{_lambda_.9} parent=1 // pred_check_branch
      %1026 = sbr.rel (0) target = $region108
    $region107: #{_lambda_.9} parent=1 // pred_region
      %1028 = dma.done [#allocation5], 192
    $region108: #{_lambda_.9} parent=1 // pred_fallthru
      _
    // Predicated region
    $region109: #{_lambda_.9} parent=1 // pred_check
      _
    $region110: #{_lambda_.9} parent=1 // pred_check_branch
      %1030 = sbr.rel (0) target = $region112
    $region111: #{_lambda_.9} parent=1 // pred_region
      %1032 = dma.done [#allocation7], 16
    $region112: #{_lambda_.9} parent=1 // pred_fallthru
      _
    %1033 = vsyncpa [#allocation5], 1
    %1034 = vsyncpa [#allocation7], 1

</llo_original>
